<compile_context>
chip_gen: v7x
topology: tpu7x:2x2x1
jax: 0.10.0
libtpu: 0.0.40
codegen_flags: <defaults>
</compile_context>

<pallas_src>
import functools

import jax
import jax.numpy as jnp
from jax.experimental import pallas as pl
from jax.experimental.pallas import tpu as pltpu

EPS = 1e-5  # PyTorch GroupNorm default eps


# ----------------------------- in-kernel helpers -----------------------------

def _silu(v):
    # sigmoid = 1 / (1 + exp(-v)); exp + approx-reciprocal both run on the EUP,
    # keeping the f32 divide off the VALU slots.
    return v * pl.reciprocal(1.0 + jnp.exp(-v), approx=True)


def _group_norm(x, gamma, beta, mem, memT, cpg):
    """Two-pass GroupNorm over (group-channels, length) for one sample.

    x: (L, C); mem: (C, G) 0/1 membership; memT: (G, C); gamma/beta: (1, C).
    Group statistics via membership-matrix matmuls (no reshapes); centering
    before the variance pass avoids E[x^2]-E[x]^2 cancellation.
    """
    L = x.shape[0]
    inv_n = 1.0 / float(L * cpg)
    mean_g = jnp.dot(jnp.sum(x, axis=0, keepdims=True), mem,
                     preferred_element_type=jnp.float32) * inv_n        # (1, G)
    mean_c = jnp.dot(mean_g, memT, preferred_element_type=jnp.float32)  # (1, C)
    xc = x - mean_c
    var_g = jnp.dot(jnp.sum(xc * xc, axis=0, keepdims=True), mem,
                    preferred_element_type=jnp.float32) * inv_n         # (1, G)
    inv_c = jnp.dot(jax.lax.rsqrt(var_g + EPS), memT,
                    preferred_element_type=jnp.float32)                 # (1, C)
    return xc * inv_c * gamma + beta


# ------------------------------- fused kernel --------------------------------

def _encoder_block_kernel(
        # per-sample activations
        x_ref, tc_ref, t_ref, z_ref,
        # conv1 (x half + time_cond half) + gn1
        w1x_ref, w1t_ref, b1_ref, g1_ref, beta1_ref,
        # conv2 + gn2
        w2_ref, b2_ref, g2_ref, beta2_ref,
        # group-norm membership matrices
        mem_ref, memT_ref,
        # time_mlp (second linear pre-split into mult/add halves)
        tw1_ref, tb1_ref, tw2m_ref, tb2m_ref, tw2a_ref, tb2a_ref,
        # cond_mlp
        cw1_ref, cb1_ref, cw2m_ref, cb2m_ref, cw2a_ref, cb2a_ref,
        # pool conv
        wp_ref, bp_ref,
        # outputs
        pooled_ref, skip_ref,
        # VMEM scratch: padded conv inputs ('same' padding done in-kernel)
        cbuf, tbuf,
        *, L, K, pad, ratio, Lout, cpg):
    C = x_ref.shape[-1]
    out_c = wp_ref.shape[-1]

    # ---- FiLM MLPs: Linear -> SiLU -> Linear (mult/add halves) ----
    th = _silu(jnp.dot(t_ref[...], tw1_ref[...],
                       preferred_element_type=jnp.float32) + tb1_ref[...])
    t_mult = jnp.dot(th, tw2m_ref[...], preferred_element_type=jnp.float32) + tb2m_ref[...]
    t_add = jnp.dot(th, tw2a_ref[...], preferred_element_type=jnp.float32) + tb2a_ref[...]
    zh = _silu(jnp.dot(z_ref[...], cw1_ref[...],
                       preferred_element_type=jnp.float32) + cb1_ref[...])
    z_mult = jnp.dot(zh, cw2m_ref[...], preferred_element_type=jnp.float32) + cb2m_ref[...]
    z_add = jnp.dot(zh, cw2a_ref[...], preferred_element_type=jnp.float32) + cb2a_ref[...]

    # ---- zero-pad conv inputs into VMEM scratch (no wrapper jnp.pad / HBM copy) ----
    cbuf[...] = jnp.zeros_like(cbuf)
    tbuf[...] = jnp.zeros_like(tbuf)
    x = x_ref[...]                              # (L, C); also the residual source
    cbuf[pl.ds(pad, L), :] = x
    tbuf[pl.ds(pad, L), :] = tc_ref[...]

    # ---- conv1 (K taps; x half + time_cond half) + GN1 + SiLU + FiLM + SiLU ----
    acc = jnp.zeros((L, C), jnp.float32)
    for k in range(K):                          # K static -> unrolled MXU matmuls
        acc = acc + jnp.dot(cbuf[pl.ds(k, L), :], w1x_ref[k],
                            preferred_element_type=jnp.float32)
        acc = acc + jnp.dot(tbuf[pl.ds(k, L), :], w1t_ref[k],
                            preferred_element_type=jnp.float32)
    h = acc + b1_ref[...]
    h = _group_norm(h, g1_ref[...], beta1_ref[...], mem_ref[...], memT_ref[...], cpg)
    h = _silu(h)
    h = h * t_mult + t_add                      # FiLM from time (mult, add)
    h = h * z_mult + z_add                      # FiLM from zsem
    h = _silu(h)

    # ---- conv2 + GN2 + SiLU + residual (to_out = Identity, res=True) ----
    cbuf[pl.ds(pad, L), :] = h                  # pad rows stay zero
    acc = jnp.zeros((L, C), jnp.float32)
    for k in range(K):
        acc = acc + jnp.dot(cbuf[pl.ds(k, L), :], w2_ref[k],
                            preferred_element_type=jnp.float32)
    s = acc + b2_ref[...]
    s = _group_norm(s, g2_ref[...], beta2_ref[...], mem_ref[...], memT_ref[...], cpg)
    s = _silu(s) + x
    skip_ref[...] = s

    # ---- pool conv evaluated only at the strided output positions ----
    cbuf[pl.ds(pad, L), :] = s
    pacc = jnp.zeros((Lout, out_c), jnp.float32)
    for k in range(K):
        if ratio > 1:
            rows = cbuf[pl.ds(k, Lout, stride=ratio), :]   # rows k, k+ratio, ...
        else:
            rows = cbuf[pl.ds(k, Lout), :]
        pacc = pacc + jnp.dot(rows, wp_ref[k], preferred_element_type=jnp.float32)
    pooled_ref[...] = pacc + bp_ref[...]


# --------------------------------- wrapper -----------------------------------

def encoder_block_1d(params, x_ncl, time, time_cond_ncl, zsem, *, ratio=2):
    N, C, L = x_ncl.shape                       # ConvBlock1D(out_c=in_c)
    K = params["conv1_wx"].shape[0]
    pad = K // 2    # TODO(synk): even kernel_size 'same' padding (asymmetric) not handled
    G = params["mem"].shape[1]
    cpg = C // G
    Ctc = params["conv1_wt"].shape[1]
    out_c = params["pool_w"].shape[-1]
    Tc = params["t_w1"].shape[0]
    Cz = params["c_w1"].shape[0]
    Lout = (L + 2 * pad - K) // ratio + 1       # PyTorch strided-conv output length

    x = jnp.transpose(x_ncl, (0, 2, 1)).astype(jnp.float32)           # (N, L, C)
    tc = jnp.transpose(time_cond_ncl, (0, 2, 1)).astype(jnp.float32)  # (N, L, Ctc)
    t3 = time.astype(jnp.float32)[:, None, :]                         # (N, 1, Tc)
    z3 = zsem.astype(jnp.float32)[:, None, :]                         # (N, 1, Cz)

    def rep(a):   # replicated (grid-invariant) weight: fetched once, kept in VMEM
        nd = a.ndim
        return pl.BlockSpec(a.shape, lambda n, _nd=nd: (0,) * _nd)

    weights = (
        params["conv1_wx"], params["conv1_wt"], params["conv1_b"],
        params["gn1_g"], params["gn1_b"],
        params["conv2_w"], params["conv2_b"], params["gn2_g"], params["gn2_b"],
        params["mem"], params["memT"],
        params["t_w1"], params["t_b1"], params["t_w2m"], params["t_b2m"],
        params["t_w2a"], params["t_b2a"],
        params["c_w1"], params["c_b1"], params["c_w2m"], params["c_b2m"],
        params["c_w2a"], params["c_b2a"],
        params["pool_w"], params["pool_b"],
    )

    in_specs = [
        pl.BlockSpec((None, L, C), lambda n: (n, 0, 0)),     # x
        pl.BlockSpec((None, L, Ctc), lambda n: (n, 0, 0)),   # time_cond
        pl.BlockSpec((None, 1, Tc), lambda n: (n, 0, 0)),    # time
        pl.BlockSpec((None, 1, Cz), lambda n: (n, 0, 0)),    # zsem
    ] + [rep(w) for w in weights]

    pooled, skip = pl.pallas_call(
        functools.partial(_encoder_block_kernel, L=L, K=K, pad=pad, ratio=ratio,
                          Lout=Lout, cpg=cpg),
        out_shape=(jax.ShapeDtypeStruct((N, Lout, out_c), jnp.float32),
                   jax.ShapeDtypeStruct((N, L, C), jnp.float32)),
        grid=(N,),
        in_specs=in_specs,
        out_specs=[pl.BlockSpec((None, Lout, out_c), lambda n: (n, 0, 0)),
                   pl.BlockSpec((None, L, C), lambda n: (n, 0, 0))],
        scratch_shapes=[pltpu.VMEM((L + 2 * pad, C), jnp.float32),
                        pltpu.VMEM((L + 2 * pad, Ctc), jnp.float32)],
        compiler_params=pltpu.CompilerParams(
            dimension_semantics=("parallel",)),   # batch axis -> both TCs on v7x
    )(x, tc, t3, z3, *weights)

    # back to PyTorch NCL convention
    x_out = jnp.transpose(pooled, (0, 2, 1))      # (N, out_c, Lout)
    skip_out = jnp.transpose(skip, (0, 2, 1))     # (N, in_c, L)
    return x_out, skip_out


# ---------------------------- deterministic params ----------------------------

def init_params(key, in_c, out_c, time_cond_channels, time_channels, cond_channels,
                kernel_size):
    C = in_c
    G = min(16, C)
    cpg = C // G
    ks = jax.random.split(key, 23)

    def nrm(k, shape, scale):
        return jax.random.normal(k, shape, jnp.float32) * scale

    p = {
        # conv weights stored as (K, Cin, Cout) for channels-last matmuls;
        # conv1 split into the x half and the time_cond half (no wrapper concat).
        "conv1_wx": nrm(ks[0], (kernel_size, C, C), 0.1),
        "conv1_wt": nrm(ks[1], (kernel_size, time_cond_channels, C), 0.1),
        "conv1_b": nrm(ks[2], (1, C), 0.05),
        "gn1_g": 1.0 + nrm(ks[3], (1, C), 0.05),
        "gn1_b": nrm(ks[4], (1, C), 0.05),
        "conv2_w": nrm(ks[5], (kernel_size, C, C), 0.1),
        "conv2_b": nrm(ks[6], (1, C), 0.05),
        "gn2_g": 1.0 + nrm(ks[7], (1, C), 0.05),
        "gn2_b": nrm(ks[8], (1, C), 0.05),
        # time_mlp: Linear(Tc,128)->SiLU->Linear(128,2C); second linear stored
        # pre-split into (mult, add) halves == torch.split(..., C, -1) ordering.
        "t_w1": nrm(ks[9], (time_channels, 128), 0.1),
        "t_b1": nrm(ks[10], (1, 128), 0.05),
        "t_w2m": nrm(ks[11], (128, C), 0.1),
        "t_b2m": nrm(ks[12], (1, C), 0.05),
        "t_w2a": nrm(ks[13], (128, C), 0.1),
        "t_b2a": nrm(ks[14], (1, C), 0.05),
        # cond_mlp
        "c_w1": nrm(ks[15], (cond_channels, 128), 0.1),
        "c_b1": nrm(ks[16], (1, 128), 0.05),
        "c_w2m": nrm(ks[17], (128, C), 0.1),
        "c_b2m": nrm(ks[18], (1, C), 0.05),
        "c_w2a": nrm(ks[19], (128, C), 0.1),
        "c_b2a": nrm(ks[20], (1, C), 0.05),
        # pool conv
        "pool_w": nrm(ks[21], (kernel_size, C, out_c), 0.1),
        "pool_b": nrm(ks[22], (1, out_c), 0.05),
    }
    # GroupNorm membership matrix: contiguous groups of cpg channels (PyTorch semantics)
    mem = (jnp.arange(C)[:, None] // cpg == jnp.arange(G)[None, :]).astype(jnp.float32)
    p["mem"] = mem
    p["memT"] = mem.T
    return p


# ----------------------------------- main -------------------------------------

if __name__ == "__main__":
    N, in_c, out_c, L = 2, 32, 64, 16
    time_channels, cond_channels, time_cond_channels = 16, 8, 8
    kernel_size, ratio = 3, 2

    key = jax.random.PRNGKey(0)
    kx, kt, ktc, kz, kp = jax.random.split(key, 5)
    x = jax.random.normal(kx, (N, in_c, L), jnp.float32)                 # NCL like PyTorch
    time = jax.random.normal(kt, (N, time_channels), jnp.float32)
    time_cond = jax.random.normal(ktc, (N, time_cond_channels, L), jnp.float32)
    zsem = jax.random.normal(kz, (N, cond_channels), jnp.float32)

    params = init_params(kp, in_c, out_c, time_cond_channels, time_channels,
                         cond_channels, kernel_size)

    x_out, skip = encoder_block_1d(params, x, time, time_cond, zsem, ratio=ratio)
    jax.block_until_ready((x_out, skip))

    assert x_out.shape == (N, out_c, L // ratio), x_out.shape
    assert skip.shape == (N, in_c, L), skip.shape
    print("KERNEL_OK")
</pallas_src>

<mosaic_0001>
module attributes {stable_mosaic.version = 11 : i64} {
  func.func @_encoder_block_kernel(%arg0: i32, %arg1: memref<1x16x32xf32, #tpu.memory_space<vmem>>, %arg2: memref<1x16x8xf32, #tpu.memory_space<vmem>>, %arg3: memref<1x1x16xf32, #tpu.memory_space<vmem>>, %arg4: memref<1x1x8xf32, #tpu.memory_space<vmem>>, %arg5: memref<3x32x32xf32, #tpu.memory_space<vmem>>, %arg6: memref<3x8x32xf32, #tpu.memory_space<vmem>>, %arg7: memref<1x32xf32, #tpu.memory_space<vmem>>, %arg8: memref<1x32xf32, #tpu.memory_space<vmem>>, %arg9: memref<1x32xf32, #tpu.memory_space<vmem>>, %arg10: memref<3x32x32xf32, #tpu.memory_space<vmem>>, %arg11: memref<1x32xf32, #tpu.memory_space<vmem>>, %arg12: memref<1x32xf32, #tpu.memory_space<vmem>>, %arg13: memref<1x32xf32, #tpu.memory_space<vmem>>, %arg14: memref<32x16xf32, #tpu.memory_space<vmem>>, %arg15: memref<16x32xf32, #tpu.memory_space<vmem>>, %arg16: memref<16x128xf32, #tpu.memory_space<vmem>>, %arg17: memref<1x128xf32, #tpu.memory_space<vmem>>, %arg18: memref<128x32xf32, #tpu.memory_space<vmem>>, %arg19: memref<1x32xf32, #tpu.memory_space<vmem>>, %arg20: memref<128x32xf32, #tpu.memory_space<vmem>>, %arg21: memref<1x32xf32, #tpu.memory_space<vmem>>, %arg22: memref<8x128xf32, #tpu.memory_space<vmem>>, %arg23: memref<1x128xf32, #tpu.memory_space<vmem>>, %arg24: memref<128x32xf32, #tpu.memory_space<vmem>>, %arg25: memref<1x32xf32, #tpu.memory_space<vmem>>, %arg26: memref<128x32xf32, #tpu.memory_space<vmem>>, %arg27: memref<1x32xf32, #tpu.memory_space<vmem>>, %arg28: memref<3x32x64xf32, #tpu.memory_space<vmem>>, %arg29: memref<1x64xf32, #tpu.memory_space<vmem>>, %arg30: memref<1x8x64xf32, #tpu.memory_space<vmem>>, %arg31: memref<1x16x32xf32, #tpu.memory_space<vmem>>, %arg32: memref<18x32xf32, #tpu.memory_space<vmem>>, %arg33: memref<18x8xf32, #tpu.memory_space<vmem>>) attributes {dimension_semantics = [#tpu.dimension_semantics<parallel>], iteration_bounds = array<i64: 2>, scalar_prefetch = 0 : i64, scratch_operands = 2 : i64, tpu.core_type = #tpu.core_type<tc>, window_params = [{transform_indices = @transform_0, window_bounds = array<i64: 1, 16, 32>}, {transform_indices = @transform_1, window_bounds = array<i64: 1, 16, 8>}, {transform_indices = @transform_2, window_bounds = array<i64: 1, 1, 16>}, {transform_indices = @transform_3, window_bounds = array<i64: 1, 1, 8>}, {pipeline_mode = #tpu.pipeline_mode<synchronous>, transform_indices = @transform_4, window_bounds = array<i64: 3, 32, 32>}, {pipeline_mode = #tpu.pipeline_mode<synchronous>, transform_indices = @transform_5, window_bounds = array<i64: 3, 8, 32>}, {pipeline_mode = #tpu.pipeline_mode<synchronous>, transform_indices = @transform_6, window_bounds = array<i64: 1, 32>}, {pipeline_mode = #tpu.pipeline_mode<synchronous>, transform_indices = @transform_7, window_bounds = array<i64: 1, 32>}, {pipeline_mode = #tpu.pipeline_mode<synchronous>, transform_indices = @transform_8, window_bounds = array<i64: 1, 32>}, {pipeline_mode = #tpu.pipeline_mode<synchronous>, transform_indices = @transform_9, window_bounds = array<i64: 3, 32, 32>}, {pipeline_mode = #tpu.pipeline_mode<synchronous>, transform_indices = @transform_10, window_bounds = array<i64: 1, 32>}, {pipeline_mode = #tpu.pipeline_mode<synchronous>, transform_indices = @transform_11, window_bounds = array<i64: 1, 32>}, {pipeline_mode = #tpu.pipeline_mode<synchronous>, transform_indices = @transform_12, window_bounds = array<i64: 1, 32>}, {pipeline_mode = #tpu.pipeline_mode<synchronous>, transform_indices = @transform_13, window_bounds = array<i64: 32, 16>}, {pipeline_mode = #tpu.pipeline_mode<synchronous>, transform_indices = @transform_14, window_bounds = array<i64: 16, 32>}, {pipeline_mode = #tpu.pipeline_mode<synchronous>, transform_indices = @transform_15, window_bounds = array<i64: 16, 128>}, {pipeline_mode = #tpu.pipeline_mode<synchronous>, transform_indices = @transform_16, window_bounds = array<i64: 1, 128>}, {pipeline_mode = #tpu.pipeline_mode<synchronous>, transform_indices = @transform_17, window_bounds = array<i64: 128, 32>}, {pipeline_mode = #tpu.pipeline_mode<synchronous>, transform_indices = @transform_18, window_bounds = array<i64: 1, 32>}, {pipeline_mode = #tpu.pipeline_mode<synchronous>, transform_indices = @transform_19, window_bounds = array<i64: 128, 32>}, {pipeline_mode = #tpu.pipeline_mode<synchronous>, transform_indices = @transform_20, window_bounds = array<i64: 1, 32>}, {pipeline_mode = #tpu.pipeline_mode<synchronous>, transform_indices = @transform_21, window_bounds = array<i64: 8, 128>}, {pipeline_mode = #tpu.pipeline_mode<synchronous>, transform_indices = @transform_22, window_bounds = array<i64: 1, 128>}, {pipeline_mode = #tpu.pipeline_mode<synchronous>, transform_indices = @transform_23, window_bounds = array<i64: 128, 32>}, {pipeline_mode = #tpu.pipeline_mode<synchronous>, transform_indices = @transform_24, window_bounds = array<i64: 1, 32>}, {pipeline_mode = #tpu.pipeline_mode<synchronous>, transform_indices = @transform_25, window_bounds = array<i64: 128, 32>}, {pipeline_mode = #tpu.pipeline_mode<synchronous>, transform_indices = @transform_26, window_bounds = array<i64: 1, 32>}, {pipeline_mode = #tpu.pipeline_mode<synchronous>, transform_indices = @transform_27, window_bounds = array<i64: 3, 32, 64>}, {pipeline_mode = #tpu.pipeline_mode<synchronous>, transform_indices = @transform_28, window_bounds = array<i64: 1, 64>}, {transform_indices = @transform_29, window_bounds = array<i64: 1, 8, 64>}, {transform_indices = @transform_30, window_bounds = array<i64: 1, 16, 32>}]} {
    %c0 = arith.constant 0 : index
    %c0_0 = arith.constant 0 : index
    %c0_1 = arith.constant 0 : index
    %0 = vector.load %arg3[%c0, %c0_0, %c0_1] : memref<1x1x16xf32, #tpu.memory_space<vmem>>, vector<1x1x16xf32>
    %1 = vector.shape_cast %0 : vector<1x1x16xf32> to vector<1x16xf32>
    %c0_2 = arith.constant 0 : index
    %c0_3 = arith.constant 0 : index
    %2 = vector.load %arg16[%c0_2, %c0_3] : memref<16x128xf32, #tpu.memory_space<vmem>>, vector<16x128xf32>
    %cst = arith.constant dense<0.000000e+00> : vector<1x128xf32>
    %3 = tpu.matmul %1, %2, %cst {dimension_numbers = #tpu.dot_dimension_numbers<[1], [0], [0], [1], [0, 0, 1, 1], [], []>} : vector<1x16xf32>, vector<16x128xf32>, vector<1x128xf32> -> vector<1x128xf32>
    %c0_4 = arith.constant 0 : index
    %c0_5 = arith.constant 0 : index
    %4 = vector.load %arg17[%c0_4, %c0_5] : memref<1x128xf32, #tpu.memory_space<vmem>>, vector<1x128xf32>
    %5 = arith.addf %3, %4 : vector<1x128xf32>
    %cst_6 = arith.constant 0.000000e+00 : f32
    %6 = vector.broadcast %cst_6 : f32 to vector<1x128xf32>
    %7 = arith.subf %6, %5 : vector<1x128xf32>
    %8 = math.exp %7 : vector<1x128xf32>
    %cst_7 = arith.constant 1.000000e+00 : f32
    %9 = vector.broadcast %cst_7 : f32 to vector<1x128xf32>
    %10 = arith.addf %9, %8 : vector<1x128xf32>
    %11 = tpu.reciprocal %10 {approx = true} : vector<1x128xf32> -> vector<1x128xf32>
    %12 = arith.mulf %5, %11 : vector<1x128xf32>
    %c0_8 = arith.constant 0 : index
    %c0_9 = arith.constant 0 : index
    %13 = vector.load %arg18[%c0_8, %c0_9] : memref<128x32xf32, #tpu.memory_space<vmem>>, vector<128x32xf32>
    %cst_10 = arith.constant dense<0.000000e+00> : vector<1x32xf32>
    %14 = tpu.matmul %12, %13, %cst_10 {dimension_numbers = #tpu.dot_dimension_numbers<[1], [0], [0], [1], [0, 0, 1, 1], [], []>} : vector<1x128xf32>, vector<128x32xf32>, vector<1x32xf32> -> vector<1x32xf32>
    %c0_11 = arith.constant 0 : index
    %c0_12 = arith.constant 0 : index
    %15 = vector.load %arg19[%c0_11, %c0_12] : memref<1x32xf32, #tpu.memory_space<vmem>>, vector<1x32xf32>
    %16 = arith.addf %14, %15 : vector<1x32xf32>
    %c0_13 = arith.constant 0 : index
    %c0_14 = arith.constant 0 : index
    %17 = vector.load %arg20[%c0_13, %c0_14] : memref<128x32xf32, #tpu.memory_space<vmem>>, vector<128x32xf32>
    %cst_15 = arith.constant dense<0.000000e+00> : vector<1x32xf32>
    %18 = tpu.matmul %12, %17, %cst_15 {dimension_numbers = #tpu.dot_dimension_numbers<[1], [0], [0], [1], [0, 0, 1, 1], [], []>} : vector<1x128xf32>, vector<128x32xf32>, vector<1x32xf32> -> vector<1x32xf32>
    %c0_16 = arith.constant 0 : index
    %c0_17 = arith.constant 0 : index
    %19 = vector.load %arg21[%c0_16, %c0_17] : memref<1x32xf32, #tpu.memory_space<vmem>>, vector<1x32xf32>
    %20 = arith.addf %18, %19 : vector<1x32xf32>
    %c0_18 = arith.constant 0 : index
    %c0_19 = arith.constant 0 : index
    %c0_20 = arith.constant 0 : index
    %21 = vector.load %arg4[%c0_18, %c0_19, %c0_20] : memref<1x1x8xf32, #tpu.memory_space<vmem>>, vector<1x1x8xf32>
    %22 = vector.shape_cast %21 : vector<1x1x8xf32> to vector<1x8xf32>
    %c0_21 = arith.constant 0 : index
    %c0_22 = arith.constant 0 : index
    %23 = vector.load %arg22[%c0_21, %c0_22] : memref<8x128xf32, #tpu.memory_space<vmem>>, vector<8x128xf32>
    %cst_23 = arith.constant dense<0.000000e+00> : vector<1x128xf32>
    %24 = tpu.matmul %22, %23, %cst_23 {dimension_numbers = #tpu.dot_dimension_numbers<[1], [0], [0], [1], [0, 0, 1, 1], [], []>} : vector<1x8xf32>, vector<8x128xf32>, vector<1x128xf32> -> vector<1x128xf32>
    %c0_24 = arith.constant 0 : index
    %c0_25 = arith.constant 0 : index
    %25 = vector.load %arg23[%c0_24, %c0_25] : memref<1x128xf32, #tpu.memory_space<vmem>>, vector<1x128xf32>
    %26 = arith.addf %24, %25 : vector<1x128xf32>
    %cst_26 = arith.constant 0.000000e+00 : f32
    %27 = vector.broadcast %cst_26 : f32 to vector<1x128xf32>
    %28 = arith.subf %27, %26 : vector<1x128xf32>
    %29 = math.exp %28 : vector<1x128xf32>
    %cst_27 = arith.constant 1.000000e+00 : f32
    %30 = vector.broadcast %cst_27 : f32 to vector<1x128xf32>
    %31 = arith.addf %30, %29 : vector<1x128xf32>
    %32 = tpu.reciprocal %31 {approx = true} : vector<1x128xf32> -> vector<1x128xf32>
    %33 = arith.mulf %26, %32 : vector<1x128xf32>
    %c0_28 = arith.constant 0 : index
    %c0_29 = arith.constant 0 : index
    %34 = vector.load %arg24[%c0_28, %c0_29] : memref<128x32xf32, #tpu.memory_space<vmem>>, vector<128x32xf32>
    %cst_30 = arith.constant dense<0.000000e+00> : vector<1x32xf32>
    %35 = tpu.matmul %33, %34, %cst_30 {dimension_numbers = #tpu.dot_dimension_numbers<[1], [0], [0], [1], [0, 0, 1, 1], [], []>} : vector<1x128xf32>, vector<128x32xf32>, vector<1x32xf32> -> vector<1x32xf32>
    %c0_31 = arith.constant 0 : index
    %c0_32 = arith.constant 0 : index
    %36 = vector.load %arg25[%c0_31, %c0_32] : memref<1x32xf32, #tpu.memory_space<vmem>>, vector<1x32xf32>
    %37 = arith.addf %35, %36 : vector<1x32xf32>
    %c0_33 = arith.constant 0 : index
    %c0_34 = arith.constant 0 : index
    %38 = vector.load %arg26[%c0_33, %c0_34] : memref<128x32xf32, #tpu.memory_space<vmem>>, vector<128x32xf32>
    %cst_35 = arith.constant dense<0.000000e+00> : vector<1x32xf32>
    %39 = tpu.matmul %33, %38, %cst_35 {dimension_numbers = #tpu.dot_dimension_numbers<[1], [0], [0], [1], [0, 0, 1, 1], [], []>} : vector<1x128xf32>, vector<128x32xf32>, vector<1x32xf32> -> vector<1x32xf32>
    %c0_36 = arith.constant 0 : index
    %c0_37 = arith.constant 0 : index
    %40 = vector.load %arg27[%c0_36, %c0_37] : memref<1x32xf32, #tpu.memory_space<vmem>>, vector<1x32xf32>
    %41 = arith.addf %39, %40 : vector<1x32xf32>
    %cst_38 = arith.constant 0.000000e+00 : f32
    %42 = vector.broadcast %cst_38 : f32 to vector<18x32xf32>
    %c0_39 = arith.constant 0 : index
    %c0_40 = arith.constant 0 : index
    %43 = vector.load %arg32[%c0_39, %c0_40] : memref<18x32xf32, #tpu.memory_space<vmem>>, vector<18x32xf32>
    tpu.vector_store %arg32[%c0_39, %c0_40], %42 {strides = array<i32>} : memref<18x32xf32, #tpu.memory_space<vmem>>, vector<18x32xf32>,
    %cst_41 = arith.constant 0.000000e+00 : f32
    %44 = vector.broadcast %cst_41 : f32 to vector<18x8xf32>
    %c0_42 = arith.constant 0 : index
    %c0_43 = arith.constant 0 : index
    %45 = vector.load %arg33[%c0_42, %c0_43] : memref<18x8xf32, #tpu.memory_space<vmem>>, vector<18x8xf32>
    tpu.vector_store %arg33[%c0_42, %c0_43], %44 {strides = array<i32>} : memref<18x8xf32, #tpu.memory_space<vmem>>, vector<18x8xf32>,
    %c0_44 = arith.constant 0 : index
    %c0_45 = arith.constant 0 : index
    %c0_46 = arith.constant 0 : index
    %46 = vector.load %arg1[%c0_44, %c0_45, %c0_46] : memref<1x16x32xf32, #tpu.memory_space<vmem>>, vector<1x16x32xf32>
    %47 = vector.shape_cast %46 : vector<1x16x32xf32> to vector<16x32xf32>
    %c1 = arith.constant 1 : index
    %c0_47 = arith.constant 0 : index
    %48 = vector.load %arg32[%c1, %c0_47] : memref<18x32xf32, #tpu.memory_space<vmem>>, vector<16x32xf32>
    tpu.vector_store %arg32[%c1, %c0_47], %47 {strides = array<i32>} : memref<18x32xf32, #tpu.memory_space<vmem>>, vector<16x32xf32>,
    %c0_48 = arith.constant 0 : index
    %c0_49 = arith.constant 0 : index
    %c0_50 = arith.constant 0 : index
    %49 = vector.load %arg2[%c0_48, %c0_49, %c0_50] : memref<1x16x8xf32, #tpu.memory_space<vmem>>, vector<1x16x8xf32>
    %50 = vector.shape_cast %49 : vector<1x16x8xf32> to vector<16x8xf32>
    %c1_51 = arith.constant 1 : index
    %c0_52 = arith.constant 0 : index
    %51 = vector.load %arg33[%c1_51, %c0_52] : memref<18x8xf32, #tpu.memory_space<vmem>>, vector<16x8xf32>
    tpu.vector_store %arg33[%c1_51, %c0_52], %50 {strides = array<i32>} : memref<18x8xf32, #tpu.memory_space<vmem>>, vector<16x8xf32>,
    %cst_53 = arith.constant 0.000000e+00 : f32
    %52 = vector.broadcast %cst_53 : f32 to vector<16x32xf32>
    %c0_54 = arith.constant 0 : index
    %c0_55 = arith.constant 0 : index
    %53 = vector.load %arg32[%c0_54, %c0_55] : memref<18x32xf32, #tpu.memory_space<vmem>>, vector<16x32xf32>
    %c0_56 = arith.constant 0 : index
    %c0_57 = arith.constant 0 : index
    %c0_58 = arith.constant 0 : index
    %54 = vector.load %arg5[%c0_56, %c0_57, %c0_58] : memref<3x32x32xf32, #tpu.memory_space<vmem>>, vector<1x32x32xf32>
    %55 = vector.shape_cast %54 : vector<1x32x32xf32> to vector<32x32xf32>
    %cst_59 = arith.constant dense<0.000000e+00> : vector<16x32xf32>
    %56 = tpu.matmul %53, %55, %cst_59 {dimension_numbers = #tpu.dot_dimension_numbers<[1], [0], [0], [1], [0, 0, 1, 1], [], []>} : vector<16x32xf32>, vector<32x32xf32>, vector<16x32xf32> -> vector<16x32xf32>
    %57 = arith.addf %52, %56 : vector<16x32xf32>
    %c0_60 = arith.constant 0 : index
    %c0_61 = arith.constant 0 : index
    %58 = vector.load %arg33[%c0_60, %c0_61] : memref<18x8xf32, #tpu.memory_space<vmem>>, vector<16x8xf32>
    %c0_62 = arith.constant 0 : index
    %c0_63 = arith.constant 0 : index
    %c0_64 = arith.constant 0 : index
    %59 = vector.load %arg6[%c0_62, %c0_63, %c0_64] : memref<3x8x32xf32, #tpu.memory_space<vmem>>, vector<1x8x32xf32>
    %60 = vector.shape_cast %59 : vector<1x8x32xf32> to vector<8x32xf32>
    %cst_65 = arith.constant dense<0.000000e+00> : vector<16x32xf32>
    %61 = tpu.matmul %58, %60, %cst_65 {dimension_numbers = #tpu.dot_dimension_numbers<[1], [0], [0], [1], [0, 0, 1, 1], [], []>} : vector<16x8xf32>, vector<8x32xf32>, vector<16x32xf32> -> vector<16x32xf32>
    %62 = arith.addf %57, %61 : vector<16x32xf32>
    %c1_66 = arith.constant 1 : index
    %c0_67 = arith.constant 0 : index
    %63 = vector.load %arg32[%c1_66, %c0_67] : memref<18x32xf32, #tpu.memory_space<vmem>>, vector<16x32xf32>
    %c1_68 = arith.constant 1 : index
    %c0_69 = arith.constant 0 : index
    %c0_70 = arith.constant 0 : index
    %64 = vector.load %arg5[%c1_68, %c0_69, %c0_70] : memref<3x32x32xf32, #tpu.memory_space<vmem>>, vector<1x32x32xf32>
    %65 = vector.shape_cast %64 : vector<1x32x32xf32> to vector<32x32xf32>
    %cst_71 = arith.constant dense<0.000000e+00> : vector<16x32xf32>
    %66 = tpu.matmul %63, %65, %cst_71 {dimension_numbers = #tpu.dot_dimension_numbers<[1], [0], [0], [1], [0, 0, 1, 1], [], []>} : vector<16x32xf32>, vector<32x32xf32>, vector<16x32xf32> -> vector<16x32xf32>
    %67 = arith.addf %62, %66 : vector<16x32xf32>
    %c1_72 = arith.constant 1 : index
    %c0_73 = arith.constant 0 : index
    %68 = vector.load %arg33[%c1_72, %c0_73] : memref<18x8xf32, #tpu.memory_space<vmem>>, vector<16x8xf32>
    %c1_74 = arith.constant 1 : index
    %c0_75 = arith.constant 0 : index
    %c0_76 = arith.constant 0 : index
    %69 = vector.load %arg6[%c1_74, %c0_75, %c0_76] : memref<3x8x32xf32, #tpu.memory_space<vmem>>, vector<1x8x32xf32>
    %70 = vector.shape_cast %69 : vector<1x8x32xf32> to vector<8x32xf32>
    %cst_77 = arith.constant dense<0.000000e+00> : vector<16x32xf32>
    %71 = tpu.matmul %68, %70, %cst_77 {dimension_numbers = #tpu.dot_dimension_numbers<[1], [0], [0], [1], [0, 0, 1, 1], [], []>} : vector<16x8xf32>, vector<8x32xf32>, vector<16x32xf32> -> vector<16x32xf32>
    %72 = arith.addf %67, %71 : vector<16x32xf32>
    %c2 = arith.constant 2 : index
    %c0_78 = arith.constant 0 : index
    %73 = vector.load %arg32[%c2, %c0_78] : memref<18x32xf32, #tpu.memory_space<vmem>>, vector<16x32xf32>
    %c2_79 = arith.constant 2 : index
    %c0_80 = arith.constant 0 : index
    %c0_81 = arith.constant 0 : index
    %74 = vector.load %arg5[%c2_79, %c0_80, %c0_81] : memref<3x32x32xf32, #tpu.memory_space<vmem>>, vector<1x32x32xf32>
    %75 = vector.shape_cast %74 : vector<1x32x32xf32> to vector<32x32xf32>
    %cst_82 = arith.constant dense<0.000000e+00> : vector<16x32xf32>
    %76 = tpu.matmul %73, %75, %cst_82 {dimension_numbers = #tpu.dot_dimension_numbers<[1], [0], [0], [1], [0, 0, 1, 1], [], []>} : vector<16x32xf32>, vector<32x32xf32>, vector<16x32xf32> -> vector<16x32xf32>
    %77 = arith.addf %72, %76 : vector<16x32xf32>
    %c2_83 = arith.constant 2 : index
    %c0_84 = arith.constant 0 : index
    %78 = vector.load %arg33[%c2_83, %c0_84] : memref<18x8xf32, #tpu.memory_space<vmem>>, vector<16x8xf32>
    %c2_85 = arith.constant 2 : index
    %c0_86 = arith.constant 0 : index
    %c0_87 = arith.constant 0 : index
    %79 = vector.load %arg6[%c2_85, %c0_86, %c0_87] : memref<3x8x32xf32, #tpu.memory_space<vmem>>, vector<1x8x32xf32>
    %80 = vector.shape_cast %79 : vector<1x8x32xf32> to vector<8x32xf32>
    %cst_88 = arith.constant dense<0.000000e+00> : vector<16x32xf32>
    %81 = tpu.matmul %78, %80, %cst_88 {dimension_numbers = #tpu.dot_dimension_numbers<[1], [0], [0], [1], [0, 0, 1, 1], [], []>} : vector<16x8xf32>, vector<8x32xf32>, vector<16x32xf32> -> vector<16x32xf32>
    %82 = arith.addf %77, %81 : vector<16x32xf32>
    %c0_89 = arith.constant 0 : index
    %c0_90 = arith.constant 0 : index
    %83 = vector.load %arg7[%c0_89, %c0_90] : memref<1x32xf32, #tpu.memory_space<vmem>>, vector<1x32xf32>
    %84 = vector.broadcast %83 : vector<1x32xf32> to vector<16x32xf32>
    %85 = arith.addf %82, %84 : vector<16x32xf32>
    %c0_91 = arith.constant 0 : index
    %c0_92 = arith.constant 0 : index
    %86 = vector.load %arg8[%c0_91, %c0_92] : memref<1x32xf32, #tpu.memory_space<vmem>>, vector<1x32xf32>
    %c0_93 = arith.constant 0 : index
    %c0_94 = arith.constant 0 : index
    %87 = vector.load %arg9[%c0_93, %c0_94] : memref<1x32xf32, #tpu.memory_space<vmem>>, vector<1x32xf32>
    %c0_95 = arith.constant 0 : index
    %c0_96 = arith.constant 0 : index
    %88 = vector.load %arg14[%c0_95, %c0_96] : memref<32x16xf32, #tpu.memory_space<vmem>>, vector<32x16xf32>
    %c0_97 = arith.constant 0 : index
    %c0_98 = arith.constant 0 : index
    %89 = vector.load %arg15[%c0_97, %c0_98] : memref<16x32xf32, #tpu.memory_space<vmem>>, vector<16x32xf32>
    %cst_99 = arith.constant dense<0.000000e+00> : vector<32xf32>
    %90 = vector.multi_reduction <add>, %85, %cst_99 [0] : vector<16x32xf32> to vector<32xf32>
    %91 = vector.shape_cast %90 : vector<32xf32> to vector<1x32xf32>
    %cst_100 = arith.constant dense<0.000000e+00> : vector<1x16xf32>
    %92 = tpu.matmul %91, %88, %cst_100 {dimension_numbers = #tpu.dot_dimension_numbers<[1], [0], [0], [1], [0, 0, 1, 1], [], []>} : vector<1x32xf32>, vector<32x16xf32>, vector<1x16xf32> -> vector<1x16xf32>
    %cst_101 = arith.constant 3.125000e-02 : f32
    %93 = vector.broadcast %cst_101 : f32 to vector<1x16xf32>
    %94 = arith.mulf %92, %93 : vector<1x16xf32>
    %cst_102 = arith.constant dense<0.000000e+00> : vector<1x32xf32>
    %95 = tpu.matmul %94, %89, %cst_102 {dimension_numbers = #tpu.dot_dimension_numbers<[1], [0], [0], [1], [0, 0, 1, 1], [], []>} : vector<1x16xf32>, vector<16x32xf32>, vector<1x32xf32> -> vector<1x32xf32>
    %96 = vector.broadcast %95 : vector<1x32xf32> to vector<16x32xf32>
    %97 = arith.subf %85, %96 : vector<16x32xf32>
    %98 = arith.mulf %97, %97 : vector<16x32xf32>
    %cst_103 = arith.constant dense<0.000000e+00> : vector<32xf32>
    %99 = vector.multi_reduction <add>, %98, %cst_103 [0] : vector<16x32xf32> to vector<32xf32>
    %100 = vector.shape_cast %99 : vector<32xf32> to vector<1x32xf32>
    %cst_104 = arith.constant dense<0.000000e+00> : vector<1x16xf32>
    %101 = tpu.matmul %100, %88, %cst_104 {dimension_numbers = #tpu.dot_dimension_numbers<[1], [0], [0], [1], [0, 0, 1, 1], [], []>} : vector<1x32xf32>, vector<32x16xf32>, vector<1x16xf32> -> vector<1x16xf32>
    %cst_105 = arith.constant 3.125000e-02 : f32
    %102 = vector.broadcast %cst_105 : f32 to vector<1x16xf32>
    %103 = arith.mulf %101, %102 : vector<1x16xf32>
    %cst_106 = arith.constant 9.99999974E-6 : f32
    %104 = vector.broadcast %cst_106 : f32 to vector<1x16xf32>
    %105 = arith.addf %103, %104 : vector<1x16xf32>
    %106 = math.rsqrt %105 : vector<1x16xf32>
    %cst_107 = arith.constant dense<0.000000e+00> : vector<1x32xf32>
    %107 = tpu.matmul %106, %89, %cst_107 {dimension_numbers = #tpu.dot_dimension_numbers<[1], [0], [0], [1], [0, 0, 1, 1], [], []>} : vector<1x16xf32>, vector<16x32xf32>, vector<1x32xf32> -> vector<1x32xf32>
    %108 = vector.broadcast %107 : vector<1x32xf32> to vector<16x32xf32>
    %109 = arith.mulf %97, %108 : vector<16x32xf32>
    %110 = vector.broadcast %86 : vector<1x32xf32> to vector<16x32xf32>
    %111 = arith.mulf %109, %110 : vector<16x32xf32>
    %112 = vector.broadcast %87 : vector<1x32xf32> to vector<16x32xf32>
    %113 = arith.addf %111, %112 : vector<16x32xf32>
    %cst_108 = arith.constant 0.000000e+00 : f32
    %114 = vector.broadcast %cst_108 : f32 to vector<16x32xf32>
    %115 = arith.subf %114, %113 : vector<16x32xf32>
    %116 = math.exp %115 : vector<16x32xf32>
    %cst_109 = arith.constant 1.000000e+00 : f32
    %117 = vector.broadcast %cst_109 : f32 to vector<16x32xf32>
    %118 = arith.addf %117, %116 : vector<16x32xf32>
    %119 = tpu.reciprocal %118 {approx = true} : vector<16x32xf32> -> vector<16x32xf32>
    %120 = arith.mulf %113, %119 : vector<16x32xf32>
    %121 = vector.broadcast %16 : vector<1x32xf32> to vector<16x32xf32>
    %122 = arith.mulf %120, %121 : vector<16x32xf32>
    %123 = vector.broadcast %20 : vector<1x32xf32> to vector<16x32xf32>
    %124 = arith.addf %122, %123 : vector<16x32xf32>
    %125 = vector.broadcast %37 : vector<1x32xf32> to vector<16x32xf32>
    %126 = arith.mulf %124, %125 : vector<16x32xf32>
    %127 = vector.broadcast %41 : vector<1x32xf32> to vector<16x32xf32>
    %128 = arith.addf %126, %127 : vector<16x32xf32>
    %cst_110 = arith.constant 0.000000e+00 : f32
    %129 = vector.broadcast %cst_110 : f32 to vector<16x32xf32>
    %130 = arith.subf %129, %128 : vector<16x32xf32>
    %131 = math.exp %130 : vector<16x32xf32>
    %cst_111 = arith.constant 1.000000e+00 : f32
    %132 = vector.broadcast %cst_111 : f32 to vector<16x32xf32>
    %133 = arith.addf %132, %131 : vector<16x32xf32>
    %134 = tpu.reciprocal %133 {approx = true} : vector<16x32xf32> -> vector<16x32xf32>
    %135 = arith.mulf %128, %134 : vector<16x32xf32>
    %c1_112 = arith.constant 1 : index
    %c0_113 = arith.constant 0 : index
    %136 = vector.load %arg32[%c1_112, %c0_113] : memref<18x32xf32, #tpu.memory_space<vmem>>, vector<16x32xf32>
    tpu.vector_store %arg32[%c1_112, %c0_113], %135 {strides = array<i32>} : memref<18x32xf32, #tpu.memory_space<vmem>>, vector<16x32xf32>,
    %cst_114 = arith.constant 0.000000e+00 : f32
    %137 = vector.broadcast %cst_114 : f32 to vector<16x32xf32>
    %c0_115 = arith.constant 0 : index
    %c0_116 = arith.constant 0 : index
    %138 = vector.load %arg32[%c0_115, %c0_116] : memref<18x32xf32, #tpu.memory_space<vmem>>, vector<16x32xf32>
    %c0_117 = arith.constant 0 : index
    %c0_118 = arith.constant 0 : index
    %c0_119 = arith.constant 0 : index
    %139 = vector.load %arg10[%c0_117, %c0_118, %c0_119] : memref<3x32x32xf32, #tpu.memory_space<vmem>>, vector<1x32x32xf32>
    %140 = vector.shape_cast %139 : vector<1x32x32xf32> to vector<32x32xf32>
    %cst_120 = arith.constant dense<0.000000e+00> : vector<16x32xf32>
    %141 = tpu.matmul %138, %140, %cst_120 {dimension_numbers = #tpu.dot_dimension_numbers<[1], [0], [0], [1], [0, 0, 1, 1], [], []>} : vector<16x32xf32>, vector<32x32xf32>, vector<16x32xf32> -> vector<16x32xf32>
    %142 = arith.addf %137, %141 : vector<16x32xf32>
    %c1_121 = arith.constant 1 : index
    %c0_122 = arith.constant 0 : index
    %143 = vector.load %arg32[%c1_121, %c0_122] : memref<18x32xf32, #tpu.memory_space<vmem>>, vector<16x32xf32>
    %c1_123 = arith.constant 1 : index
    %c0_124 = arith.constant 0 : index
    %c0_125 = arith.constant 0 : index
    %144 = vector.load %arg10[%c1_123, %c0_124, %c0_125] : memref<3x32x32xf32, #tpu.memory_space<vmem>>, vector<1x32x32xf32>
    %145 = vector.shape_cast %144 : vector<1x32x32xf32> to vector<32x32xf32>
    %cst_126 = arith.constant dense<0.000000e+00> : vector<16x32xf32>
    %146 = tpu.matmul %143, %145, %cst_126 {dimension_numbers = #tpu.dot_dimension_numbers<[1], [0], [0], [1], [0, 0, 1, 1], [], []>} : vector<16x32xf32>, vector<32x32xf32>, vector<16x32xf32> -> vector<16x32xf32>
    %147 = arith.addf %142, %146 : vector<16x32xf32>
    %c2_127 = arith.constant 2 : index
    %c0_128 = arith.constant 0 : index
    %148 = vector.load %arg32[%c2_127, %c0_128] : memref<18x32xf32, #tpu.memory_space<vmem>>, vector<16x32xf32>
    %c2_129 = arith.constant 2 : index
    %c0_130 = arith.constant 0 : index
    %c0_131 = arith.constant 0 : index
    %149 = vector.load %arg10[%c2_129, %c0_130, %c0_131] : memref<3x32x32xf32, #tpu.memory_space<vmem>>, vector<1x32x32xf32>
    %150 = vector.shape_cast %149 : vector<1x32x32xf32> to vector<32x32xf32>
    %cst_132 = arith.constant dense<0.000000e+00> : vector<16x32xf32>
    %151 = tpu.matmul %148, %150, %cst_132 {dimension_numbers = #tpu.dot_dimension_numbers<[1], [0], [0], [1], [0, 0, 1, 1], [], []>} : vector<16x32xf32>, vector<32x32xf32>, vector<16x32xf32> -> vector<16x32xf32>
    %152 = arith.addf %147, %151 : vector<16x32xf32>
    %c0_133 = arith.constant 0 : index
    %c0_134 = arith.constant 0 : index
    %153 = vector.load %arg11[%c0_133, %c0_134] : memref<1x32xf32, #tpu.memory_space<vmem>>, vector<1x32xf32>
    %154 = vector.broadcast %153 : vector<1x32xf32> to vector<16x32xf32>
    %155 = arith.addf %152, %154 : vector<16x32xf32>
    %c0_135 = arith.constant 0 : index
    %c0_136 = arith.constant 0 : index
    %156 = vector.load %arg12[%c0_135, %c0_136] : memref<1x32xf32, #tpu.memory_space<vmem>>, vector<1x32xf32>
    %c0_137 = arith.constant 0 : index
    %c0_138 = arith.constant 0 : index
    %157 = vector.load %arg13[%c0_137, %c0_138] : memref<1x32xf32, #tpu.memory_space<vmem>>, vector<1x32xf32>
    %c0_139 = arith.constant 0 : index
    %c0_140 = arith.constant 0 : index
    %158 = vector.load %arg14[%c0_139, %c0_140] : memref<32x16xf32, #tpu.memory_space<vmem>>, vector<32x16xf32>
    %c0_141 = arith.constant 0 : index
    %c0_142 = arith.constant 0 : index
    %159 = vector.load %arg15[%c0_141, %c0_142] : memref<16x32xf32, #tpu.memory_space<vmem>>, vector<16x32xf32>
    %cst_143 = arith.constant dense<0.000000e+00> : vector<32xf32>
    %160 = vector.multi_reduction <add>, %155, %cst_143 [0] : vector<16x32xf32> to vector<32xf32>
    %161 = vector.shape_cast %160 : vector<32xf32> to vector<1x32xf32>
    %cst_144 = arith.constant dense<0.000000e+00> : vector<1x16xf32>
    %162 = tpu.matmul %161, %158, %cst_144 {dimension_numbers = #tpu.dot_dimension_numbers<[1], [0], [0], [1], [0, 0, 1, 1], [], []>} : vector<1x32xf32>, vector<32x16xf32>, vector<1x16xf32> -> vector<1x16xf32>
    %cst_145 = arith.constant 3.125000e-02 : f32
    %163 = vector.broadcast %cst_145 : f32 to vector<1x16xf32>
    %164 = arith.mulf %162, %163 : vector<1x16xf32>
    %cst_146 = arith.constant dense<0.000000e+00> : vector<1x32xf32>
    %165 = tpu.matmul %164, %159, %cst_146 {dimension_numbers = #tpu.dot_dimension_numbers<[1], [0], [0], [1], [0, 0, 1, 1], [], []>} : vector<1x16xf32>, vector<16x32xf32>, vector<1x32xf32> -> vector<1x32xf32>
    %166 = vector.broadcast %165 : vector<1x32xf32> to vector<16x32xf32>
    %167 = arith.subf %155, %166 : vector<16x32xf32>
    %168 = arith.mulf %167, %167 : vector<16x32xf32>
    %cst_147 = arith.constant dense<0.000000e+00> : vector<32xf32>
    %169 = vector.multi_reduction <add>, %168, %cst_147 [0] : vector<16x32xf32> to vector<32xf32>
    %170 = vector.shape_cast %169 : vector<32xf32> to vector<1x32xf32>
    %cst_148 = arith.constant dense<0.000000e+00> : vector<1x16xf32>
    %171 = tpu.matmul %170, %158, %cst_148 {dimension_numbers = #tpu.dot_dimension_numbers<[1], [0], [0], [1], [0, 0, 1, 1], [], []>} : vector<1x32xf32>, vector<32x16xf32>, vector<1x16xf32> -> vector<1x16xf32>
    %cst_149 = arith.constant 3.125000e-02 : f32
    %172 = vector.broadcast %cst_149 : f32 to vector<1x16xf32>
    %173 = arith.mulf %171, %172 : vector<1x16xf32>
    %cst_150 = arith.constant 9.99999974E-6 : f32
    %174 = vector.broadcast %cst_150 : f32 to vector<1x16xf32>
    %175 = arith.addf %173, %174 : vector<1x16xf32>
    %176 = math.rsqrt %175 : vector<1x16xf32>
    %cst_151 = arith.constant dense<0.000000e+00> : vector<1x32xf32>
    %177 = tpu.matmul %176, %159, %cst_151 {dimension_numbers = #tpu.dot_dimension_numbers<[1], [0], [0], [1], [0, 0, 1, 1], [], []>} : vector<1x16xf32>, vector<16x32xf32>, vector<1x32xf32> -> vector<1x32xf32>
    %178 = vector.broadcast %177 : vector<1x32xf32> to vector<16x32xf32>
    %179 = arith.mulf %167, %178 : vector<16x32xf32>
    %180 = vector.broadcast %156 : vector<1x32xf32> to vector<16x32xf32>
    %181 = arith.mulf %179, %180 : vector<16x32xf32>
    %182 = vector.broadcast %157 : vector<1x32xf32> to vector<16x32xf32>
    %183 = arith.addf %181, %182 : vector<16x32xf32>
    %cst_152 = arith.constant 0.000000e+00 : f32
    %184 = vector.broadcast %cst_152 : f32 to vector<16x32xf32>
    %185 = arith.subf %184, %183 : vector<16x32xf32>
    %186 = math.exp %185 : vector<16x32xf32>
    %cst_153 = arith.constant 1.000000e+00 : f32
    %187 = vector.broadcast %cst_153 : f32 to vector<16x32xf32>
    %188 = arith.addf %187, %186 : vector<16x32xf32>
    %189 = tpu.reciprocal %188 {approx = true} : vector<16x32xf32> -> vector<16x32xf32>
    %190 = arith.mulf %183, %189 : vector<16x32xf32>
    %191 = arith.addf %190, %47 : vector<16x32xf32>
    %c0_154 = arith.constant 0 : index
    %c0_155 = arith.constant 0 : index
    %c0_156 = arith.constant 0 : index
    %192 = vector.load %arg31[%c0_154, %c0_155, %c0_156] : memref<1x16x32xf32, #tpu.memory_space<vmem>>, vector<1x16x32xf32>
    %193 = vector.shape_cast %192 : vector<1x16x32xf32> to vector<16x32xf32>
    %194 = vector.shape_cast %191 : vector<16x32xf32> to vector<1x16x32xf32>
    tpu.vector_store %arg31[%c0_154, %c0_155, %c0_156], %194 {strides = array<i32>} : memref<1x16x32xf32, #tpu.memory_space<vmem>>, vector<1x16x32xf32>,
    %c1_157 = arith.constant 1 : index
    %c0_158 = arith.constant 0 : index
    %195 = vector.load %arg32[%c1_157, %c0_158] : memref<18x32xf32, #tpu.memory_space<vmem>>, vector<16x32xf32>
    tpu.vector_store %arg32[%c1_157, %c0_158], %191 {strides = array<i32>} : memref<18x32xf32, #tpu.memory_space<vmem>>, vector<16x32xf32>,
    %cst_159 = arith.constant 0.000000e+00 : f32
    %196 = vector.broadcast %cst_159 : f32 to vector<8x64xf32>
    %c0_160 = arith.constant 0 : index
    %c0_161 = arith.constant 0 : index
    %197 = tpu.strided_load %arg32[%c0_160, %c0_161] {strides = array<i32: 2, 1>} : memref<18x32xf32, #tpu.memory_space<vmem>>, vector<8x32xf32>
    %c0_162 = arith.constant 0 : index
    %c0_163 = arith.constant 0 : index
    %c0_164 = arith.constant 0 : index
    %198 = vector.load %arg28[%c0_162, %c0_163, %c0_164] : memref<3x32x64xf32, #tpu.memory_space<vmem>>, vector<1x32x64xf32>
    %199 = vector.shape_cast %198 : vector<1x32x64xf32> to vector<32x64xf32>
    %cst_165 = arith.constant dense<0.000000e+00> : vector<8x64xf32>
    %200 = tpu.matmul %197, %199, %cst_165 {dimension_numbers = #tpu.dot_dimension_numbers<[1], [0], [0], [1], [0, 0, 1, 1], [], []>} : vector<8x32xf32>, vector<32x64xf32>, vector<8x64xf32> -> vector<8x64xf32>
    %201 = arith.addf %196, %200 : vector<8x64xf32>
    %c1_166 = arith.constant 1 : index
    %c0_167 = arith.constant 0 : index
    %202 = tpu.strided_load %arg32[%c1_166, %c0_167] {strides = array<i32: 2, 1>} : memref<18x32xf32, #tpu.memory_space<vmem>>, vector<8x32xf32>
    %c1_168 = arith.constant 1 : index
    %c0_169 = arith.constant 0 : index
    %c0_170 = arith.constant 0 : index
    %203 = vector.load %arg28[%c1_168, %c0_169, %c0_170] : memref<3x32x64xf32, #tpu.memory_space<vmem>>, vector<1x32x64xf32>
    %204 = vector.shape_cast %203 : vector<1x32x64xf32> to vector<32x64xf32>
    %cst_171 = arith.constant dense<0.000000e+00> : vector<8x64xf32>
    %205 = tpu.matmul %202, %204, %cst_171 {dimension_numbers = #tpu.dot_dimension_numbers<[1], [0], [0], [1], [0, 0, 1, 1], [], []>} : vector<8x32xf32>, vector<32x64xf32>, vector<8x64xf32> -> vector<8x64xf32>
    %206 = arith.addf %201, %205 : vector<8x64xf32>
    %c2_172 = arith.constant 2 : index
    %c0_173 = arith.constant 0 : index
    %207 = tpu.strided_load %arg32[%c2_172, %c0_173] {strides = array<i32: 2, 1>} : memref<18x32xf32, #tpu.memory_space<vmem>>, vector<8x32xf32>
    %c2_174 = arith.constant 2 : index
    %c0_175 = arith.constant 0 : index
    %c0_176 = arith.constant 0 : index
    %208 = vector.load %arg28[%c2_174, %c0_175, %c0_176] : memref<3x32x64xf32, #tpu.memory_space<vmem>>, vector<1x32x64xf32>
    %209 = vector.shape_cast %208 : vector<1x32x64xf32> to vector<32x64xf32>
    %cst_177 = arith.constant dense<0.000000e+00> : vector<8x64xf32>
    %210 = tpu.matmul %207, %209, %cst_177 {dimension_numbers = #tpu.dot_dimension_numbers<[1], [0], [0], [1], [0, 0, 1, 1], [], []>} : vector<8x32xf32>, vector<32x64xf32>, vector<8x64xf32> -> vector<8x64xf32>
    %211 = arith.addf %206, %210 : vector<8x64xf32>
    %c0_178 = arith.constant 0 : index
    %c0_179 = arith.constant 0 : index
    %212 = vector.load %arg29[%c0_178, %c0_179] : memref<1x64xf32, #tpu.memory_space<vmem>>, vector<1x64xf32>
    %213 = vector.broadcast %212 : vector<1x64xf32> to vector<8x64xf32>
    %214 = arith.addf %211, %213 : vector<8x64xf32>
    %c0_180 = arith.constant 0 : index
    %c0_181 = arith.constant 0 : index
    %c0_182 = arith.constant 0 : index
    %215 = vector.load %arg30[%c0_180, %c0_181, %c0_182] : memref<1x8x64xf32, #tpu.memory_space<vmem>>, vector<1x8x64xf32>
    %216 = vector.shape_cast %215 : vector<1x8x64xf32> to vector<8x64xf32>
    %217 = vector.shape_cast %214 : vector<8x64xf32> to vector<1x8x64xf32>
    tpu.vector_store %arg30[%c0_180, %c0_181, %c0_182], %217 {strides = array<i32>} : memref<1x8x64xf32, #tpu.memory_space<vmem>>, vector<1x8x64xf32>,
    return
  }
  func.func @transform_0(%arg0: i32) -> (i32, i32, i32) {
    %c0_i32 = arith.constant 0 : i32
    %c0_i32_0 = arith.constant 0 : i32
    %c0_i32_1 = arith.constant 0 : i32
    return %arg0, %c0_i32, %c0_i32_0 : i32, i32, i32
  }
  func.func @transform_1(%arg0: i32) -> (i32, i32, i32) {
    %c0_i32 = arith.constant 0 : i32
    %c0_i32_0 = arith.constant 0 : i32
    %c0_i32_1 = arith.constant 0 : i32
    return %arg0, %c0_i32, %c0_i32_0 : i32, i32, i32
  }
  func.func @transform_2(%arg0: i32) -> (i32, i32, i32) {
    %c0_i32 = arith.constant 0 : i32
    %c0_i32_0 = arith.constant 0 : i32
    %c0_i32_1 = arith.constant 0 : i32
    return %arg0, %c0_i32, %c0_i32_0 : i32, i32, i32
  }
  func.func @transform_3(%arg0: i32) -> (i32, i32, i32) {
    %c0_i32 = arith.constant 0 : i32
    %c0_i32_0 = arith.constant 0 : i32
    %c0_i32_1 = arith.constant 0 : i32
    return %arg0, %c0_i32, %c0_i32_0 : i32, i32, i32
  }
  func.func @transform_4(%arg0: i32) -> (i32, i32, i32) {
    %c0_i32 = arith.constant 0 : i32
    %c0_i32_0 = arith.constant 0 : i32
    %c0_i32_1 = arith.constant 0 : i32
    %c0_i32_2 = arith.constant 0 : i32
    return %c0_i32, %c0_i32_0, %c0_i32_1 : i32, i32, i32
  }
  func.func @transform_5(%arg0: i32) -> (i32, i32, i32) {
    %c0_i32 = arith.constant 0 : i32
    %c0_i32_0 = arith.constant 0 : i32
    %c0_i32_1 = arith.constant 0 : i32
    %c0_i32_2 = arith.constant 0 : i32
    return %c0_i32, %c0_i32_0, %c0_i32_1 : i32, i32, i32
  }
  func.func @transform_6(%arg0: i32) -> (i32, i32) {
    %c0_i32 = arith.constant 0 : i32
    %c0_i32_0 = arith.constant 0 : i32
    %c0_i32_1 = arith.constant 0 : i32
    return %c0_i32, %c0_i32_0 : i32, i32
  }
  func.func @transform_7(%arg0: i32) -> (i32, i32) {
    %c0_i32 = arith.constant 0 : i32
    %c0_i32_0 = arith.constant 0 : i32
    %c0_i32_1 = arith.constant 0 : i32
    return %c0_i32, %c0_i32_0 : i32, i32
  }
  func.func @transform_8(%arg0: i32) -> (i32, i32) {
    %c0_i32 = arith.constant 0 : i32
    %c0_i32_0 = arith.constant 0 : i32
    %c0_i32_1 = arith.constant 0 : i32
    return %c0_i32, %c0_i32_0 : i32, i32
  }
  func.func @transform_9(%arg0: i32) -> (i32, i32, i32) {
    %c0_i32 = arith.constant 0 : i32
    %c0_i32_0 = arith.constant 0 : i32
    %c0_i32_1 = arith.constant 0 : i32
    %c0_i32_2 = arith.constant 0 : i32
    return %c0_i32, %c0_i32_0, %c0_i32_1 : i32, i32, i32
  }
  func.func @transform_10(%arg0: i32) -> (i32, i32) {
    %c0_i32 = arith.constant 0 : i32
    %c0_i32_0 = arith.constant 0 : i32
    %c0_i32_1 = arith.constant 0 : i32
    return %c0_i32, %c0_i32_0 : i32, i32
  }
  func.func @transform_11(%arg0: i32) -> (i32, i32) {
    %c0_i32 = arith.constant 0 : i32
    %c0_i32_0 = arith.constant 0 : i32
    %c0_i32_1 = arith.constant 0 : i32
    return %c0_i32, %c0_i32_0 : i32, i32
  }
  func.func @transform_12(%arg0: i32) -> (i32, i32) {
    %c0_i32 = arith.constant 0 : i32
    %c0_i32_0 = arith.constant 0 : i32
    %c0_i32_1 = arith.constant 0 : i32
    return %c0_i32, %c0_i32_0 : i32, i32
  }
  func.func @transform_13(%arg0: i32) -> (i32, i32) {
    %c0_i32 = arith.constant 0 : i32
    %c0_i32_0 = arith.constant 0 : i32
    %c0_i32_1 = arith.constant 0 : i32
    return %c0_i32, %c0_i32_0 : i32, i32
  }
  func.func @transform_14(%arg0: i32) -> (i32, i32) {
    %c0_i32 = arith.constant 0 : i32
    %c0_i32_0 = arith.constant 0 : i32
    %c0_i32_1 = arith.constant 0 : i32
    return %c0_i32, %c0_i32_0 : i32, i32
  }
  func.func @transform_15(%arg0: i32) -> (i32, i32) {
    %c0_i32 = arith.constant 0 : i32
    %c0_i32_0 = arith.constant 0 : i32
    %c0_i32_1 = arith.constant 0 : i32
    return %c0_i32, %c0_i32_0 : i32, i32
  }
  func.func @transform_16(%arg0: i32) -> (i32, i32) {
    %c0_i32 = arith.constant 0 : i32
    %c0_i32_0 = arith.constant 0 : i32
    %c0_i32_1 = arith.constant 0 : i32
    return %c0_i32, %c0_i32_0 : i32, i32
  }
  func.func @transform_17(%arg0: i32) -> (i32, i32) {
    %c0_i32 = arith.constant 0 : i32
    %c0_i32_0 = arith.constant 0 : i32
    %c0_i32_1 = arith.constant 0 : i32
    return %c0_i32, %c0_i32_0 : i32, i32
  }
  func.func @transform_18(%arg0: i32) -> (i32, i32) {
    %c0_i32 = arith.constant 0 : i32
    %c0_i32_0 = arith.constant 0 : i32
    %c0_i32_1 = arith.constant 0 : i32
    return %c0_i32, %c0_i32_0 : i32, i32
  }
  func.func @transform_19(%arg0: i32) -> (i32, i32) {
    %c0_i32 = arith.constant 0 : i32
    %c0_i32_0 = arith.constant 0 : i32
    %c0_i32_1 = arith.constant 0 : i32
    return %c0_i32, %c0_i32_0 : i32, i32
  }
  func.func @transform_20(%arg0: i32) -> (i32, i32) {
    %c0_i32 = arith.constant 0 : i32
    %c0_i32_0 = arith.constant 0 : i32
    %c0_i32_1 = arith.constant 0 : i32
    return %c0_i32, %c0_i32_0 : i32, i32
  }
  func.func @transform_21(%arg0: i32) -> (i32, i32) {
    %c0_i32 = arith.constant 0 : i32
    %c0_i32_0 = arith.constant 0 : i32
    %c0_i32_1 = arith.constant 0 : i32
    return %c0_i32, %c0_i32_0 : i32, i32
  }
  func.func @transform_22(%arg0: i32) -> (i32, i32) {
    %c0_i32 = arith.constant 0 : i32
    %c0_i32_0 = arith.constant 0 : i32
    %c0_i32_1 = arith.constant 0 : i32
    return %c0_i32, %c0_i32_0 : i32, i32
  }
  func.func @transform_23(%arg0: i32) -> (i32, i32) {
    %c0_i32 = arith.constant 0 : i32
    %c0_i32_0 = arith.constant 0 : i32
    %c0_i32_1 = arith.constant 0 : i32
    return %c0_i32, %c0_i32_0 : i32, i32
  }
  func.func @transform_24(%arg0: i32) -> (i32, i32) {
    %c0_i32 = arith.constant 0 : i32
    %c0_i32_0 = arith.constant 0 : i32
    %c0_i32_1 = arith.constant 0 : i32
    return %c0_i32, %c0_i32_0 : i32, i32
  }
  func.func @transform_25(%arg0: i32) -> (i32, i32) {
    %c0_i32 = arith.constant 0 : i32
    %c0_i32_0 = arith.constant 0 : i32
    %c0_i32_1 = arith.constant 0 : i32
    return %c0_i32, %c0_i32_0 : i32, i32
  }
  func.func @transform_26(%arg0: i32) -> (i32, i32) {
    %c0_i32 = arith.constant 0 : i32
    %c0_i32_0 = arith.constant 0 : i32
    %c0_i32_1 = arith.constant 0 : i32
    return %c0_i32, %c0_i32_0 : i32, i32
  }
  func.func @transform_27(%arg0: i32) -> (i32, i32, i32) {
    %c0_i32 = arith.constant 0 : i32
    %c0_i32_0 = arith.constant 0 : i32
    %c0_i32_1 = arith.constant 0 : i32
    %c0_i32_2 = arith.constant 0 : i32
    return %c0_i32, %c0_i32_0, %c0_i32_1 : i32, i32, i32
  }
  func.func @transform_28(%arg0: i32) -> (i32, i32) {
    %c0_i32 = arith.constant 0 : i32
    %c0_i32_0 = arith.constant 0 : i32
    %c0_i32_1 = arith.constant 0 : i32
    return %c0_i32, %c0_i32_0 : i32, i32
  }
  func.func @transform_29(%arg0: i32) -> (i32, i32, i32) {
    %c0_i32 = arith.constant 0 : i32
    %c0_i32_0 = arith.constant 0 : i32
    %c0_i32_1 = arith.constant 0 : i32
    return %arg0, %c0_i32, %c0_i32_0 : i32, i32, i32
  }
  func.func @transform_30(%arg0: i32) -> (i32, i32, i32) {
    %c0_i32 = arith.constant 0 : i32
    %c0_i32_0 = arith.constant 0 : i32
    %c0_i32_1 = arith.constant 0 : i32
    return %arg0, %c0_i32, %c0_i32_0 : i32, i32, i32
  }
}

</mosaic_0001>

<llo_original>
// kernel: tpu_custom_call.1
$region0: #{tpu_custom_call.1}
  #allocation0 [shape = 'u32[]', space=smem, size = 0x4, offset = 0x4, fixed_abs, tag = 'smem constant byte address 0x4 - core index']
  #allocation1 [shape = 'u32[144,128]{1,0:T(1,128)}', space=vmem, size = 0x12000, scoped, tag = 'internal scratch']
  #allocation2 [shape = 'f32[18,32]{1,0:T(8,128)}', space=vmem, size = 0x3000, scoped, tag = 'scratch operand']
  #allocation3 [shape = 'f32[18,8]{1,0:T(8,128)}', space=vmem, size = 0x3000, scoped, tag = 'scratch operand']
  %s0 = inlined_call_operand.smem [shape: u32[31], index: -1, kind: input, shape index: {}]
  %s1 = sld [smem:[%s0]]
  %s2 = scalar_lea.smem %s0, 1
  %s3 = sld [smem:[%s2]]
  %s4 = scalar_lea.smem %s0, 2
  %s5 = sld [smem:[%s4]]
  %s6 = scalar_lea.smem %s0, 3
  %s7 = sld [smem:[%s6]]
  %s8 = scalar_lea.smem %s0, 4
  %s9 = sld [smem:[%s8]]
  %s10 = scalar_lea.smem %s0, 5
  %s11 = sld [smem:[%s10]]
  %s12 = scalar_lea.smem %s0, 6
  %s13 = sld [smem:[%s12]]
  %s14 = scalar_lea.smem %s0, 7
  %s15 = sld [smem:[%s14]]
  %s16 = scalar_lea.smem %s0, 8
  %s17 = sld [smem:[%s16]]
  %s18 = scalar_lea.smem %s0, 9
  %s19 = sld [smem:[%s18]]
  %s20 = scalar_lea.smem %s0, 10
  %s21 = sld [smem:[%s20]]
  %s22 = scalar_lea.smem %s0, 11
  %s23 = sld [smem:[%s22]]
  %s24 = scalar_lea.smem %s0, 12
  %s25 = sld [smem:[%s24]]
  %s26 = scalar_lea.smem %s0, 13
  %s27 = sld [smem:[%s26]]
  %s28 = scalar_lea.smem %s0, 14
  %s29 = sld [smem:[%s28]]
  %s30 = scalar_lea.smem %s0, 15
  %s31 = sld [smem:[%s30]]
  %s32 = scalar_lea.smem %s0, 16
  %s33 = sld [smem:[%s32]]
  %s34 = scalar_lea.smem %s0, 17
  %s35 = sld [smem:[%s34]]
  %s36 = scalar_lea.smem %s0, 18
  %s37 = sld [smem:[%s36]]
  %s38 = scalar_lea.smem %s0, 19
  %s39 = sld [smem:[%s38]]
  %s40 = scalar_lea.smem %s0, 20
  %s41 = sld [smem:[%s40]]
  %s42 = scalar_lea.smem %s0, 21
  %s43 = sld [smem:[%s42]]
  %s44 = scalar_lea.smem %s0, 22
  %s45 = sld [smem:[%s44]]
  %s46 = scalar_lea.smem %s0, 23
  %s47 = sld [smem:[%s46]]
  %s48 = scalar_lea.smem %s0, 24
  %s49 = sld [smem:[%s48]]
  %s50 = scalar_lea.smem %s0, 25
  %s51 = sld [smem:[%s50]]
  %s52 = scalar_lea.smem %s0, 26
  %s53 = sld [smem:[%s52]]
  %s54 = scalar_lea.smem %s0, 27
  %s55 = sld [smem:[%s54]]
  %s56 = scalar_lea.smem %s0, 28
  %s57 = sld [smem:[%s56]]
  %s58 = scalar_lea.smem %s0, 29
  %s59 = sld [smem:[%s58]]
  %s60 = scalar_lea.smem %s0, 30
  %s61 = sld [smem:[%s60]]
  %62 = xla_tuple %s59, %s61
  %s63 = sld [smem:[#allocation0]]
  $region157: #{tpu_custom_call.1} parent=0
    _
  %s65 = ssub.s32 1, %s63
  %s66 = scalar_select 0, %s65, %s63
  $region1: #{tpu_custom_call.1} parent=0
    #allocation4 [shape = 'u8[8192]{0}', space=vmem, size = 0x2000, scoped, tag = 'output window, operand 0']
    #allocation5 [shape = 's32[2]{0}', space=sflag, size = 0x8, scoped, tag = 'scoped memory for tpu_custom_call.1']
    #allocation6 [shape = 'u8[16384]{0}', space=vmem, size = 0x4000, scoped, tag = 'output window, operand 1']
    #allocation7 [shape = 's32[2]{0}', space=sflag, size = 0x8, scoped, tag = 'scoped memory for tpu_custom_call.1']
    %67 = vsyncpa [#allocation5], 0
    %s68 = scalar_lea.sflag [#allocation5], 1
    %69 = vsyncpa %s68, 0
    %70 = vsyncpa [#allocation7], 0
    %s71 = scalar_lea.sflag [#allocation7], 1
    %72 = vsyncpa %s71, 0
    loop: start=0, step=1, limit=4
    $region2: #{tpu_custom_call.1} parent=1 // loop_pre_header
      _
    $region3: #{tpu_custom_call.1} parent=1 // loop_header
      %s74 = sphi 0, %s78
      %p75 = scmp.ge.s32.totalorder %s74, 4
      %s84 = sphi 0, %s86
      %s87 = sphi 0, %s84
      %s88 = sphi 0, %s87
      %s104 = sphi 0, %s88
      %s110 = sphi 0, %s112
      %s113 = sphi 0, %s110
      %s114 = sphi 0, %s113
      %s130 = sphi 0, %s114
      %s136 = sphi 0, %s138
      %s139 = sphi 0, %s136
      %s140 = sphi 0, %s139
      %s156 = sphi 0, %s140
      %s162 = sphi 0, %s164
      %s165 = sphi 0, %s162
      %s166 = sphi 0, %s165
      %s182 = sphi 0, %s166
      %s186 = sphi 0, %s186
      %s188 = sphi 0, %s186
      %s189 = sphi 0, %s188
      %s203 = sphi 0, %s189
      %s207 = sphi 0, %s207
      %s209 = sphi 0, %s207
      %s210 = sphi 0, %s209
      %s224 = sphi 0, %s210
      %s228 = sphi 0, %s228
      %s230 = sphi 0, %s228
      %s231 = sphi 0, %s230
      %s245 = sphi 0, %s231
      %s249 = sphi 0, %s249
      %s251 = sphi 0, %s249
      %s252 = sphi 0, %s251
      %s266 = sphi 0, %s252
      %s270 = sphi 0, %s270
      %s272 = sphi 0, %s270
      %s273 = sphi 0, %s272
      %s287 = sphi 0, %s273
      %s291 = sphi 0, %s291
      %s293 = sphi 0, %s291
      %s294 = sphi 0, %s293
      %s308 = sphi 0, %s294
      %s312 = sphi 0, %s312
      %s314 = sphi 0, %s312
      %s315 = sphi 0, %s314
      %s329 = sphi 0, %s315
      %s333 = sphi 0, %s333
      %s335 = sphi 0, %s333
      %s336 = sphi 0, %s335
      %s350 = sphi 0, %s336
      %s354 = sphi 0, %s354
      %s356 = sphi 0, %s354
      %s357 = sphi 0, %s356
      %s371 = sphi 0, %s357
      %s375 = sphi 0, %s375
      %s377 = sphi 0, %s375
      %s378 = sphi 0, %s377
      %s392 = sphi 0, %s378
      %s396 = sphi 0, %s396
      %s398 = sphi 0, %s396
      %s399 = sphi 0, %s398
      %s413 = sphi 0, %s399
      %s417 = sphi 0, %s417
      %s419 = sphi 0, %s417
      %s420 = sphi 0, %s419
      %s434 = sphi 0, %s420
      %s438 = sphi 0, %s438
      %s440 = sphi 0, %s438
      %s441 = sphi 0, %s440
      %s455 = sphi 0, %s441
      %s459 = sphi 0, %s459
      %s461 = sphi 0, %s459
      %s462 = sphi 0, %s461
      %s476 = sphi 0, %s462
      %s480 = sphi 0, %s480
      %s482 = sphi 0, %s480
      %s483 = sphi 0, %s482
      %s497 = sphi 0, %s483
      %s501 = sphi 0, %s501
      %s503 = sphi 0, %s501
      %s504 = sphi 0, %s503
      %s518 = sphi 0, %s504
      %s522 = sphi 0, %s522
      %s524 = sphi 0, %s522
      %s525 = sphi 0, %s524
      %s539 = sphi 0, %s525
      %s543 = sphi 0, %s543
      %s545 = sphi 0, %s543
      %s546 = sphi 0, %s545
      %s560 = sphi 0, %s546
      %s564 = sphi 0, %s564
      %s566 = sphi 0, %s564
      %s567 = sphi 0, %s566
      %s581 = sphi 0, %s567
      %s585 = sphi 0, %s585
      %s587 = sphi 0, %s585
      %s588 = sphi 0, %s587
      %s602 = sphi 0, %s588
      %s606 = sphi 0, %s606
      %s608 = sphi 0, %s606
      %s609 = sphi 0, %s608
      %s623 = sphi 0, %s609
      %s627 = sphi 0, %s627
      %s629 = sphi 0, %s627
      %s630 = sphi 0, %s629
      %s644 = sphi 0, %s630
      %s648 = sphi 0, %s648
      %s650 = sphi 0, %s648
      %s651 = sphi 0, %s650
      %s665 = sphi 0, %s651
      %s669 = sphi 0, %s669
      %s671 = sphi 0, %s669
      %s672 = sphi 0, %s671
      %s686 = sphi 0, %s672
      %s690 = sphi 0, %s690
      %s692 = sphi 0, %s690
      %s693 = sphi 0, %s692
      %s707 = sphi 0, %s693
      %s713 = sphi 0, %s715
      %s716 = sphi 0, %s713
      %s717 = sphi 0, %s716
      %s733 = sphi 0, %s717
      %s739 = sphi 0, %s741
      %s742 = sphi 0, %s739
      %s743 = sphi 0, %s742
      %s759 = sphi 0, %s743
    $region4: #{tpu_custom_call.1} parent=1 // loop_header_branch
      %77 = sbr.rel (%p75) target = $region8
    $region5: #{tpu_custom_call.1} parent=1 // loop_body
      %s79 = ssub.s32 %s74, 1
      %s80 = ssub.s32 %s74, 2
      %s81 = sadd.s32 %s74, 1
      %s82 = ssub.s32 %s74, %s81
      %p83 = scmp.eq.s32.totalorder %s82, 0
      %s85 = sadd.s32 %s84, 1
      %s86 = scalar_select %p83, %s84, %s85
      %p89 = pneg %p83
      %p90 = scmp.eq.s32.totalorder %s74, 1
      %p91 = por %p89, %p90
      %p92 = scmp.ne.s32.totalorder %s84, %s87
      %p93 = scmp.eq.s32.totalorder %s74, 0
      %p94 = por %p92, %p93
      %p95 = scmp.ne.s32.totalorder %s84, %s87
      %p96 = scmp.eq.s32.totalorder %s79, 1
      %p97 = por %p95, %p96
      %p98 = scmp.ne.s32.totalorder %s87, %s88
      %p99 = scmp.eq.s32.totalorder %s79, 0
      %p100 = por %p98, %p99
      %p101 = scmp.ne.s32.totalorder %s87, %s88
      %p102 = scmp.eq.s32.totalorder %s80, 1
      %p103 = por %p101, %p102
      %p105 = scmp.ne.s32.totalorder %s88, %s104
      %p106 = scmp.eq.s32.totalorder %s80, 0
      %p107 = por %p105, %p106
      %s108 = ssub.s32 %s74, %s81
      %p109 = scmp.eq.s32.totalorder %s108, 0
      %s111 = sadd.s32 %s110, 1
      %s112 = scalar_select %p109, %s110, %s111
      %p115 = pneg %p109
      %p116 = scmp.eq.s32.totalorder %s74, 1
      %p117 = por %p115, %p116
      %p118 = scmp.ne.s32.totalorder %s110, %s113
      %p119 = scmp.eq.s32.totalorder %s74, 0
      %p120 = por %p118, %p119
      %p121 = scmp.ne.s32.totalorder %s110, %s113
      %p122 = scmp.eq.s32.totalorder %s79, 1
      %p123 = por %p121, %p122
      %p124 = scmp.ne.s32.totalorder %s113, %s114
      %p125 = scmp.eq.s32.totalorder %s79, 0
      %p126 = por %p124, %p125
      %p127 = scmp.ne.s32.totalorder %s113, %s114
      %p128 = scmp.eq.s32.totalorder %s80, 1
      %p129 = por %p127, %p128
      %p131 = scmp.ne.s32.totalorder %s114, %s130
      %p132 = scmp.eq.s32.totalorder %s80, 0
      %p133 = por %p131, %p132
      %s134 = ssub.s32 %s74, %s81
      %p135 = scmp.eq.s32.totalorder %s134, 0
      %s137 = sadd.s32 %s136, 1
      %s138 = scalar_select %p135, %s136, %s137
      %p141 = pneg %p135
      %p142 = scmp.eq.s32.totalorder %s74, 1
      %p143 = por %p141, %p142
      %p144 = scmp.ne.s32.totalorder %s136, %s139
      %p145 = scmp.eq.s32.totalorder %s74, 0
      %p146 = por %p144, %p145
      %p147 = scmp.ne.s32.totalorder %s136, %s139
      %p148 = scmp.eq.s32.totalorder %s79, 1
      %p149 = por %p147, %p148
      %p150 = scmp.ne.s32.totalorder %s139, %s140
      %p151 = scmp.eq.s32.totalorder %s79, 0
      %p152 = por %p150, %p151
      %p153 = scmp.ne.s32.totalorder %s139, %s140
      %p154 = scmp.eq.s32.totalorder %s80, 1
      %p155 = por %p153, %p154
      %p157 = scmp.ne.s32.totalorder %s140, %s156
      %p158 = scmp.eq.s32.totalorder %s80, 0
      %p159 = por %p157, %p158
      %s160 = ssub.s32 %s74, %s81
      %p161 = scmp.eq.s32.totalorder %s160, 0
      %s163 = sadd.s32 %s162, 1
      %s164 = scalar_select %p161, %s162, %s163
      %p167 = pneg %p161
      %p168 = scmp.eq.s32.totalorder %s74, 1
      %p169 = por %p167, %p168
      %p170 = scmp.ne.s32.totalorder %s162, %s165
      %p171 = scmp.eq.s32.totalorder %s74, 0
      %p172 = por %p170, %p171
      %p173 = scmp.ne.s32.totalorder %s162, %s165
      %p174 = scmp.eq.s32.totalorder %s79, 1
      %p175 = por %p173, %p174
      %p176 = scmp.ne.s32.totalorder %s165, %s166
      %p177 = scmp.eq.s32.totalorder %s79, 0
      %p178 = por %p176, %p177
      %p179 = scmp.ne.s32.totalorder %s165, %s166
      %p180 = scmp.eq.s32.totalorder %s80, 1
      %p181 = por %p179, %p180
      %p183 = scmp.ne.s32.totalorder %s166, %s182
      %p184 = scmp.eq.s32.totalorder %s80, 0
      %p185 = por %p183, %p184
      %s187 = sadd.s32 %s186, 1
      %p190 = scmp.eq.s32.totalorder %s74, 1
      %p191 = scmp.ne.s32.totalorder %s186, %s188
      %p192 = scmp.eq.s32.totalorder %s74, 0
      %p193 = por %p191, %p192
      %p194 = scmp.ne.s32.totalorder %s186, %s188
      %p195 = scmp.eq.s32.totalorder %s79, 1
      %p196 = por %p194, %p195
      %p197 = scmp.ne.s32.totalorder %s188, %s189
      %p198 = scmp.eq.s32.totalorder %s79, 0
      %p199 = por %p197, %p198
      %p200 = scmp.ne.s32.totalorder %s188, %s189
      %p201 = scmp.eq.s32.totalorder %s80, 1
      %p202 = por %p200, %p201
      %p204 = scmp.ne.s32.totalorder %s189, %s203
      %p205 = scmp.eq.s32.totalorder %s80, 0
      %p206 = por %p204, %p205
      %s208 = sadd.s32 %s207, 1
      %p211 = scmp.eq.s32.totalorder %s74, 1
      %p212 = scmp.ne.s32.totalorder %s207, %s209
      %p213 = scmp.eq.s32.totalorder %s74, 0
      %p214 = por %p212, %p213
      %p215 = scmp.ne.s32.totalorder %s207, %s209
      %p216 = scmp.eq.s32.totalorder %s79, 1
      %p217 = por %p215, %p216
      %p218 = scmp.ne.s32.totalorder %s209, %s210
      %p219 = scmp.eq.s32.totalorder %s79, 0
      %p220 = por %p218, %p219
      %p221 = scmp.ne.s32.totalorder %s209, %s210
      %p222 = scmp.eq.s32.totalorder %s80, 1
      %p223 = por %p221, %p222
      %p225 = scmp.ne.s32.totalorder %s210, %s224
      %p226 = scmp.eq.s32.totalorder %s80, 0
      %p227 = por %p225, %p226
      %s229 = sadd.s32 %s228, 1
      %p232 = scmp.eq.s32.totalorder %s74, 1
      %p233 = scmp.ne.s32.totalorder %s228, %s230
      %p234 = scmp.eq.s32.totalorder %s74, 0
      %p235 = por %p233, %p234
      %p236 = scmp.ne.s32.totalorder %s228, %s230
      %p237 = scmp.eq.s32.totalorder %s79, 1
      %p238 = por %p236, %p237
      %p239 = scmp.ne.s32.totalorder %s230, %s231
      %p240 = scmp.eq.s32.totalorder %s79, 0
      %p241 = por %p239, %p240
      %p242 = scmp.ne.s32.totalorder %s230, %s231
      %p243 = scmp.eq.s32.totalorder %s80, 1
      %p244 = por %p242, %p243
      %p246 = scmp.ne.s32.totalorder %s231, %s245
      %p247 = scmp.eq.s32.totalorder %s80, 0
      %p248 = por %p246, %p247
      %s250 = sadd.s32 %s249, 1
      %p253 = scmp.eq.s32.totalorder %s74, 1
      %p254 = scmp.ne.s32.totalorder %s249, %s251
      %p255 = scmp.eq.s32.totalorder %s74, 0
      %p256 = por %p254, %p255
      %p257 = scmp.ne.s32.totalorder %s249, %s251
      %p258 = scmp.eq.s32.totalorder %s79, 1
      %p259 = por %p257, %p258
      %p260 = scmp.ne.s32.totalorder %s251, %s252
      %p261 = scmp.eq.s32.totalorder %s79, 0
      %p262 = por %p260, %p261
      %p263 = scmp.ne.s32.totalorder %s251, %s252
      %p264 = scmp.eq.s32.totalorder %s80, 1
      %p265 = por %p263, %p264
      %p267 = scmp.ne.s32.totalorder %s252, %s266
      %p268 = scmp.eq.s32.totalorder %s80, 0
      %p269 = por %p267, %p268
      %s271 = sadd.s32 %s270, 1
      %p274 = scmp.eq.s32.totalorder %s74, 1
      %p275 = scmp.ne.s32.totalorder %s270, %s272
      %p276 = scmp.eq.s32.totalorder %s74, 0
      %p277 = por %p275, %p276
      %p278 = scmp.ne.s32.totalorder %s270, %s272
      %p279 = scmp.eq.s32.totalorder %s79, 1
      %p280 = por %p278, %p279
      %p281 = scmp.ne.s32.totalorder %s272, %s273
      %p282 = scmp.eq.s32.totalorder %s79, 0
      %p283 = por %p281, %p282
      %p284 = scmp.ne.s32.totalorder %s272, %s273
      %p285 = scmp.eq.s32.totalorder %s80, 1
      %p286 = por %p284, %p285
      %p288 = scmp.ne.s32.totalorder %s273, %s287
      %p289 = scmp.eq.s32.totalorder %s80, 0
      %p290 = por %p288, %p289
      %s292 = sadd.s32 %s291, 1
      %p295 = scmp.eq.s32.totalorder %s74, 1
      %p296 = scmp.ne.s32.totalorder %s291, %s293
      %p297 = scmp.eq.s32.totalorder %s74, 0
      %p298 = por %p296, %p297
      %p299 = scmp.ne.s32.totalorder %s291, %s293
      %p300 = scmp.eq.s32.totalorder %s79, 1
      %p301 = por %p299, %p300
      %p302 = scmp.ne.s32.totalorder %s293, %s294
      %p303 = scmp.eq.s32.totalorder %s79, 0
      %p304 = por %p302, %p303
      %p305 = scmp.ne.s32.totalorder %s293, %s294
      %p306 = scmp.eq.s32.totalorder %s80, 1
      %p307 = por %p305, %p306
      %p309 = scmp.ne.s32.totalorder %s294, %s308
      %p310 = scmp.eq.s32.totalorder %s80, 0
      %p311 = por %p309, %p310
      %s313 = sadd.s32 %s312, 1
      %p316 = scmp.eq.s32.totalorder %s74, 1
      %p317 = scmp.ne.s32.totalorder %s312, %s314
      %p318 = scmp.eq.s32.totalorder %s74, 0
      %p319 = por %p317, %p318
      %p320 = scmp.ne.s32.totalorder %s312, %s314
      %p321 = scmp.eq.s32.totalorder %s79, 1
      %p322 = por %p320, %p321
      %p323 = scmp.ne.s32.totalorder %s314, %s315
      %p324 = scmp.eq.s32.totalorder %s79, 0
      %p325 = por %p323, %p324
      %p326 = scmp.ne.s32.totalorder %s314, %s315
      %p327 = scmp.eq.s32.totalorder %s80, 1
      %p328 = por %p326, %p327
      %p330 = scmp.ne.s32.totalorder %s315, %s329
      %p331 = scmp.eq.s32.totalorder %s80, 0
      %p332 = por %p330, %p331
      %s334 = sadd.s32 %s333, 1
      %p337 = scmp.eq.s32.totalorder %s74, 1
      %p338 = scmp.ne.s32.totalorder %s333, %s335
      %p339 = scmp.eq.s32.totalorder %s74, 0
      %p340 = por %p338, %p339
      %p341 = scmp.ne.s32.totalorder %s333, %s335
      %p342 = scmp.eq.s32.totalorder %s79, 1
      %p343 = por %p341, %p342
      %p344 = scmp.ne.s32.totalorder %s335, %s336
      %p345 = scmp.eq.s32.totalorder %s79, 0
      %p346 = por %p344, %p345
      %p347 = scmp.ne.s32.totalorder %s335, %s336
      %p348 = scmp.eq.s32.totalorder %s80, 1
      %p349 = por %p347, %p348
      %p351 = scmp.ne.s32.totalorder %s336, %s350
      %p352 = scmp.eq.s32.totalorder %s80, 0
      %p353 = por %p351, %p352
      %s355 = sadd.s32 %s354, 1
      %p358 = scmp.eq.s32.totalorder %s74, 1
      %p359 = scmp.ne.s32.totalorder %s354, %s356
      %p360 = scmp.eq.s32.totalorder %s74, 0
      %p361 = por %p359, %p360
      %p362 = scmp.ne.s32.totalorder %s354, %s356
      %p363 = scmp.eq.s32.totalorder %s79, 1
      %p364 = por %p362, %p363
      %p365 = scmp.ne.s32.totalorder %s356, %s357
      %p366 = scmp.eq.s32.totalorder %s79, 0
      %p367 = por %p365, %p366
      %p368 = scmp.ne.s32.totalorder %s356, %s357
      %p369 = scmp.eq.s32.totalorder %s80, 1
      %p370 = por %p368, %p369
      %p372 = scmp.ne.s32.totalorder %s357, %s371
      %p373 = scmp.eq.s32.totalorder %s80, 0
      %p374 = por %p372, %p373
      %s376 = sadd.s32 %s375, 1
      %p379 = scmp.eq.s32.totalorder %s74, 1
      %p380 = scmp.ne.s32.totalorder %s375, %s377
      %p381 = scmp.eq.s32.totalorder %s74, 0
      %p382 = por %p380, %p381
      %p383 = scmp.ne.s32.totalorder %s375, %s377
      %p384 = scmp.eq.s32.totalorder %s79, 1
      %p385 = por %p383, %p384
      %p386 = scmp.ne.s32.totalorder %s377, %s378
      %p387 = scmp.eq.s32.totalorder %s79, 0
      %p388 = por %p386, %p387
      %p389 = scmp.ne.s32.totalorder %s377, %s378
      %p390 = scmp.eq.s32.totalorder %s80, 1
      %p391 = por %p389, %p390
      %p393 = scmp.ne.s32.totalorder %s378, %s392
      %p394 = scmp.eq.s32.totalorder %s80, 0
      %p395 = por %p393, %p394
      %s397 = sadd.s32 %s396, 1
      %p400 = scmp.eq.s32.totalorder %s74, 1
      %p401 = scmp.ne.s32.totalorder %s396, %s398
      %p402 = scmp.eq.s32.totalorder %s74, 0
      %p403 = por %p401, %p402
      %p404 = scmp.ne.s32.totalorder %s396, %s398
      %p405 = scmp.eq.s32.totalorder %s79, 1
      %p406 = por %p404, %p405
      %p407 = scmp.ne.s32.totalorder %s398, %s399
      %p408 = scmp.eq.s32.totalorder %s79, 0
      %p409 = por %p407, %p408
      %p410 = scmp.ne.s32.totalorder %s398, %s399
      %p411 = scmp.eq.s32.totalorder %s80, 1
      %p412 = por %p410, %p411
      %p414 = scmp.ne.s32.totalorder %s399, %s413
      %p415 = scmp.eq.s32.totalorder %s80, 0
      %p416 = por %p414, %p415
      %s418 = sadd.s32 %s417, 1
      %p421 = scmp.eq.s32.totalorder %s74, 1
      %p422 = scmp.ne.s32.totalorder %s417, %s419
      %p423 = scmp.eq.s32.totalorder %s74, 0
      %p424 = por %p422, %p423
      %p425 = scmp.ne.s32.totalorder %s417, %s419
      %p426 = scmp.eq.s32.totalorder %s79, 1
      %p427 = por %p425, %p426
      %p428 = scmp.ne.s32.totalorder %s419, %s420
      %p429 = scmp.eq.s32.totalorder %s79, 0
      %p430 = por %p428, %p429
      %p431 = scmp.ne.s32.totalorder %s419, %s420
      %p432 = scmp.eq.s32.totalorder %s80, 1
      %p433 = por %p431, %p432
      %p435 = scmp.ne.s32.totalorder %s420, %s434
      %p436 = scmp.eq.s32.totalorder %s80, 0
      %p437 = por %p435, %p436
      %s439 = sadd.s32 %s438, 1
      %p442 = scmp.eq.s32.totalorder %s74, 1
      %p443 = scmp.ne.s32.totalorder %s438, %s440
      %p444 = scmp.eq.s32.totalorder %s74, 0
      %p445 = por %p443, %p444
      %p446 = scmp.ne.s32.totalorder %s438, %s440
      %p447 = scmp.eq.s32.totalorder %s79, 1
      %p448 = por %p446, %p447
      %p449 = scmp.ne.s32.totalorder %s440, %s441
      %p450 = scmp.eq.s32.totalorder %s79, 0
      %p451 = por %p449, %p450
      %p452 = scmp.ne.s32.totalorder %s440, %s441
      %p453 = scmp.eq.s32.totalorder %s80, 1
      %p454 = por %p452, %p453
      %p456 = scmp.ne.s32.totalorder %s441, %s455
      %p457 = scmp.eq.s32.totalorder %s80, 0
      %p458 = por %p456, %p457
      %s460 = sadd.s32 %s459, 1
      %p463 = scmp.eq.s32.totalorder %s74, 1
      %p464 = scmp.ne.s32.totalorder %s459, %s461
      %p465 = scmp.eq.s32.totalorder %s74, 0
      %p466 = por %p464, %p465
      %p467 = scmp.ne.s32.totalorder %s459, %s461
      %p468 = scmp.eq.s32.totalorder %s79, 1
      %p469 = por %p467, %p468
      %p470 = scmp.ne.s32.totalorder %s461, %s462
      %p471 = scmp.eq.s32.totalorder %s79, 0
      %p472 = por %p470, %p471
      %p473 = scmp.ne.s32.totalorder %s461, %s462
      %p474 = scmp.eq.s32.totalorder %s80, 1
      %p475 = por %p473, %p474
      %p477 = scmp.ne.s32.totalorder %s462, %s476
      %p478 = scmp.eq.s32.totalorder %s80, 0
      %p479 = por %p477, %p478
      %s481 = sadd.s32 %s480, 1
      %p484 = scmp.eq.s32.totalorder %s74, 1
      %p485 = scmp.ne.s32.totalorder %s480, %s482
      %p486 = scmp.eq.s32.totalorder %s74, 0
      %p487 = por %p485, %p486
      %p488 = scmp.ne.s32.totalorder %s480, %s482
      %p489 = scmp.eq.s32.totalorder %s79, 1
      %p490 = por %p488, %p489
      %p491 = scmp.ne.s32.totalorder %s482, %s483
      %p492 = scmp.eq.s32.totalorder %s79, 0
      %p493 = por %p491, %p492
      %p494 = scmp.ne.s32.totalorder %s482, %s483
      %p495 = scmp.eq.s32.totalorder %s80, 1
      %p496 = por %p494, %p495
      %p498 = scmp.ne.s32.totalorder %s483, %s497
      %p499 = scmp.eq.s32.totalorder %s80, 0
      %p500 = por %p498, %p499
      %s502 = sadd.s32 %s501, 1
      %p505 = scmp.eq.s32.totalorder %s74, 1
      %p506 = scmp.ne.s32.totalorder %s501, %s503
      %p507 = scmp.eq.s32.totalorder %s74, 0
      %p508 = por %p506, %p507
      %p509 = scmp.ne.s32.totalorder %s501, %s503
      %p510 = scmp.eq.s32.totalorder %s79, 1
      %p511 = por %p509, %p510
      %p512 = scmp.ne.s32.totalorder %s503, %s504
      %p513 = scmp.eq.s32.totalorder %s79, 0
      %p514 = por %p512, %p513
      %p515 = scmp.ne.s32.totalorder %s503, %s504
      %p516 = scmp.eq.s32.totalorder %s80, 1
      %p517 = por %p515, %p516
      %p519 = scmp.ne.s32.totalorder %s504, %s518
      %p520 = scmp.eq.s32.totalorder %s80, 0
      %p521 = por %p519, %p520
      %s523 = sadd.s32 %s522, 1
      %p526 = scmp.eq.s32.totalorder %s74, 1
      %p527 = scmp.ne.s32.totalorder %s522, %s524
      %p528 = scmp.eq.s32.totalorder %s74, 0
      %p529 = por %p527, %p528
      %p530 = scmp.ne.s32.totalorder %s522, %s524
      %p531 = scmp.eq.s32.totalorder %s79, 1
      %p532 = por %p530, %p531
      %p533 = scmp.ne.s32.totalorder %s524, %s525
      %p534 = scmp.eq.s32.totalorder %s79, 0
      %p535 = por %p533, %p534
      %p536 = scmp.ne.s32.totalorder %s524, %s525
      %p537 = scmp.eq.s32.totalorder %s80, 1
      %p538 = por %p536, %p537
      %p540 = scmp.ne.s32.totalorder %s525, %s539
      %p541 = scmp.eq.s32.totalorder %s80, 0
      %p542 = por %p540, %p541
      %s544 = sadd.s32 %s543, 1
      %p547 = scmp.eq.s32.totalorder %s74, 1
      %p548 = scmp.ne.s32.totalorder %s543, %s545
      %p549 = scmp.eq.s32.totalorder %s74, 0
      %p550 = por %p548, %p549
      %p551 = scmp.ne.s32.totalorder %s543, %s545
      %p552 = scmp.eq.s32.totalorder %s79, 1
      %p553 = por %p551, %p552
      %p554 = scmp.ne.s32.totalorder %s545, %s546
      %p555 = scmp.eq.s32.totalorder %s79, 0
      %p556 = por %p554, %p555
      %p557 = scmp.ne.s32.totalorder %s545, %s546
      %p558 = scmp.eq.s32.totalorder %s80, 1
      %p559 = por %p557, %p558
      %p561 = scmp.ne.s32.totalorder %s546, %s560
      %p562 = scmp.eq.s32.totalorder %s80, 0
      %p563 = por %p561, %p562
      %s565 = sadd.s32 %s564, 1
      %p568 = scmp.eq.s32.totalorder %s74, 1
      %p569 = scmp.ne.s32.totalorder %s564, %s566
      %p570 = scmp.eq.s32.totalorder %s74, 0
      %p571 = por %p569, %p570
      %p572 = scmp.ne.s32.totalorder %s564, %s566
      %p573 = scmp.eq.s32.totalorder %s79, 1
      %p574 = por %p572, %p573
      %p575 = scmp.ne.s32.totalorder %s566, %s567
      %p576 = scmp.eq.s32.totalorder %s79, 0
      %p577 = por %p575, %p576
      %p578 = scmp.ne.s32.totalorder %s566, %s567
      %p579 = scmp.eq.s32.totalorder %s80, 1
      %p580 = por %p578, %p579
      %p582 = scmp.ne.s32.totalorder %s567, %s581
      %p583 = scmp.eq.s32.totalorder %s80, 0
      %p584 = por %p582, %p583
      %s586 = sadd.s32 %s585, 1
      %p589 = scmp.eq.s32.totalorder %s74, 1
      %p590 = scmp.ne.s32.totalorder %s585, %s587
      %p591 = scmp.eq.s32.totalorder %s74, 0
      %p592 = por %p590, %p591
      %p593 = scmp.ne.s32.totalorder %s585, %s587
      %p594 = scmp.eq.s32.totalorder %s79, 1
      %p595 = por %p593, %p594
      %p596 = scmp.ne.s32.totalorder %s587, %s588
      %p597 = scmp.eq.s32.totalorder %s79, 0
      %p598 = por %p596, %p597
      %p599 = scmp.ne.s32.totalorder %s587, %s588
      %p600 = scmp.eq.s32.totalorder %s80, 1
      %p601 = por %p599, %p600
      %p603 = scmp.ne.s32.totalorder %s588, %s602
      %p604 = scmp.eq.s32.totalorder %s80, 0
      %p605 = por %p603, %p604
      %s607 = sadd.s32 %s606, 1
      %p610 = scmp.eq.s32.totalorder %s74, 1
      %p611 = scmp.ne.s32.totalorder %s606, %s608
      %p612 = scmp.eq.s32.totalorder %s74, 0
      %p613 = por %p611, %p612
      %p614 = scmp.ne.s32.totalorder %s606, %s608
      %p615 = scmp.eq.s32.totalorder %s79, 1
      %p616 = por %p614, %p615
      %p617 = scmp.ne.s32.totalorder %s608, %s609
      %p618 = scmp.eq.s32.totalorder %s79, 0
      %p619 = por %p617, %p618
      %p620 = scmp.ne.s32.totalorder %s608, %s609
      %p621 = scmp.eq.s32.totalorder %s80, 1
      %p622 = por %p620, %p621
      %p624 = scmp.ne.s32.totalorder %s609, %s623
      %p625 = scmp.eq.s32.totalorder %s80, 0
      %p626 = por %p624, %p625
      %s628 = sadd.s32 %s627, 1
      %p631 = scmp.eq.s32.totalorder %s74, 1
      %p632 = scmp.ne.s32.totalorder %s627, %s629
      %p633 = scmp.eq.s32.totalorder %s74, 0
      %p634 = por %p632, %p633
      %p635 = scmp.ne.s32.totalorder %s627, %s629
      %p636 = scmp.eq.s32.totalorder %s79, 1
      %p637 = por %p635, %p636
      %p638 = scmp.ne.s32.totalorder %s629, %s630
      %p639 = scmp.eq.s32.totalorder %s79, 0
      %p640 = por %p638, %p639
      %p641 = scmp.ne.s32.totalorder %s629, %s630
      %p642 = scmp.eq.s32.totalorder %s80, 1
      %p643 = por %p641, %p642
      %p645 = scmp.ne.s32.totalorder %s630, %s644
      %p646 = scmp.eq.s32.totalorder %s80, 0
      %p647 = por %p645, %p646
      %s649 = sadd.s32 %s648, 1
      %p652 = scmp.eq.s32.totalorder %s74, 1
      %p653 = scmp.ne.s32.totalorder %s648, %s650
      %p654 = scmp.eq.s32.totalorder %s74, 0
      %p655 = por %p653, %p654
      %p656 = scmp.ne.s32.totalorder %s648, %s650
      %p657 = scmp.eq.s32.totalorder %s79, 1
      %p658 = por %p656, %p657
      %p659 = scmp.ne.s32.totalorder %s650, %s651
      %p660 = scmp.eq.s32.totalorder %s79, 0
      %p661 = por %p659, %p660
      %p662 = scmp.ne.s32.totalorder %s650, %s651
      %p663 = scmp.eq.s32.totalorder %s80, 1
      %p664 = por %p662, %p663
      %p666 = scmp.ne.s32.totalorder %s651, %s665
      %p667 = scmp.eq.s32.totalorder %s80, 0
      %p668 = por %p666, %p667
      %s670 = sadd.s32 %s669, 1
      %p673 = scmp.eq.s32.totalorder %s74, 1
      %p674 = scmp.ne.s32.totalorder %s669, %s671
      %p675 = scmp.eq.s32.totalorder %s74, 0
      %p676 = por %p674, %p675
      %p677 = scmp.ne.s32.totalorder %s669, %s671
      %p678 = scmp.eq.s32.totalorder %s79, 1
      %p679 = por %p677, %p678
      %p680 = scmp.ne.s32.totalorder %s671, %s672
      %p681 = scmp.eq.s32.totalorder %s79, 0
      %p682 = por %p680, %p681
      %p683 = scmp.ne.s32.totalorder %s671, %s672
      %p684 = scmp.eq.s32.totalorder %s80, 1
      %p685 = por %p683, %p684
      %p687 = scmp.ne.s32.totalorder %s672, %s686
      %p688 = scmp.eq.s32.totalorder %s80, 0
      %p689 = por %p687, %p688
      %s691 = sadd.s32 %s690, 1
      %p694 = scmp.eq.s32.totalorder %s74, 1
      %p695 = scmp.ne.s32.totalorder %s690, %s692
      %p696 = scmp.eq.s32.totalorder %s74, 0
      %p697 = por %p695, %p696
      %p698 = scmp.ne.s32.totalorder %s690, %s692
      %p699 = scmp.eq.s32.totalorder %s79, 1
      %p700 = por %p698, %p699
      %p701 = scmp.ne.s32.totalorder %s692, %s693
      %p702 = scmp.eq.s32.totalorder %s79, 0
      %p703 = por %p701, %p702
      %p704 = scmp.ne.s32.totalorder %s692, %s693
      %p705 = scmp.eq.s32.totalorder %s80, 1
      %p706 = por %p704, %p705
      %p708 = scmp.ne.s32.totalorder %s693, %s707
      %p709 = scmp.eq.s32.totalorder %s80, 0
      %p710 = por %p708, %p709
      %s711 = ssub.s32 %s74, %s81
      %p712 = scmp.eq.s32.totalorder %s711, 0
      %s714 = sadd.s32 %s713, 1
      %s715 = scalar_select %p712, %s713, %s714
      %p718 = pneg %p712
      %p719 = scmp.eq.s32.totalorder %s74, 1
      %p720 = por %p718, %p719
      %p721 = scmp.ne.s32.totalorder %s713, %s716
      %p722 = scmp.eq.s32.totalorder %s74, 0
      %p723 = por %p721, %p722
      %p724 = scmp.ne.s32.totalorder %s713, %s716
      %p725 = scmp.eq.s32.totalorder %s79, 1
      %p726 = por %p724, %p725
      %p727 = scmp.ne.s32.totalorder %s716, %s717
      %p728 = scmp.eq.s32.totalorder %s79, 0
      %p729 = por %p727, %p728
      %p730 = scmp.ne.s32.totalorder %s716, %s717
      %p731 = scmp.eq.s32.totalorder %s80, 1
      %p732 = por %p730, %p731
      %p734 = scmp.ne.s32.totalorder %s717, %s733
      %p735 = scmp.eq.s32.totalorder %s80, 0
      %p736 = por %p734, %p735
      %s737 = ssub.s32 %s74, %s81
      %p738 = scmp.eq.s32.totalorder %s737, 0
      %s740 = sadd.s32 %s739, 1
      %s741 = scalar_select %p738, %s739, %s740
      %p744 = pneg %p738
      %p745 = scmp.eq.s32.totalorder %s74, 1
      %p746 = por %p744, %p745
      %p747 = scmp.ne.s32.totalorder %s739, %s742
      %p748 = scmp.eq.s32.totalorder %s74, 0
      %p749 = por %p747, %p748
      %p750 = scmp.ne.s32.totalorder %s739, %s742
      %p751 = scmp.eq.s32.totalorder %s79, 1
      %p752 = por %p750, %p751
      %p753 = scmp.ne.s32.totalorder %s742, %s743
      %p754 = scmp.eq.s32.totalorder %s79, 0
      %p755 = por %p753, %p754
      %p756 = scmp.ne.s32.totalorder %s742, %s743
      %p757 = scmp.eq.s32.totalorder %s80, 1
      %p758 = por %p756, %p757
      %p760 = scmp.ne.s32.totalorder %s743, %s759
      %p761 = scmp.eq.s32.totalorder %s80, 0
      %p762 = por %p760, %p761
      %p763 = scmp.le.s32.totalorder 1, %s74
      %p764 = scmp.lt.s32.totalorder %s74, 3
      %p765 = pnand %p763, %p764
      %p766 = pneg %p765
      // Predicated region
      $region9: #{tpu_custom_call.1} parent=5 // pred_check
        _
      $region10: #{tpu_custom_call.1} parent=5 // pred_check_branch
        %768 = sbr.rel (%p765) target = $region12
      $region11: #{tpu_custom_call.1} parent=5 // pred_region
        %s769 = ssub.s32 %s74, 1
        // Predicated region
        $region13: #{tpu_custom_call.1} parent=11 // pred_check
          %p770 = pneg %p199
        $region14: #{tpu_custom_call.1} parent=11 // pred_check_branch
          %772 = sbr.rel (%p770) target = $region16
        $region15: #{tpu_custom_call.1} parent=11 // pred_region
          _
        $region16: #{tpu_custom_call.1} parent=11 // pred_fallthru
          _
        // Predicated region
        $region17: #{tpu_custom_call.1} parent=11 // pred_check
          %p773 = pneg %p220
        $region18: #{tpu_custom_call.1} parent=11 // pred_check_branch
          %775 = sbr.rel (%p773) target = $region20
        $region19: #{tpu_custom_call.1} parent=11 // pred_region
          _
        $region20: #{tpu_custom_call.1} parent=11 // pred_fallthru
          _
        // Predicated region
        $region21: #{tpu_custom_call.1} parent=11 // pred_check
          %p776 = pneg %p241
        $region22: #{tpu_custom_call.1} parent=11 // pred_check_branch
          %778 = sbr.rel (%p776) target = $region24
        $region23: #{tpu_custom_call.1} parent=11 // pred_region
          _
        $region24: #{tpu_custom_call.1} parent=11 // pred_fallthru
          _
        // Predicated region
        $region25: #{tpu_custom_call.1} parent=11 // pred_check
          %p779 = pneg %p262
        $region26: #{tpu_custom_call.1} parent=11 // pred_check_branch
          %781 = sbr.rel (%p779) target = $region28
        $region27: #{tpu_custom_call.1} parent=11 // pred_region
          _
        $region28: #{tpu_custom_call.1} parent=11 // pred_fallthru
          _
        // Predicated region
        $region29: #{tpu_custom_call.1} parent=11 // pred_check
          %p782 = pneg %p283
        $region30: #{tpu_custom_call.1} parent=11 // pred_check_branch
          %784 = sbr.rel (%p782) target = $region32
        $region31: #{tpu_custom_call.1} parent=11 // pred_region
          _
        $region32: #{tpu_custom_call.1} parent=11 // pred_fallthru
          _
        // Predicated region
        $region33: #{tpu_custom_call.1} parent=11 // pred_check
          %p785 = pneg %p304
        $region34: #{tpu_custom_call.1} parent=11 // pred_check_branch
          %787 = sbr.rel (%p785) target = $region36
        $region35: #{tpu_custom_call.1} parent=11 // pred_region
          _
        $region36: #{tpu_custom_call.1} parent=11 // pred_fallthru
          _
        // Predicated region
        $region37: #{tpu_custom_call.1} parent=11 // pred_check
          %p788 = pneg %p325
        $region38: #{tpu_custom_call.1} parent=11 // pred_check_branch
          %790 = sbr.rel (%p788) target = $region40
        $region39: #{tpu_custom_call.1} parent=11 // pred_region
          _
        $region40: #{tpu_custom_call.1} parent=11 // pred_fallthru
          _
        // Predicated region
        $region41: #{tpu_custom_call.1} parent=11 // pred_check
          %p791 = pneg %p346
        $region42: #{tpu_custom_call.1} parent=11 // pred_check_branch
          %793 = sbr.rel (%p791) target = $region44
        $region43: #{tpu_custom_call.1} parent=11 // pred_region
          _
        $region44: #{tpu_custom_call.1} parent=11 // pred_fallthru
          _
        // Predicated region
        $region45: #{tpu_custom_call.1} parent=11 // pred_check
          %p794 = pneg %p367
        $region46: #{tpu_custom_call.1} parent=11 // pred_check_branch
          %796 = sbr.rel (%p794) target = $region48
        $region47: #{tpu_custom_call.1} parent=11 // pred_region
          _
        $region48: #{tpu_custom_call.1} parent=11 // pred_fallthru
          _
        // Predicated region
        $region49: #{tpu_custom_call.1} parent=11 // pred_check
          %p797 = pneg %p388
        $region50: #{tpu_custom_call.1} parent=11 // pred_check_branch
          %799 = sbr.rel (%p797) target = $region52
        $region51: #{tpu_custom_call.1} parent=11 // pred_region
          _
        $region52: #{tpu_custom_call.1} parent=11 // pred_fallthru
          _
        // Predicated region
        $region53: #{tpu_custom_call.1} parent=11 // pred_check
          %p800 = pneg %p409
        $region54: #{tpu_custom_call.1} parent=11 // pred_check_branch
          %802 = sbr.rel (%p800) target = $region56
        $region55: #{tpu_custom_call.1} parent=11 // pred_region
          _
        $region56: #{tpu_custom_call.1} parent=11 // pred_fallthru
          _
        // Predicated region
        $region57: #{tpu_custom_call.1} parent=11 // pred_check
          %p803 = pneg %p430
        $region58: #{tpu_custom_call.1} parent=11 // pred_check_branch
          %805 = sbr.rel (%p803) target = $region60
        $region59: #{tpu_custom_call.1} parent=11 // pred_region
          _
        $region60: #{tpu_custom_call.1} parent=11 // pred_fallthru
          _
        // Predicated region
        $region61: #{tpu_custom_call.1} parent=11 // pred_check
          %p806 = pneg %p451
        $region62: #{tpu_custom_call.1} parent=11 // pred_check_branch
          %808 = sbr.rel (%p806) target = $region64
        $region63: #{tpu_custom_call.1} parent=11 // pred_region
          _
        $region64: #{tpu_custom_call.1} parent=11 // pred_fallthru
          _
        // Predicated region
        $region65: #{tpu_custom_call.1} parent=11 // pred_check
          %p809 = pneg %p472
        $region66: #{tpu_custom_call.1} parent=11 // pred_check_branch
          %811 = sbr.rel (%p809) target = $region68
        $region67: #{tpu_custom_call.1} parent=11 // pred_region
          _
        $region68: #{tpu_custom_call.1} parent=11 // pred_fallthru
          _
        // Predicated region
        $region69: #{tpu_custom_call.1} parent=11 // pred_check
          %p812 = pneg %p493
        $region70: #{tpu_custom_call.1} parent=11 // pred_check_branch
          %814 = sbr.rel (%p812) target = $region72
        $region71: #{tpu_custom_call.1} parent=11 // pred_region
          _
        $region72: #{tpu_custom_call.1} parent=11 // pred_fallthru
          _
        // Predicated region
        $region73: #{tpu_custom_call.1} parent=11 // pred_check
          %p815 = pneg %p514
        $region74: #{tpu_custom_call.1} parent=11 // pred_check_branch
          %817 = sbr.rel (%p815) target = $region76
        $region75: #{tpu_custom_call.1} parent=11 // pred_region
          _
        $region76: #{tpu_custom_call.1} parent=11 // pred_fallthru
          _
        // Predicated region
        $region77: #{tpu_custom_call.1} parent=11 // pred_check
          %p818 = pneg %p535
        $region78: #{tpu_custom_call.1} parent=11 // pred_check_branch
          %820 = sbr.rel (%p818) target = $region80
        $region79: #{tpu_custom_call.1} parent=11 // pred_region
          _
        $region80: #{tpu_custom_call.1} parent=11 // pred_fallthru
          _
        // Predicated region
        $region81: #{tpu_custom_call.1} parent=11 // pred_check
          %p821 = pneg %p556
        $region82: #{tpu_custom_call.1} parent=11 // pred_check_branch
          %823 = sbr.rel (%p821) target = $region84
        $region83: #{tpu_custom_call.1} parent=11 // pred_region
          _
        $region84: #{tpu_custom_call.1} parent=11 // pred_fallthru
          _
        // Predicated region
        $region85: #{tpu_custom_call.1} parent=11 // pred_check
          %p824 = pneg %p577
        $region86: #{tpu_custom_call.1} parent=11 // pred_check_branch
          %826 = sbr.rel (%p824) target = $region88
        $region87: #{tpu_custom_call.1} parent=11 // pred_region
          _
        $region88: #{tpu_custom_call.1} parent=11 // pred_fallthru
          _
        // Predicated region
        $region89: #{tpu_custom_call.1} parent=11 // pred_check
          %p827 = pneg %p598
        $region90: #{tpu_custom_call.1} parent=11 // pred_check_branch
          %829 = sbr.rel (%p827) target = $region92
        $region91: #{tpu_custom_call.1} parent=11 // pred_region
          _
        $region92: #{tpu_custom_call.1} parent=11 // pred_fallthru
          _
        // Predicated region
        $region93: #{tpu_custom_call.1} parent=11 // pred_check
          %p830 = pneg %p619
        $region94: #{tpu_custom_call.1} parent=11 // pred_check_branch
          %832 = sbr.rel (%p830) target = $region96
        $region95: #{tpu_custom_call.1} parent=11 // pred_region
          _
        $region96: #{tpu_custom_call.1} parent=11 // pred_fallthru
          _
        // Predicated region
        $region97: #{tpu_custom_call.1} parent=11 // pred_check
          %p833 = pneg %p640
        $region98: #{tpu_custom_call.1} parent=11 // pred_check_branch
          %835 = sbr.rel (%p833) target = $region100
        $region99: #{tpu_custom_call.1} parent=11 // pred_region
          _
        $region100: #{tpu_custom_call.1} parent=11 // pred_fallthru
          _
        // Predicated region
        $region101: #{tpu_custom_call.1} parent=11 // pred_check
          %p836 = pneg %p661
        $region102: #{tpu_custom_call.1} parent=11 // pred_check_branch
          %838 = sbr.rel (%p836) target = $region104
        $region103: #{tpu_custom_call.1} parent=11 // pred_region
          _
        $region104: #{tpu_custom_call.1} parent=11 // pred_fallthru
          _
        // Predicated region
        $region105: #{tpu_custom_call.1} parent=11 // pred_check
          %p839 = pneg %p682
        $region106: #{tpu_custom_call.1} parent=11 // pred_check_branch
          %841 = sbr.rel (%p839) target = $region108
        $region107: #{tpu_custom_call.1} parent=11 // pred_region
          _
        $region108: #{tpu_custom_call.1} parent=11 // pred_fallthru
          _
        // Predicated region
        $region109: #{tpu_custom_call.1} parent=11 // pred_check
          %p842 = pneg %p703
        $region110: #{tpu_custom_call.1} parent=11 // pred_check_branch
          %844 = sbr.rel (%p842) target = $region112
        $region111: #{tpu_custom_call.1} parent=11 // pred_region
          _
        $region112: #{tpu_custom_call.1} parent=11 // pred_fallthru
          _
      $region12: #{tpu_custom_call.1} parent=5 // pred_fallthru
        _
      %p845 = scmp.lt.s32.totalorder %s74, 2
      // Predicated region
      $region113: #{tpu_custom_call.1} parent=5 // pred_check
        %p846 = pneg %p845
      $region114: #{tpu_custom_call.1} parent=5 // pred_check_branch
        %848 = sbr.rel (%p846) target = $region116
      $region115: #{tpu_custom_call.1} parent=5 // pred_region
        // Predicated region
        $region117: #{tpu_custom_call.1} parent=115 // pred_check
          %p849 = pneg %p94
        $region118: #{tpu_custom_call.1} parent=115 // pred_check_branch
          %851 = sbr.rel (%p849) target = $region120
        $region119: #{tpu_custom_call.1} parent=115 // pred_region
          %p852 = scmp.lt.s32.totalorder %s74, 1
          %s853 = scalar_select %p852, %s74, 1
          %s854 = smul.addr %s853, 2
          %s855 = smul.addr %s854, 8
          %s856 = scalar_lea.vmem %s1, %s855
        $region120: #{tpu_custom_call.1} parent=115 // pred_fallthru
          _
        // Predicated region
        $region121: #{tpu_custom_call.1} parent=115 // pred_check
          %p857 = pneg %p120
        $region122: #{tpu_custom_call.1} parent=115 // pred_check_branch
          %859 = sbr.rel (%p857) target = $region124
        $region123: #{tpu_custom_call.1} parent=115 // pred_region
          %p860 = scmp.lt.s32.totalorder %s74, 1
          %s861 = scalar_select %p860, %s74, 1
          %s862 = smul.addr %s861, 2
          %s863 = smul.addr %s862, 8
          %s864 = scalar_lea.vmem %s3, %s863
        $region124: #{tpu_custom_call.1} parent=115 // pred_fallthru
          _
        // Predicated region
        $region125: #{tpu_custom_call.1} parent=115 // pred_check
          %p865 = pneg %p146
        $region126: #{tpu_custom_call.1} parent=115 // pred_check_branch
          %867 = sbr.rel (%p865) target = $region128
        $region127: #{tpu_custom_call.1} parent=115 // pred_region
          %p868 = scmp.lt.s32.totalorder %s74, 1
          %s869 = scalar_select %p868, %s74, 1
          %s870 = scalar_lea.vmem %s5, %s869
        $region128: #{tpu_custom_call.1} parent=115 // pred_fallthru
          _
        // Predicated region
        $region129: #{tpu_custom_call.1} parent=115 // pred_check
          %p871 = pneg %p172
        $region130: #{tpu_custom_call.1} parent=115 // pred_check_branch
          %873 = sbr.rel (%p871) target = $region132
        $region131: #{tpu_custom_call.1} parent=115 // pred_region
          %p874 = scmp.lt.s32.totalorder %s74, 1
          %s875 = scalar_select %p874, %s74, 1
          %s876 = scalar_lea.vmem %s7, %s875
        $region132: #{tpu_custom_call.1} parent=115 // pred_fallthru
          _
      $region116: #{tpu_custom_call.1} parent=5 // pred_fallthru
        _
      %p877 = scmp.le.s32.totalorder 1, %s74
      %p878 = scmp.lt.s32.totalorder %s74, 3
      %p879 = pnand %p877, %p878
      %p880 = pneg %p879
      // Predicated region
      $region133: #{tpu_custom_call.1} parent=5 // pred_check
        _
      $region134: #{tpu_custom_call.1} parent=5 // pred_check_branch
        %882 = sbr.rel (%p879) target = $region136
      $region135: #{tpu_custom_call.1} parent=5 // pred_region
        %s883 = ssub.s32 %s74, 1
        %p884 = scmp.lt.s32.totalorder %s79, 1
        %s885 = scalar_select %p884, %s79, 1
        %s886 = smul.addr %s885, 2
        %s887 = smul.addr %s886, 8
        %s888 = scalar_lea.vmem %s1, %s887
        %p889 = pneg %p100
        %p890 = pneg %p97
        %p891 = scmp.lt.s32.totalorder %s79, 1
        %s892 = scalar_select %p891, %s79, 1
        %s893 = smul.addr %s892, 2
        %s894 = smul.addr %s893, 8
        %s895 = scalar_lea.vmem %s3, %s894
        %p896 = pneg %p126
        %p897 = pneg %p123
        %p898 = scmp.lt.s32.totalorder %s79, 1
        %s899 = scalar_select %p898, %s79, 1
        %s900 = scalar_lea.vmem %s5, %s899
        %p901 = pneg %p152
        %p902 = pneg %p149
        %p903 = scmp.lt.s32.totalorder %s79, 1
        %s904 = scalar_select %p903, %s79, 1
        %s905 = scalar_lea.vmem %s7, %s904
        %p906 = pneg %p178
        %p907 = pneg %p175
        %p908 = pneg %p199
        %p909 = pneg %p196
        %p910 = pneg %p220
        %p911 = pneg %p217
        %p912 = pneg %p241
        %p913 = pneg %p238
        %p914 = pneg %p262
        %p915 = pneg %p259
        %p916 = pneg %p283
        %p917 = pneg %p280
        %p918 = pneg %p304
        %p919 = pneg %p301
        %p920 = pneg %p325
        %p921 = pneg %p322
        %p922 = pneg %p346
        %p923 = pneg %p343
        %p924 = pneg %p367
        %p925 = pneg %p364
        %p926 = pneg %p388
        %p927 = pneg %p385
        %p928 = pneg %p409
        %p929 = pneg %p406
        %p930 = pneg %p430
        %p931 = pneg %p427
        %p932 = pneg %p451
        %p933 = pneg %p448
        %p934 = pneg %p472
        %p935 = pneg %p469
        %p936 = pneg %p493
        %p937 = pneg %p490
        %p938 = pneg %p514
        %p939 = pneg %p511
        %p940 = pneg %p535
        %p941 = pneg %p532
        %p942 = pneg %p556
        %p943 = pneg %p553
        %p944 = pneg %p577
        %p945 = pneg %p574
        %p946 = pneg %p598
        %p947 = pneg %p595
        %p948 = pneg %p619
        %p949 = pneg %p616
        %p950 = pneg %p640
        %p951 = pneg %p637
        %p952 = pneg %p661
        %p953 = pneg %p658
        %p954 = pneg %p682
        %p955 = pneg %p679
        %p956 = pneg %p703
        %p957 = pneg %p700
        %p958 = pneg %p729
        %p959 = pneg %p726
        %s960 = sand.u32 %s716, 1
        %s961 = scalar_lea.sflag [#allocation5], %s960
        %s962 = sand.u32 %s716, 1
        %s963 = smul.addr %s962, 8
        %s964 = scalar_lea.vmem [#allocation4], %s963
        %p965 = pneg %p755
        %p966 = pneg %p752
        %s967 = sand.u32 %s742, 1
        %s968 = scalar_lea.sflag [#allocation7], %s967
        %s969 = sand.u32 %s742, 1
        %s970 = smul.addr %s969, 16
        %s971 = scalar_lea.vmem [#allocation6], %s970
        %p972 = scmp.lt.s32.totalorder %s79, 1
        %s973 = scalar_select %p972, %s79, 1
        %s974 = smul.addr %s973, 2
        %s975 = smul.addr %s974, 8
        %s976 = scalar_lea.vmem %s1, %s975
        %p977 = scmp.lt.s32.totalorder %s79, 1
        %s978 = scalar_select %p977, %s79, 1
        %s979 = smul.addr %s978, 2
        %s980 = smul.addr %s979, 8
        %s981 = scalar_lea.vmem %s3, %s980
        %p982 = scmp.lt.s32.totalorder %s79, 1
        %s983 = scalar_select %p982, %s79, 1
        %s984 = scalar_lea.vmem %s5, %s983
        %p985 = scmp.lt.s32.totalorder %s79, 1
        %s986 = scalar_select %p985, %s79, 1
        %s987 = scalar_lea.vmem %s7, %s986
        %v988 = vld [vmem:[%s984] sm:$0x1]
        %v989 = vld [vmem:[%s31] sm:$0xff]
        %v990 = vld [vmem:[%s31 + $0x8] sm:$0xff]
        %v991 = vld [vmem:[%s33] sm:$0x1]
        %vm992 = vcmask 130048
        %v994 = vsel %vm992, %v988, 0
        %996 = vmatprep.subr.mxu0 0.0
        %997 = vmatpush1.msra.mxu0 %v989
        %998 = vmatprep.subr.mxu0 0.0
        %999 = vmatpush1.msra.mxu0 %v990
        %1000 = vmatprep.subr.mxu0 0.0
        %1001 = vmatpush1.msra.mxu0 0.0
        %1002 = vmatprep.subr.mxu0 0.0
        %1003 = vmatpush1.msra.mxu0 0.0
        %1004 = vmatprep.subr.mxu0 0.0
        %1005 = vmatpush1.msra.mxu0 0.0
        %1006 = vmatprep.subr.mxu0 0.0
        %1007 = vmatpush1.msra.mxu0 0.0
        %1008 = vmatprep.subr.mxu0 0.0
        %1009 = vmatpush1.msra.mxu0 0.0
        %1010 = vmatprep.subr.mxu0 0.0
        %1011 = vmatpush1.msra.mxu0 0.0
        %1012 = vmatprep.subr.mxu0 0.0
        %1013 = vmatpush1.msra.mxu0 0.0
        %1014 = vmatprep.subr.mxu0 0.0
        %1015 = vmatpush1.msra.mxu0 0.0
        %1016 = vmatprep.subr.mxu0 0.0
        %1017 = vmatpush1.msra.mxu0 0.0
        %1018 = vmatprep.subr.mxu0 0.0
        %1019 = vmatpush1.msra.mxu0 0.0
        %1020 = vmatprep.subr.mxu0 0.0
        %1021 = vmatpush1.msra.mxu0 0.0
        %1022 = vmatprep.subr.mxu0 0.0
        %1023 = vmatpush1.msra.mxu0 0.0
        %1024 = vmatprep.subr.mxu0 0.0
        %1025 = vmatpush1.msra.mxu0 0.0
        %1026 = vmatprep.subr.mxu0 0.0
        %1027 = vmatpush1.msra.mxu0 0.0
        %1028 = vmatprep.subr.mxu0 0.0
        %1029 = vmatpush1.msra.mxu0 0.0
        %1030 = vmatprep.subr.mxu0 0.0
        %1031 = vmatpush1.msra.mxu0 0.0
        %1032 = vmatprep.subr.mxu0 0.0
        %1033 = vmatpush1.msra.mxu0 0.0
        %1034 = vmatprep.subr.mxu0 0.0
        %1035 = vmatpush1.msra.mxu0 0.0
        %1036 = vmatprep.subr.mxu0 0.0
        %1037 = vmatpush1.msra.mxu0 0.0
        %1038 = vmatprep.subr.mxu0 0.0
        %1039 = vmatpush1.msra.mxu0 0.0
        %1040 = vmatprep.subr.mxu0 0.0
        %1041 = vmatpush1.msra.mxu0 0.0
        %1042 = vmatprep.subr.mxu0 0.0
        %1043 = vmatpush1.msra.mxu0 0.0
        %1044 = vmatprep.subr.mxu0 0.0
        %1045 = vmatpush1.msra.mxu0 0.0
        %1046 = vmatprep.subr.mxu0 0.0
        %1047 = vmatpush1.msra.mxu0 0.0
        %1048 = vmatprep.subr.mxu0 0.0
        %1049 = vmatpush1.msra.mxu0 0.0
        %1050 = vmatprep.subr.mxu0 0.0
        %1051 = vmatpush1.msra.mxu0 0.0
        %1052 = vmatprep.subr.mxu0 0.0
        %1053 = vmatpush1.msra.mxu0 0.0
        %1054 = vmatprep.subr.mxu0 0.0
        %1055 = vmatpush1.msra.mxu0 0.0
        %1056 = vmatprep.subr.mxu0 0.0
        %1057 = vmatpush1.msra.mxu0 0.0
        %1058 = vmatprep.subr.mxu0 0.0
        %1059 = vmatpush1.msra.mxu0 0.0
        %1060 = vmatprep.mubr.f32.mxu0 0.0
        %1061 = vmatmul.mubr.f32.gmra.mrb[0].mxu0 %v994
        %v1062 = vpop.f32.mrb[0].mxu0
        %v1063 = vadd.f32 %v991, %v1062
        %v1064 = vpop.f32.mrb[0].mxu0
        %1065 = vdwg.mxu0
        %v1066 = vsub.f32 0.0, %v1063
        %v1067 = vmul.f32 %v1066, 1.442695
        %v1068 = vpow.pop %v1067
        %v1069 = vadd.f32 %v1068, 1.0
        %v1070 = vrcp.pop %v1069
        %v1071 = vmul.f32 %v1063, %v1070
        %v1072 = vld [vmem:[%s35] sm:$0xff]
        %v1073 = vld [vmem:[%s35 + $0x8] sm:$0xff]
        %v1074 = vld [vmem:[%s35 + $0x10] sm:$0xff]
        %v1075 = vld [vmem:[%s35 + $0x18] sm:$0xff]
        %v1076 = vld [vmem:[%s35 + $0x20] sm:$0xff]
        %v1077 = vld [vmem:[%s35 + $0x28] sm:$0xff]
        %v1078 = vld [vmem:[%s35 + $0x30] sm:$0xff]
        %v1079 = vld [vmem:[%s35 + $0x38] sm:$0xff]
        %v1080 = vld [vmem:[%s35 + $0x40] sm:$0xff]
        %v1081 = vld [vmem:[%s35 + $0x48] sm:$0xff]
        %v1082 = vld [vmem:[%s35 + $0x50] sm:$0xff]
        %v1083 = vld [vmem:[%s35 + $0x58] sm:$0xff]
        %v1084 = vld [vmem:[%s35 + $0x60] sm:$0xff]
        %v1085 = vld [vmem:[%s35 + $0x68] sm:$0xff]
        %v1086 = vld [vmem:[%s35 + $0x70] sm:$0xff]
        %v1087 = vld [vmem:[%s35 + $0x78] sm:$0xff]
        %v1088 = vld [vmem:[%s37] sm:$0x1]
        %1089 = vmatprep.subr.mxu0 0.0
        %1090 = vmatpush1.msra.mxu0 %v1072
        %1091 = vmatprep.subr.mxu0 0.0
        %1092 = vmatpush1.msra.mxu0 %v1073
        %1093 = vmatprep.subr.mxu0 0.0
        %1094 = vmatpush1.msra.mxu0 %v1074
        %1095 = vmatprep.subr.mxu0 0.0
        %1096 = vmatpush1.msra.mxu0 %v1075
        %1097 = vmatprep.subr.mxu0 0.0
        %1098 = vmatpush1.msra.mxu0 %v1076
        %1099 = vmatprep.subr.mxu0 0.0
        %1100 = vmatpush1.msra.mxu0 %v1077
        %1101 = vmatprep.subr.mxu0 0.0
        %1102 = vmatpush1.msra.mxu0 %v1078
        %1103 = vmatprep.subr.mxu0 0.0
        %1104 = vmatpush1.msra.mxu0 %v1079
        %1105 = vmatprep.subr.mxu0 0.0
        %1106 = vmatpush1.msra.mxu0 %v1080
        %1107 = vmatprep.subr.mxu0 0.0
        %1108 = vmatpush1.msra.mxu0 %v1081
        %1109 = vmatprep.subr.mxu0 0.0
        %1110 = vmatpush1.msra.mxu0 %v1082
        %1111 = vmatprep.subr.mxu0 0.0
        %1112 = vmatpush1.msra.mxu0 %v1083
        %1113 = vmatprep.subr.mxu0 0.0
        %1114 = vmatpush1.msra.mxu0 %v1084
        %1115 = vmatprep.subr.mxu0 0.0
        %1116 = vmatpush1.msra.mxu0 %v1085
        %1117 = vmatprep.subr.mxu0 0.0
        %1118 = vmatpush1.msra.mxu0 %v1086
        %1119 = vmatprep.subr.mxu0 0.0
        %1120 = vmatpush1.msra.mxu0 %v1087
        %1121 = vmatprep.subr.mxu0 0.0
        %1122 = vmatpush1.msra.mxu0 0.0
        %1123 = vmatprep.subr.mxu0 0.0
        %1124 = vmatpush1.msra.mxu0 0.0
        %1125 = vmatprep.subr.mxu0 0.0
        %1126 = vmatpush1.msra.mxu0 0.0
        %1127 = vmatprep.subr.mxu0 0.0
        %1128 = vmatpush1.msra.mxu0 0.0
        %1129 = vmatprep.subr.mxu0 0.0
        %1130 = vmatpush1.msra.mxu0 0.0
        %1131 = vmatprep.subr.mxu0 0.0
        %1132 = vmatpush1.msra.mxu0 0.0
        %1133 = vmatprep.subr.mxu0 0.0
        %1134 = vmatpush1.msra.mxu0 0.0
        %1135 = vmatprep.subr.mxu0 0.0
        %1136 = vmatpush1.msra.mxu0 0.0
        %1137 = vmatprep.subr.mxu0 0.0
        %1138 = vmatpush1.msra.mxu0 0.0
        %1139 = vmatprep.subr.mxu0 0.0
        %1140 = vmatpush1.msra.mxu0 0.0
        %1141 = vmatprep.subr.mxu0 0.0
        %1142 = vmatpush1.msra.mxu0 0.0
        %1143 = vmatprep.subr.mxu0 0.0
        %1144 = vmatpush1.msra.mxu0 0.0
        %1145 = vmatprep.subr.mxu0 0.0
        %1146 = vmatpush1.msra.mxu0 0.0
        %1147 = vmatprep.subr.mxu0 0.0
        %1148 = vmatpush1.msra.mxu0 0.0
        %1149 = vmatprep.subr.mxu0 0.0
        %1150 = vmatpush1.msra.mxu0 0.0
        %1151 = vmatprep.subr.mxu0 0.0
        %1152 = vmatpush1.msra.mxu0 0.0
        %1153 = vmatprep.mubr.f32.mxu0 0.0
        %1154 = vmatmul.mubr.f32.gmra.mrb[0].mxu0 %v1071
        %v1155 = vpop.f32.mrb[0].mxu0
        %v1156 = vadd.f32 %v1088, %v1155
        %v1157 = vpop.f32.mrb[0].mxu0
        %1158 = vdwg.mxu0
        %v1159 = vld [vmem:[%s39] sm:$0xff]
        %v1160 = vld [vmem:[%s39 + $0x8] sm:$0xff]
        %v1161 = vld [vmem:[%s39 + $0x10] sm:$0xff]
        %v1162 = vld [vmem:[%s39 + $0x18] sm:$0xff]
        %v1163 = vld [vmem:[%s39 + $0x20] sm:$0xff]
        %v1164 = vld [vmem:[%s39 + $0x28] sm:$0xff]
        %v1165 = vld [vmem:[%s39 + $0x30] sm:$0xff]
        %v1166 = vld [vmem:[%s39 + $0x38] sm:$0xff]
        %v1167 = vld [vmem:[%s39 + $0x40] sm:$0xff]
        %v1168 = vld [vmem:[%s39 + $0x48] sm:$0xff]
        %v1169 = vld [vmem:[%s39 + $0x50] sm:$0xff]
        %v1170 = vld [vmem:[%s39 + $0x58] sm:$0xff]
        %v1171 = vld [vmem:[%s39 + $0x60] sm:$0xff]
        %v1172 = vld [vmem:[%s39 + $0x68] sm:$0xff]
        %v1173 = vld [vmem:[%s39 + $0x70] sm:$0xff]
        %v1174 = vld [vmem:[%s39 + $0x78] sm:$0xff]
        %v1175 = vld [vmem:[%s41] sm:$0x1]
        %1176 = vmatprep.subr.mxu0 0.0
        %1177 = vmatpush1.msra.mxu0 %v1159
        %1178 = vmatprep.subr.mxu0 0.0
        %1179 = vmatpush1.msra.mxu0 %v1160
        %1180 = vmatprep.subr.mxu0 0.0
        %1181 = vmatpush1.msra.mxu0 %v1161
        %1182 = vmatprep.subr.mxu0 0.0
        %1183 = vmatpush1.msra.mxu0 %v1162
        %1184 = vmatprep.subr.mxu0 0.0
        %1185 = vmatpush1.msra.mxu0 %v1163
        %1186 = vmatprep.subr.mxu0 0.0
        %1187 = vmatpush1.msra.mxu0 %v1164
        %1188 = vmatprep.subr.mxu0 0.0
        %1189 = vmatpush1.msra.mxu0 %v1165
        %1190 = vmatprep.subr.mxu0 0.0
        %1191 = vmatpush1.msra.mxu0 %v1166
        %1192 = vmatprep.subr.mxu0 0.0
        %1193 = vmatpush1.msra.mxu0 %v1167
        %1194 = vmatprep.subr.mxu0 0.0
        %1195 = vmatpush1.msra.mxu0 %v1168
        %1196 = vmatprep.subr.mxu0 0.0
        %1197 = vmatpush1.msra.mxu0 %v1169
        %1198 = vmatprep.subr.mxu0 0.0
        %1199 = vmatpush1.msra.mxu0 %v1170
        %1200 = vmatprep.subr.mxu0 0.0
        %1201 = vmatpush1.msra.mxu0 %v1171
        %1202 = vmatprep.subr.mxu0 0.0
        %1203 = vmatpush1.msra.mxu0 %v1172
        %1204 = vmatprep.subr.mxu0 0.0
        %1205 = vmatpush1.msra.mxu0 %v1173
        %1206 = vmatprep.subr.mxu0 0.0
        %1207 = vmatpush1.msra.mxu0 %v1174
        %1208 = vmatprep.subr.mxu0 0.0
        %1209 = vmatpush1.msra.mxu0 0.0
        %1210 = vmatprep.subr.mxu0 0.0
        %1211 = vmatpush1.msra.mxu0 0.0
        %1212 = vmatprep.subr.mxu0 0.0
        %1213 = vmatpush1.msra.mxu0 0.0
        %1214 = vmatprep.subr.mxu0 0.0
        %1215 = vmatpush1.msra.mxu0 0.0
        %1216 = vmatprep.subr.mxu0 0.0
        %1217 = vmatpush1.msra.mxu0 0.0
        %1218 = vmatprep.subr.mxu0 0.0
        %1219 = vmatpush1.msra.mxu0 0.0
        %1220 = vmatprep.subr.mxu0 0.0
        %1221 = vmatpush1.msra.mxu0 0.0
        %1222 = vmatprep.subr.mxu0 0.0
        %1223 = vmatpush1.msra.mxu0 0.0
        %1224 = vmatprep.subr.mxu0 0.0
        %1225 = vmatpush1.msra.mxu0 0.0
        %1226 = vmatprep.subr.mxu0 0.0
        %1227 = vmatpush1.msra.mxu0 0.0
        %1228 = vmatprep.subr.mxu0 0.0
        %1229 = vmatpush1.msra.mxu0 0.0
        %1230 = vmatprep.subr.mxu0 0.0
        %1231 = vmatpush1.msra.mxu0 0.0
        %1232 = vmatprep.subr.mxu0 0.0
        %1233 = vmatpush1.msra.mxu0 0.0
        %1234 = vmatprep.subr.mxu0 0.0
        %1235 = vmatpush1.msra.mxu0 0.0
        %1236 = vmatprep.subr.mxu0 0.0
        %1237 = vmatpush1.msra.mxu0 0.0
        %1238 = vmatprep.subr.mxu0 0.0
        %1239 = vmatpush1.msra.mxu0 0.0
        %1240 = vmatprep.mubr.f32.mxu0 0.0
        %1241 = vmatmul.mubr.f32.gmra.mrb[0].mxu0 %v1071
        %v1242 = vpop.f32.mrb[0].mxu0
        %v1243 = vadd.f32 %v1175, %v1242
        %v1244 = vpop.f32.mrb[0].mxu0
        %1245 = vdwg.mxu0
        %v1246 = vld [vmem:[%s987] sm:$0x1]
        %v1247 = vld [vmem:[%s43] sm:$0xff]
        %v1248 = vld [vmem:[%s45] sm:$0x1]
        %vm1249 = vcmask 64512
        %v1251 = vsel %vm1249, %v1246, 0
        %1253 = vmatprep.subr.mxu0 0.0
        %1254 = vmatpush1.msra.mxu0 %v1247
        %1255 = vmatprep.subr.mxu0 0.0
        %1256 = vmatpush1.msra.mxu0 0.0
        %1257 = vmatprep.subr.mxu0 0.0
        %1258 = vmatpush1.msra.mxu0 0.0
        %1259 = vmatprep.subr.mxu0 0.0
        %1260 = vmatpush1.msra.mxu0 0.0
        %1261 = vmatprep.subr.mxu0 0.0
        %1262 = vmatpush1.msra.mxu0 0.0
        %1263 = vmatprep.subr.mxu0 0.0
        %1264 = vmatpush1.msra.mxu0 0.0
        %1265 = vmatprep.subr.mxu0 0.0
        %1266 = vmatpush1.msra.mxu0 0.0
        %1267 = vmatprep.subr.mxu0 0.0
        %1268 = vmatpush1.msra.mxu0 0.0
        %1269 = vmatprep.subr.mxu0 0.0
        %1270 = vmatpush1.msra.mxu0 0.0
        %1271 = vmatprep.subr.mxu0 0.0
        %1272 = vmatpush1.msra.mxu0 0.0
        %1273 = vmatprep.subr.mxu0 0.0
        %1274 = vmatpush1.msra.mxu0 0.0
        %1275 = vmatprep.subr.mxu0 0.0
        %1276 = vmatpush1.msra.mxu0 0.0
        %1277 = vmatprep.subr.mxu0 0.0
        %1278 = vmatpush1.msra.mxu0 0.0
        %1279 = vmatprep.subr.mxu0 0.0
        %1280 = vmatpush1.msra.mxu0 0.0
        %1281 = vmatprep.subr.mxu0 0.0
        %1282 = vmatpush1.msra.mxu0 0.0
        %1283 = vmatprep.subr.mxu0 0.0
        %1284 = vmatpush1.msra.mxu0 0.0
        %1285 = vmatprep.subr.mxu0 0.0
        %1286 = vmatpush1.msra.mxu0 0.0
        %1287 = vmatprep.subr.mxu0 0.0
        %1288 = vmatpush1.msra.mxu0 0.0
        %1289 = vmatprep.subr.mxu0 0.0
        %1290 = vmatpush1.msra.mxu0 0.0
        %1291 = vmatprep.subr.mxu0 0.0
        %1292 = vmatpush1.msra.mxu0 0.0
        %1293 = vmatprep.subr.mxu0 0.0
        %1294 = vmatpush1.msra.mxu0 0.0
        %1295 = vmatprep.subr.mxu0 0.0
        %1296 = vmatpush1.msra.mxu0 0.0
        %1297 = vmatprep.subr.mxu0 0.0
        %1298 = vmatpush1.msra.mxu0 0.0
        %1299 = vmatprep.subr.mxu0 0.0
        %1300 = vmatpush1.msra.mxu0 0.0
        %1301 = vmatprep.subr.mxu0 0.0
        %1302 = vmatpush1.msra.mxu0 0.0
        %1303 = vmatprep.subr.mxu0 0.0
        %1304 = vmatpush1.msra.mxu0 0.0
        %1305 = vmatprep.subr.mxu0 0.0
        %1306 = vmatpush1.msra.mxu0 0.0
        %1307 = vmatprep.subr.mxu0 0.0
        %1308 = vmatpush1.msra.mxu0 0.0
        %1309 = vmatprep.subr.mxu0 0.0
        %1310 = vmatpush1.msra.mxu0 0.0
        %1311 = vmatprep.subr.mxu0 0.0
        %1312 = vmatpush1.msra.mxu0 0.0
        %1313 = vmatprep.subr.mxu0 0.0
        %1314 = vmatpush1.msra.mxu0 0.0
        %1315 = vmatprep.subr.mxu0 0.0
        %1316 = vmatpush1.msra.mxu0 0.0
        %1317 = vmatprep.mubr.f32.mxu0 0.0
        %1318 = vmatmul.mubr.f32.gmra.mrb[0].mxu0 %v1251
        %v1319 = vpop.f32.mrb[0].mxu0
        %v1320 = vadd.f32 %v1248, %v1319
        %v1321 = vpop.f32.mrb[0].mxu0
        %1322 = vdwg.mxu0
        %v1323 = vsub.f32 0.0, %v1320
        %v1324 = vmul.f32 %v1323, 1.442695
        %v1325 = vpow.pop %v1324
        %v1326 = vadd.f32 %v1325, 1.0
        %v1327 = vrcp.pop %v1326
        %v1328 = vmul.f32 %v1320, %v1327
        %v1329 = vld [vmem:[%s47] sm:$0xff]
        %v1330 = vld [vmem:[%s47 + $0x8] sm:$0xff]
        %v1331 = vld [vmem:[%s47 + $0x10] sm:$0xff]
        %v1332 = vld [vmem:[%s47 + $0x18] sm:$0xff]
        %v1333 = vld [vmem:[%s47 + $0x20] sm:$0xff]
        %v1334 = vld [vmem:[%s47 + $0x28] sm:$0xff]
        %v1335 = vld [vmem:[%s47 + $0x30] sm:$0xff]
        %v1336 = vld [vmem:[%s47 + $0x38] sm:$0xff]
        %v1337 = vld [vmem:[%s47 + $0x40] sm:$0xff]
        %v1338 = vld [vmem:[%s47 + $0x48] sm:$0xff]
        %v1339 = vld [vmem:[%s47 + $0x50] sm:$0xff]
        %v1340 = vld [vmem:[%s47 + $0x58] sm:$0xff]
        %v1341 = vld [vmem:[%s47 + $0x60] sm:$0xff]
        %v1342 = vld [vmem:[%s47 + $0x68] sm:$0xff]
        %v1343 = vld [vmem:[%s47 + $0x70] sm:$0xff]
        %v1344 = vld [vmem:[%s47 + $0x78] sm:$0xff]
        %v1345 = vld [vmem:[%s49] sm:$0x1]
        %1346 = vmatprep.subr.mxu0 0.0
        %1347 = vmatpush1.msra.mxu0 %v1329
        %1348 = vmatprep.subr.mxu0 0.0
        %1349 = vmatpush1.msra.mxu0 %v1330
        %1350 = vmatprep.subr.mxu0 0.0
        %1351 = vmatpush1.msra.mxu0 %v1331
        %1352 = vmatprep.subr.mxu0 0.0
        %1353 = vmatpush1.msra.mxu0 %v1332
        %1354 = vmatprep.subr.mxu0 0.0
        %1355 = vmatpush1.msra.mxu0 %v1333
        %1356 = vmatprep.subr.mxu0 0.0
        %1357 = vmatpush1.msra.mxu0 %v1334
        %1358 = vmatprep.subr.mxu0 0.0
        %1359 = vmatpush1.msra.mxu0 %v1335
        %1360 = vmatprep.subr.mxu0 0.0
        %1361 = vmatpush1.msra.mxu0 %v1336
        %1362 = vmatprep.subr.mxu0 0.0
        %1363 = vmatpush1.msra.mxu0 %v1337
        %1364 = vmatprep.subr.mxu0 0.0
        %1365 = vmatpush1.msra.mxu0 %v1338
        %1366 = vmatprep.subr.mxu0 0.0
        %1367 = vmatpush1.msra.mxu0 %v1339
        %1368 = vmatprep.subr.mxu0 0.0
        %1369 = vmatpush1.msra.mxu0 %v1340
        %1370 = vmatprep.subr.mxu0 0.0
        %1371 = vmatpush1.msra.mxu0 %v1341
        %1372 = vmatprep.subr.mxu0 0.0
        %1373 = vmatpush1.msra.mxu0 %v1342
        %1374 = vmatprep.subr.mxu0 0.0
        %1375 = vmatpush1.msra.mxu0 %v1343
        %1376 = vmatprep.subr.mxu0 0.0
        %1377 = vmatpush1.msra.mxu0 %v1344
        %1378 = vmatprep.subr.mxu0 0.0
        %1379 = vmatpush1.msra.mxu0 0.0
        %1380 = vmatprep.subr.mxu0 0.0
        %1381 = vmatpush1.msra.mxu0 0.0
        %1382 = vmatprep.subr.mxu0 0.0
        %1383 = vmatpush1.msra.mxu0 0.0
        %1384 = vmatprep.subr.mxu0 0.0
        %1385 = vmatpush1.msra.mxu0 0.0
        %1386 = vmatprep.subr.mxu0 0.0
        %1387 = vmatpush1.msra.mxu0 0.0
        %1388 = vmatprep.subr.mxu0 0.0
        %1389 = vmatpush1.msra.mxu0 0.0
        %1390 = vmatprep.subr.mxu0 0.0
        %1391 = vmatpush1.msra.mxu0 0.0
        %1392 = vmatprep.subr.mxu0 0.0
        %1393 = vmatpush1.msra.mxu0 0.0
        %1394 = vmatprep.subr.mxu0 0.0
        %1395 = vmatpush1.msra.mxu0 0.0
        %1396 = vmatprep.subr.mxu0 0.0
        %1397 = vmatpush1.msra.mxu0 0.0
        %1398 = vmatprep.subr.mxu0 0.0
        %1399 = vmatpush1.msra.mxu0 0.0
        %1400 = vmatprep.subr.mxu0 0.0
        %1401 = vmatpush1.msra.mxu0 0.0
        %1402 = vmatprep.subr.mxu0 0.0
        %1403 = vmatpush1.msra.mxu0 0.0
        %1404 = vmatprep.subr.mxu0 0.0
        %1405 = vmatpush1.msra.mxu0 0.0
        %1406 = vmatprep.subr.mxu0 0.0
        %1407 = vmatpush1.msra.mxu0 0.0
        %1408 = vmatprep.subr.mxu0 0.0
        %1409 = vmatpush1.msra.mxu0 0.0
        %1410 = vmatprep.mubr.f32.mxu0 0.0
        %1411 = vmatmul.mubr.f32.gmra.mrb[0].mxu0 %v1328
        %v1412 = vpop.f32.mrb[0].mxu0
        %v1413 = vadd.f32 %v1345, %v1412
        %v1414 = vpop.f32.mrb[0].mxu0
        %1415 = vdwg.mxu0
        %v1416 = vld [vmem:[%s51] sm:$0xff]
        %v1417 = vld [vmem:[%s51 + $0x8] sm:$0xff]
        %v1418 = vld [vmem:[%s51 + $0x10] sm:$0xff]
        %v1419 = vld [vmem:[%s51 + $0x18] sm:$0xff]
        %v1420 = vld [vmem:[%s51 + $0x20] sm:$0xff]
        %v1421 = vld [vmem:[%s51 + $0x28] sm:$0xff]
        %v1422 = vld [vmem:[%s51 + $0x30] sm:$0xff]
        %v1423 = vld [vmem:[%s51 + $0x38] sm:$0xff]
        %v1424 = vld [vmem:[%s51 + $0x40] sm:$0xff]
        %v1425 = vld [vmem:[%s51 + $0x48] sm:$0xff]
        %v1426 = vld [vmem:[%s51 + $0x50] sm:$0xff]
        %v1427 = vld [vmem:[%s51 + $0x58] sm:$0xff]
        %v1428 = vld [vmem:[%s51 + $0x60] sm:$0xff]
        %v1429 = vld [vmem:[%s51 + $0x68] sm:$0xff]
        %v1430 = vld [vmem:[%s51 + $0x70] sm:$0xff]
        %v1431 = vld [vmem:[%s51 + $0x78] sm:$0xff]
        %v1432 = vld [vmem:[%s53] sm:$0x1]
        %1433 = vmatprep.subr.mxu0 0.0
        %1434 = vmatpush1.msra.mxu0 %v1416
        %1435 = vmatprep.subr.mxu0 0.0
        %1436 = vmatpush1.msra.mxu0 %v1417
        %1437 = vmatprep.subr.mxu0 0.0
        %1438 = vmatpush1.msra.mxu0 %v1418
        %1439 = vmatprep.subr.mxu0 0.0
        %1440 = vmatpush1.msra.mxu0 %v1419
        %1441 = vmatprep.subr.mxu0 0.0
        %1442 = vmatpush1.msra.mxu0 %v1420
        %1443 = vmatprep.subr.mxu0 0.0
        %1444 = vmatpush1.msra.mxu0 %v1421
        %1445 = vmatprep.subr.mxu0 0.0
        %1446 = vmatpush1.msra.mxu0 %v1422
        %1447 = vmatprep.subr.mxu0 0.0
        %1448 = vmatpush1.msra.mxu0 %v1423
        %1449 = vmatprep.subr.mxu0 0.0
        %1450 = vmatpush1.msra.mxu0 %v1424
        %1451 = vmatprep.subr.mxu0 0.0
        %1452 = vmatpush1.msra.mxu0 %v1425
        %1453 = vmatprep.subr.mxu0 0.0
        %1454 = vmatpush1.msra.mxu0 %v1426
        %1455 = vmatprep.subr.mxu0 0.0
        %1456 = vmatpush1.msra.mxu0 %v1427
        %1457 = vmatprep.subr.mxu0 0.0
        %1458 = vmatpush1.msra.mxu0 %v1428
        %1459 = vmatprep.subr.mxu0 0.0
        %1460 = vmatpush1.msra.mxu0 %v1429
        %1461 = vmatprep.subr.mxu0 0.0
        %1462 = vmatpush1.msra.mxu0 %v1430
        %1463 = vmatprep.subr.mxu0 0.0
        %1464 = vmatpush1.msra.mxu0 %v1431
        %1465 = vmatprep.subr.mxu0 0.0
        %1466 = vmatpush1.msra.mxu0 0.0
        %1467 = vmatprep.subr.mxu0 0.0
        %1468 = vmatpush1.msra.mxu0 0.0
        %1469 = vmatprep.subr.mxu0 0.0
        %1470 = vmatpush1.msra.mxu0 0.0
        %1471 = vmatprep.subr.mxu0 0.0
        %1472 = vmatpush1.msra.mxu0 0.0
        %1473 = vmatprep.subr.mxu0 0.0
        %1474 = vmatpush1.msra.mxu0 0.0
        %1475 = vmatprep.subr.mxu0 0.0
        %1476 = vmatpush1.msra.mxu0 0.0
        %1477 = vmatprep.subr.mxu0 0.0
        %1478 = vmatpush1.msra.mxu0 0.0
        %1479 = vmatprep.subr.mxu0 0.0
        %1480 = vmatpush1.msra.mxu0 0.0
        %1481 = vmatprep.subr.mxu0 0.0
        %1482 = vmatpush1.msra.mxu0 0.0
        %1483 = vmatprep.subr.mxu0 0.0
        %1484 = vmatpush1.msra.mxu0 0.0
        %1485 = vmatprep.subr.mxu0 0.0
        %1486 = vmatpush1.msra.mxu0 0.0
        %1487 = vmatprep.subr.mxu0 0.0
        %1488 = vmatpush1.msra.mxu0 0.0
        %1489 = vmatprep.subr.mxu0 0.0
        %1490 = vmatpush1.msra.mxu0 0.0
        %1491 = vmatprep.subr.mxu0 0.0
        %1492 = vmatpush1.msra.mxu0 0.0
        %1493 = vmatprep.subr.mxu0 0.0
        %1494 = vmatpush1.msra.mxu0 0.0
        %1495 = vmatprep.subr.mxu0 0.0
        %1496 = vmatpush1.msra.mxu0 0.0
        %1497 = vmatprep.mubr.f32.mxu0 0.0
        %1498 = vmatmul.mubr.f32.gmra.mrb[0].mxu0 %v1328
        %v1499 = vpop.f32.mrb[0].mxu0
        %v1500 = vadd.f32 %v1432, %v1499
        %v1501 = vpop.f32.mrb[0].mxu0
        %1502 = vdwg.mxu0
        %vm1503 = vcmask 261120
        %1504 = vst.msk [vmem:[#allocation2] sm:$0xff] %vm1503, 0.0
        %1505 = vst.msk [vmem:[#allocation2 + $0x8] sm:$0xff] %vm1503, 0.0
        %vm1506 = vcmask 254976
        %1507 = vst.msk [vmem:[#allocation2 + $0x10] sm:$0x3] %vm1506, 0.0
        %1508 = vst.msk [vmem:[#allocation3] sm:$0xff] %vm1249, 0.0
        %1509 = vst.msk [vmem:[#allocation3 + $0x8] sm:$0xff] %vm1249, 0.0
        %vm1510 = vcmask 58368
        %1511 = vst.msk [vmem:[#allocation3 + $0x10] sm:$0x3] %vm1510, 0.0
        %v1512 = vld [vmem:[%s976] sm:$0xff]
        %v1513 = vld [vmem:[%s976 + $0x8] sm:$0xff]
        %1514 = vst.msk [vmem:[#allocation2 + $0x1] sm:$0xff] %vm1503, %v1512
        %1515 = vst.msk [vmem:[#allocation2 + $0x9] sm:$0xff] %vm1503, %v1513
        %v1516 = vld [vmem:[%s981] sm:$0xff]
        %v1517 = vld [vmem:[%s981 + $0x8] sm:$0xff]
        %1518 = vst.msk [vmem:[#allocation3 + $0x1] sm:$0xff] %vm1249, %v1516
        %1519 = vst.msk [vmem:[#allocation3 + $0x9] sm:$0xff] %vm1249, %v1517
        %v1520 = vld [vmem:[#allocation2] sm:$0xff]
        %v1521 = vld [vmem:[#allocation2 + $0x8] sm:$0xff]
        %v1522 = vld [vmem:[%s9] sm:$0xff]
        %v1523 = vld [vmem:[%s9 + $0x8] sm:$0xff]
        %v1524 = vld [vmem:[%s9 + $0x10] sm:$0xff]
        %v1525 = vld [vmem:[%s9 + $0x18] sm:$0xff]
        %v1526 = vld [vmem:[#allocation3] sm:$0xff]
        %v1527 = vld [vmem:[#allocation3 + $0x8] sm:$0xff]
        %v1528 = vld [vmem:[%s11] sm:$0xff]
        %v1530 = vsel %vm1249, %v1526, 0
        %v1533 = vsel %vm1249, %v1527, 0
        %1535 = vmatprep.subr.mxu0 0.0
        %1536 = vmatpush1.msra.mxu0 %v1528
        %1537 = vmatprep.subr.mxu0 0.0
        %1538 = vmatpush1.msra.mxu0 0.0
        %1539 = vmatprep.subr.mxu0 0.0
        %1540 = vmatpush1.msra.mxu0 0.0
        %1541 = vmatprep.subr.mxu0 0.0
        %1542 = vmatpush1.msra.mxu0 0.0
        %1543 = vmatprep.subr.mxu0 0.0
        %1544 = vmatpush1.msra.mxu0 0.0
        %1545 = vmatprep.subr.mxu0 0.0
        %1546 = vmatpush1.msra.mxu0 0.0
        %1547 = vmatprep.subr.mxu0 0.0
        %1548 = vmatpush1.msra.mxu0 0.0
        %1549 = vmatprep.subr.mxu0 0.0
        %1550 = vmatpush1.msra.mxu0 0.0
        %1551 = vmatprep.subr.mxu0 0.0
        %1552 = vmatpush1.msra.mxu0 0.0
        %1553 = vmatprep.subr.mxu0 0.0
        %1554 = vmatpush1.msra.mxu0 0.0
        %1555 = vmatprep.subr.mxu0 0.0
        %1556 = vmatpush1.msra.mxu0 0.0
        %1557 = vmatprep.subr.mxu0 0.0
        %1558 = vmatpush1.msra.mxu0 0.0
        %1559 = vmatprep.subr.mxu0 0.0
        %1560 = vmatpush1.msra.mxu0 0.0
        %1561 = vmatprep.subr.mxu0 0.0
        %1562 = vmatpush1.msra.mxu0 0.0
        %1563 = vmatprep.subr.mxu0 0.0
        %1564 = vmatpush1.msra.mxu0 0.0
        %1565 = vmatprep.subr.mxu0 0.0
        %1566 = vmatpush1.msra.mxu0 0.0
        %1567 = vmatprep.subr.mxu0 0.0
        %1568 = vmatpush1.msra.mxu0 0.0
        %1569 = vmatprep.subr.mxu0 0.0
        %1570 = vmatpush1.msra.mxu0 0.0
        %1571 = vmatprep.subr.mxu0 0.0
        %1572 = vmatpush1.msra.mxu0 0.0
        %1573 = vmatprep.subr.mxu0 0.0
        %1574 = vmatpush1.msra.mxu0 0.0
        %1575 = vmatprep.subr.mxu0 0.0
        %1576 = vmatpush1.msra.mxu0 0.0
        %1577 = vmatprep.subr.mxu0 0.0
        %1578 = vmatpush1.msra.mxu0 0.0
        %1579 = vmatprep.subr.mxu0 0.0
        %1580 = vmatpush1.msra.mxu0 0.0
        %1581 = vmatprep.subr.mxu0 0.0
        %1582 = vmatpush1.msra.mxu0 0.0
        %1583 = vmatprep.subr.mxu0 0.0
        %1584 = vmatpush1.msra.mxu0 0.0
        %1585 = vmatprep.subr.mxu0 0.0
        %1586 = vmatpush1.msra.mxu0 0.0
        %1587 = vmatprep.subr.mxu0 0.0
        %1588 = vmatpush1.msra.mxu0 0.0
        %1589 = vmatprep.subr.mxu0 0.0
        %1590 = vmatpush1.msra.mxu0 0.0
        %1591 = vmatprep.subr.mxu0 0.0
        %1592 = vmatpush1.msra.mxu0 0.0
        %1593 = vmatprep.subr.mxu0 0.0
        %1594 = vmatpush1.msra.mxu0 0.0
        %1595 = vmatprep.subr.mxu0 0.0
        %1596 = vmatpush1.msra.mxu0 0.0
        %1597 = vmatprep.subr.mxu0 0.0
        %1598 = vmatpush1.msra.mxu0 0.0
        %1599 = vmatprep.mubr.f32.mxu0 0.0
        %1600 = vmatmul.mubr.f32.gmra.mrb[0].mxu0 %v1530
        %v1601 = vpop.f32.mrb[0].mxu0
        %v1602 = vadd.f32 0.0, %v1601
        %v1603 = vpop.f32.mrb[0].mxu0
        %1604 = vmatprep.mubr.f32.mxu0 0.0
        %1605 = vmatmul.mubr.f32.gmra.mrb[0].mxu0 %v1533
        %v1606 = vpop.f32.mrb[0].mxu0
        %v1607 = vadd.f32 0.0, %v1606
        %v1608 = vpop.f32.mrb[0].mxu0
        %1609 = vdwg.mxu0
        %v1611 = vsel %vm1503, %v1520, 0
        %v1614 = vsel %vm1503, %v1521, 0
        %1616 = vmatprep.subr.mxu0 0.0
        %1617 = vmatpush1.msra.mxu0 %v1522
        %1618 = vmatprep.subr.mxu0 0.0
        %1619 = vmatpush1.msra.mxu0 %v1523
        %1620 = vmatprep.subr.mxu0 0.0
        %1621 = vmatpush1.msra.mxu0 %v1524
        %1622 = vmatprep.subr.mxu0 0.0
        %1623 = vmatpush1.msra.mxu0 %v1525
        %1624 = vmatprep.subr.mxu0 0.0
        %1625 = vmatpush1.msra.mxu0 0.0
        %1626 = vmatprep.subr.mxu0 0.0
        %1627 = vmatpush1.msra.mxu0 0.0
        %1628 = vmatprep.subr.mxu0 0.0
        %1629 = vmatpush1.msra.mxu0 0.0
        %1630 = vmatprep.subr.mxu0 0.0
        %1631 = vmatpush1.msra.mxu0 0.0
        %1632 = vmatprep.subr.mxu0 0.0
        %1633 = vmatpush1.msra.mxu0 0.0
        %1634 = vmatprep.subr.mxu0 0.0
        %1635 = vmatpush1.msra.mxu0 0.0
        %1636 = vmatprep.subr.mxu0 0.0
        %1637 = vmatpush1.msra.mxu0 0.0
        %1638 = vmatprep.subr.mxu0 0.0
        %1639 = vmatpush1.msra.mxu0 0.0
        %1640 = vmatprep.subr.mxu0 0.0
        %1641 = vmatpush1.msra.mxu0 0.0
        %1642 = vmatprep.subr.mxu0 0.0
        %1643 = vmatpush1.msra.mxu0 0.0
        %1644 = vmatprep.subr.mxu0 0.0
        %1645 = vmatpush1.msra.mxu0 0.0
        %1646 = vmatprep.subr.mxu0 0.0
        %1647 = vmatpush1.msra.mxu0 0.0
        %1648 = vmatprep.subr.mxu0 0.0
        %1649 = vmatpush1.msra.mxu0 0.0
        %1650 = vmatprep.subr.mxu0 0.0
        %1651 = vmatpush1.msra.mxu0 0.0
        %1652 = vmatprep.subr.mxu0 0.0
        %1653 = vmatpush1.msra.mxu0 0.0
        %1654 = vmatprep.subr.mxu0 0.0
        %1655 = vmatpush1.msra.mxu0 0.0
        %1656 = vmatprep.subr.mxu0 0.0
        %1657 = vmatpush1.msra.mxu0 0.0
        %1658 = vmatprep.subr.mxu0 0.0
        %1659 = vmatpush1.msra.mxu0 0.0
        %1660 = vmatprep.subr.mxu0 0.0
        %1661 = vmatpush1.msra.mxu0 0.0
        %1662 = vmatprep.subr.mxu0 0.0
        %1663 = vmatpush1.msra.mxu0 0.0
        %1664 = vmatprep.subr.mxu0 0.0
        %1665 = vmatpush1.msra.mxu0 0.0
        %1666 = vmatprep.subr.mxu0 0.0
        %1667 = vmatpush1.msra.mxu0 0.0
        %1668 = vmatprep.subr.mxu0 0.0
        %1669 = vmatpush1.msra.mxu0 0.0
        %1670 = vmatprep.subr.mxu0 0.0
        %1671 = vmatpush1.msra.mxu0 0.0
        %1672 = vmatprep.subr.mxu0 0.0
        %1673 = vmatpush1.msra.mxu0 0.0
        %1674 = vmatprep.subr.mxu0 0.0
        %1675 = vmatpush1.msra.mxu0 0.0
        %1676 = vmatprep.subr.mxu0 0.0
        %1677 = vmatpush1.msra.mxu0 0.0
        %1678 = vmatprep.subr.mxu0 0.0
        %1679 = vmatpush1.msra.mxu0 0.0
        %1680 = vmatprep.mubr.f32.mxu0 0.0
        %1681 = vmatmul.mubr.f32.gmra.mrb[0].mxu0 %v1611
        %v1682 = vpop.f32.mrb[0].mxu0
        %v1683 = vadd.f32 %v1602, %v1682
        %v1684 = vpop.f32.mrb[0].mxu0
        %1685 = vmatprep.mubr.f32.mxu0 0.0
        %1686 = vmatmul.mubr.f32.gmra.mrb[0].mxu0 %v1614
        %v1687 = vpop.f32.mrb[0].mxu0
        %v1688 = vadd.f32 %v1607, %v1687
        %v1689 = vpop.f32.mrb[0].mxu0
        %1690 = vdwg.mxu0
        %v1691 = vld [vmem:[#allocation2 + $0x1] sm:$0xff]
        %v1692 = vld [vmem:[#allocation2 + $0x9] sm:$0xff]
        %s1693 = scalar_lea.vmem %s9, 32
        %v1694 = vld [vmem:[%s1693] sm:$0xff]
        %v1695 = vld [vmem:[%s1693 + $0x8] sm:$0xff]
        %v1696 = vld [vmem:[%s1693 + $0x10] sm:$0xff]
        %v1697 = vld [vmem:[%s1693 + $0x18] sm:$0xff]
        %v1699 = vsel %vm1503, %v1691, 0
        %v1702 = vsel %vm1503, %v1692, 0
        %1704 = vmatprep.subr.mxu0 0.0
        %1705 = vmatpush1.msra.mxu0 %v1694
        %1706 = vmatprep.subr.mxu0 0.0
        %1707 = vmatpush1.msra.mxu0 %v1695
        %1708 = vmatprep.subr.mxu0 0.0
        %1709 = vmatpush1.msra.mxu0 %v1696
        %1710 = vmatprep.subr.mxu0 0.0
        %1711 = vmatpush1.msra.mxu0 %v1697
        %1712 = vmatprep.subr.mxu0 0.0
        %1713 = vmatpush1.msra.mxu0 0.0
        %1714 = vmatprep.subr.mxu0 0.0
        %1715 = vmatpush1.msra.mxu0 0.0
        %1716 = vmatprep.subr.mxu0 0.0
        %1717 = vmatpush1.msra.mxu0 0.0
        %1718 = vmatprep.subr.mxu0 0.0
        %1719 = vmatpush1.msra.mxu0 0.0
        %1720 = vmatprep.subr.mxu0 0.0
        %1721 = vmatpush1.msra.mxu0 0.0
        %1722 = vmatprep.subr.mxu0 0.0
        %1723 = vmatpush1.msra.mxu0 0.0
        %1724 = vmatprep.subr.mxu0 0.0
        %1725 = vmatpush1.msra.mxu0 0.0
        %1726 = vmatprep.subr.mxu0 0.0
        %1727 = vmatpush1.msra.mxu0 0.0
        %1728 = vmatprep.subr.mxu0 0.0
        %1729 = vmatpush1.msra.mxu0 0.0
        %1730 = vmatprep.subr.mxu0 0.0
        %1731 = vmatpush1.msra.mxu0 0.0
        %1732 = vmatprep.subr.mxu0 0.0
        %1733 = vmatpush1.msra.mxu0 0.0
        %1734 = vmatprep.subr.mxu0 0.0
        %1735 = vmatpush1.msra.mxu0 0.0
        %1736 = vmatprep.subr.mxu0 0.0
        %1737 = vmatpush1.msra.mxu0 0.0
        %1738 = vmatprep.subr.mxu0 0.0
        %1739 = vmatpush1.msra.mxu0 0.0
        %1740 = vmatprep.subr.mxu0 0.0
        %1741 = vmatpush1.msra.mxu0 0.0
        %1742 = vmatprep.subr.mxu0 0.0
        %1743 = vmatpush1.msra.mxu0 0.0
        %1744 = vmatprep.subr.mxu0 0.0
        %1745 = vmatpush1.msra.mxu0 0.0
        %1746 = vmatprep.subr.mxu0 0.0
        %1747 = vmatpush1.msra.mxu0 0.0
        %1748 = vmatprep.subr.mxu0 0.0
        %1749 = vmatpush1.msra.mxu0 0.0
        %1750 = vmatprep.subr.mxu0 0.0
        %1751 = vmatpush1.msra.mxu0 0.0
        %1752 = vmatprep.subr.mxu0 0.0
        %1753 = vmatpush1.msra.mxu0 0.0
        %1754 = vmatprep.subr.mxu0 0.0
        %1755 = vmatpush1.msra.mxu0 0.0
        %1756 = vmatprep.subr.mxu0 0.0
        %1757 = vmatpush1.msra.mxu0 0.0
        %1758 = vmatprep.subr.mxu0 0.0
        %1759 = vmatpush1.msra.mxu0 0.0
        %1760 = vmatprep.subr.mxu0 0.0
        %1761 = vmatpush1.msra.mxu0 0.0
        %1762 = vmatprep.subr.mxu0 0.0
        %1763 = vmatpush1.msra.mxu0 0.0
        %1764 = vmatprep.subr.mxu0 0.0
        %1765 = vmatpush1.msra.mxu0 0.0
        %1766 = vmatprep.subr.mxu0 0.0
        %1767 = vmatpush1.msra.mxu0 0.0
        %1768 = vmatprep.mubr.f32.mxu0 0.0
        %1769 = vmatmul.mubr.f32.gmra.mrb[0].mxu0 %v1699
        %v1770 = vpop.f32.mrb[0].mxu0
        %v1771 = vadd.f32 0.0, %v1770
        %v1772 = vpop.f32.mrb[0].mxu0
        %1773 = vmatprep.mubr.f32.mxu0 0.0
        %1774 = vmatmul.mubr.f32.gmra.mrb[0].mxu0 %v1702
        %v1775 = vpop.f32.mrb[0].mxu0
        %v1776 = vadd.f32 0.0, %v1775
        %v1777 = vpop.f32.mrb[0].mxu0
        %1778 = vdwg.mxu0
        %v1779 = vadd.f32 %v1683, %v1771
        %v1780 = vadd.f32 %v1688, %v1776
        %v1781 = vld [vmem:[#allocation3 + $0x1] sm:$0xff]
        %v1782 = vld [vmem:[#allocation3 + $0x9] sm:$0xff]
        %s1783 = scalar_lea.vmem %s11, 8
        %v1784 = vld [vmem:[%s1783] sm:$0xff]
        %v1786 = vsel %vm1249, %v1781, 0
        %v1789 = vsel %vm1249, %v1782, 0
        %1791 = vmatprep.subr.mxu0 0.0
        %1792 = vmatpush1.msra.mxu0 %v1784
        %1793 = vmatprep.subr.mxu0 0.0
        %1794 = vmatpush1.msra.mxu0 0.0
        %1795 = vmatprep.subr.mxu0 0.0
        %1796 = vmatpush1.msra.mxu0 0.0
        %1797 = vmatprep.subr.mxu0 0.0
        %1798 = vmatpush1.msra.mxu0 0.0
        %1799 = vmatprep.subr.mxu0 0.0
        %1800 = vmatpush1.msra.mxu0 0.0
        %1801 = vmatprep.subr.mxu0 0.0
        %1802 = vmatpush1.msra.mxu0 0.0
        %1803 = vmatprep.subr.mxu0 0.0
        %1804 = vmatpush1.msra.mxu0 0.0
        %1805 = vmatprep.subr.mxu0 0.0
        %1806 = vmatpush1.msra.mxu0 0.0
        %1807 = vmatprep.subr.mxu0 0.0
        %1808 = vmatpush1.msra.mxu0 0.0
        %1809 = vmatprep.subr.mxu0 0.0
        %1810 = vmatpush1.msra.mxu0 0.0
        %1811 = vmatprep.subr.mxu0 0.0
        %1812 = vmatpush1.msra.mxu0 0.0
        %1813 = vmatprep.subr.mxu0 0.0
        %1814 = vmatpush1.msra.mxu0 0.0
        %1815 = vmatprep.subr.mxu0 0.0
        %1816 = vmatpush1.msra.mxu0 0.0
        %1817 = vmatprep.subr.mxu0 0.0
        %1818 = vmatpush1.msra.mxu0 0.0
        %1819 = vmatprep.subr.mxu0 0.0
        %1820 = vmatpush1.msra.mxu0 0.0
        %1821 = vmatprep.subr.mxu0 0.0
        %1822 = vmatpush1.msra.mxu0 0.0
        %1823 = vmatprep.subr.mxu0 0.0
        %1824 = vmatpush1.msra.mxu0 0.0
        %1825 = vmatprep.subr.mxu0 0.0
        %1826 = vmatpush1.msra.mxu0 0.0
        %1827 = vmatprep.subr.mxu0 0.0
        %1828 = vmatpush1.msra.mxu0 0.0
        %1829 = vmatprep.subr.mxu0 0.0
        %1830 = vmatpush1.msra.mxu0 0.0
        %1831 = vmatprep.subr.mxu0 0.0
        %1832 = vmatpush1.msra.mxu0 0.0
        %1833 = vmatprep.subr.mxu0 0.0
        %1834 = vmatpush1.msra.mxu0 0.0
        %1835 = vmatprep.subr.mxu0 0.0
        %1836 = vmatpush1.msra.mxu0 0.0
        %1837 = vmatprep.subr.mxu0 0.0
        %1838 = vmatpush1.msra.mxu0 0.0
        %1839 = vmatprep.subr.mxu0 0.0
        %1840 = vmatpush1.msra.mxu0 0.0
        %1841 = vmatprep.subr.mxu0 0.0
        %1842 = vmatpush1.msra.mxu0 0.0
        %1843 = vmatprep.subr.mxu0 0.0
        %1844 = vmatpush1.msra.mxu0 0.0
        %1845 = vmatprep.subr.mxu0 0.0
        %1846 = vmatpush1.msra.mxu0 0.0
        %1847 = vmatprep.subr.mxu0 0.0
        %1848 = vmatpush1.msra.mxu0 0.0
        %1849 = vmatprep.subr.mxu0 0.0
        %1850 = vmatpush1.msra.mxu0 0.0
        %1851 = vmatprep.subr.mxu0 0.0
        %1852 = vmatpush1.msra.mxu0 0.0
        %1853 = vmatprep.subr.mxu0 0.0
        %1854 = vmatpush1.msra.mxu0 0.0
        %1855 = vmatprep.mubr.f32.mxu0 0.0
        %1856 = vmatmul.mubr.f32.gmra.mrb[0].mxu0 %v1786
        %v1857 = vpop.f32.mrb[0].mxu0
        %v1858 = vadd.f32 0.0, %v1857
        %v1859 = vpop.f32.mrb[0].mxu0
        %1860 = vmatprep.mubr.f32.mxu0 0.0
        %1861 = vmatmul.mubr.f32.gmra.mrb[0].mxu0 %v1789
        %v1862 = vpop.f32.mrb[0].mxu0
        %v1863 = vadd.f32 0.0, %v1862
        %v1864 = vpop.f32.mrb[0].mxu0
        %1865 = vdwg.mxu0
        %v1866 = vadd.f32 %v1779, %v1858
        %v1867 = vadd.f32 %v1780, %v1863
        %v1868 = vld [vmem:[#allocation2 + $0x2] sm:$0xff]
        %v1869 = vld [vmem:[#allocation2 + $0xa] sm:$0xff]
        %s1870 = scalar_lea.vmem %s9, 64
        %v1871 = vld [vmem:[%s1870] sm:$0xff]
        %v1872 = vld [vmem:[%s1870 + $0x8] sm:$0xff]
        %v1873 = vld [vmem:[%s1870 + $0x10] sm:$0xff]
        %v1874 = vld [vmem:[%s1870 + $0x18] sm:$0xff]
        %v1876 = vsel %vm1503, %v1868, 0
        %v1879 = vsel %vm1503, %v1869, 0
        %1881 = vmatprep.subr.mxu0 0.0
        %1882 = vmatpush1.msra.mxu0 %v1871
        %1883 = vmatprep.subr.mxu0 0.0
        %1884 = vmatpush1.msra.mxu0 %v1872
        %1885 = vmatprep.subr.mxu0 0.0
        %1886 = vmatpush1.msra.mxu0 %v1873
        %1887 = vmatprep.subr.mxu0 0.0
        %1888 = vmatpush1.msra.mxu0 %v1874
        %1889 = vmatprep.subr.mxu0 0.0
        %1890 = vmatpush1.msra.mxu0 0.0
        %1891 = vmatprep.subr.mxu0 0.0
        %1892 = vmatpush1.msra.mxu0 0.0
        %1893 = vmatprep.subr.mxu0 0.0
        %1894 = vmatpush1.msra.mxu0 0.0
        %1895 = vmatprep.subr.mxu0 0.0
        %1896 = vmatpush1.msra.mxu0 0.0
        %1897 = vmatprep.subr.mxu0 0.0
        %1898 = vmatpush1.msra.mxu0 0.0
        %1899 = vmatprep.subr.mxu0 0.0
        %1900 = vmatpush1.msra.mxu0 0.0
        %1901 = vmatprep.subr.mxu0 0.0
        %1902 = vmatpush1.msra.mxu0 0.0
        %1903 = vmatprep.subr.mxu0 0.0
        %1904 = vmatpush1.msra.mxu0 0.0
        %1905 = vmatprep.subr.mxu0 0.0
        %1906 = vmatpush1.msra.mxu0 0.0
        %1907 = vmatprep.subr.mxu0 0.0
        %1908 = vmatpush1.msra.mxu0 0.0
        %1909 = vmatprep.subr.mxu0 0.0
        %1910 = vmatpush1.msra.mxu0 0.0
        %1911 = vmatprep.subr.mxu0 0.0
        %1912 = vmatpush1.msra.mxu0 0.0
        %1913 = vmatprep.subr.mxu0 0.0
        %1914 = vmatpush1.msra.mxu0 0.0
        %1915 = vmatprep.subr.mxu0 0.0
        %1916 = vmatpush1.msra.mxu0 0.0
        %1917 = vmatprep.subr.mxu0 0.0
        %1918 = vmatpush1.msra.mxu0 0.0
        %1919 = vmatprep.subr.mxu0 0.0
        %1920 = vmatpush1.msra.mxu0 0.0
        %1921 = vmatprep.subr.mxu0 0.0
        %1922 = vmatpush1.msra.mxu0 0.0
        %1923 = vmatprep.subr.mxu0 0.0
        %1924 = vmatpush1.msra.mxu0 0.0
        %1925 = vmatprep.subr.mxu0 0.0
        %1926 = vmatpush1.msra.mxu0 0.0
        %1927 = vmatprep.subr.mxu0 0.0
        %1928 = vmatpush1.msra.mxu0 0.0
        %1929 = vmatprep.subr.mxu0 0.0
        %1930 = vmatpush1.msra.mxu0 0.0
        %1931 = vmatprep.subr.mxu0 0.0
        %1932 = vmatpush1.msra.mxu0 0.0
        %1933 = vmatprep.subr.mxu0 0.0
        %1934 = vmatpush1.msra.mxu0 0.0
        %1935 = vmatprep.subr.mxu0 0.0
        %1936 = vmatpush1.msra.mxu0 0.0
        %1937 = vmatprep.subr.mxu0 0.0
        %1938 = vmatpush1.msra.mxu0 0.0
        %1939 = vmatprep.subr.mxu0 0.0
        %1940 = vmatpush1.msra.mxu0 0.0
        %1941 = vmatprep.subr.mxu0 0.0
        %1942 = vmatpush1.msra.mxu0 0.0
        %1943 = vmatprep.subr.mxu0 0.0
        %1944 = vmatpush1.msra.mxu0 0.0
        %1945 = vmatprep.mubr.f32.mxu0 0.0
        %1946 = vmatmul.mubr.f32.gmra.mrb[0].mxu0 %v1876
        %v1947 = vpop.f32.mrb[0].mxu0
        %v1948 = vadd.f32 0.0, %v1947
        %v1949 = vpop.f32.mrb[0].mxu0
        %1950 = vmatprep.mubr.f32.mxu0 0.0
        %1951 = vmatmul.mubr.f32.gmra.mrb[0].mxu0 %v1879
        %v1952 = vpop.f32.mrb[0].mxu0
        %v1953 = vadd.f32 0.0, %v1952
        %v1954 = vpop.f32.mrb[0].mxu0
        %1955 = vdwg.mxu0
        %v1956 = vadd.f32 %v1866, %v1948
        %v1957 = vadd.f32 %v1867, %v1953
        %v1958 = vld [vmem:[#allocation3 + $0x2] sm:$0xff]
        %v1959 = vld [vmem:[#allocation3 + $0xa] sm:$0xff]
        %s1960 = scalar_lea.vmem %s11, 16
        %v1961 = vld [vmem:[%s1960] sm:$0xff]
        %v1963 = vsel %vm1249, %v1958, 0
        %v1966 = vsel %vm1249, %v1959, 0
        %1968 = vmatprep.subr.mxu0 0.0
        %1969 = vmatpush1.msra.mxu0 %v1961
        %1970 = vmatprep.subr.mxu0 0.0
        %1971 = vmatpush1.msra.mxu0 0.0
        %1972 = vmatprep.subr.mxu0 0.0
        %1973 = vmatpush1.msra.mxu0 0.0
        %1974 = vmatprep.subr.mxu0 0.0
        %1975 = vmatpush1.msra.mxu0 0.0
        %1976 = vmatprep.subr.mxu0 0.0
        %1977 = vmatpush1.msra.mxu0 0.0
        %1978 = vmatprep.subr.mxu0 0.0
        %1979 = vmatpush1.msra.mxu0 0.0
        %1980 = vmatprep.subr.mxu0 0.0
        %1981 = vmatpush1.msra.mxu0 0.0
        %1982 = vmatprep.subr.mxu0 0.0
        %1983 = vmatpush1.msra.mxu0 0.0
        %1984 = vmatprep.subr.mxu0 0.0
        %1985 = vmatpush1.msra.mxu0 0.0
        %1986 = vmatprep.subr.mxu0 0.0
        %1987 = vmatpush1.msra.mxu0 0.0
        %1988 = vmatprep.subr.mxu0 0.0
        %1989 = vmatpush1.msra.mxu0 0.0
        %1990 = vmatprep.subr.mxu0 0.0
        %1991 = vmatpush1.msra.mxu0 0.0
        %1992 = vmatprep.subr.mxu0 0.0
        %1993 = vmatpush1.msra.mxu0 0.0
        %1994 = vmatprep.subr.mxu0 0.0
        %1995 = vmatpush1.msra.mxu0 0.0
        %1996 = vmatprep.subr.mxu0 0.0
        %1997 = vmatpush1.msra.mxu0 0.0
        %1998 = vmatprep.subr.mxu0 0.0
        %1999 = vmatpush1.msra.mxu0 0.0
        %2000 = vmatprep.subr.mxu0 0.0
        %2001 = vmatpush1.msra.mxu0 0.0
        %2002 = vmatprep.subr.mxu0 0.0
        %2003 = vmatpush1.msra.mxu0 0.0
        %2004 = vmatprep.subr.mxu0 0.0
        %2005 = vmatpush1.msra.mxu0 0.0
        %2006 = vmatprep.subr.mxu0 0.0
        %2007 = vmatpush1.msra.mxu0 0.0
        %2008 = vmatprep.subr.mxu0 0.0
        %2009 = vmatpush1.msra.mxu0 0.0
        %2010 = vmatprep.subr.mxu0 0.0
        %2011 = vmatpush1.msra.mxu0 0.0
        %2012 = vmatprep.subr.mxu0 0.0
        %2013 = vmatpush1.msra.mxu0 0.0
        %2014 = vmatprep.subr.mxu0 0.0
        %2015 = vmatpush1.msra.mxu0 0.0
        %2016 = vmatprep.subr.mxu0 0.0
        %2017 = vmatpush1.msra.mxu0 0.0
        %2018 = vmatprep.subr.mxu0 0.0
        %2019 = vmatpush1.msra.mxu0 0.0
        %2020 = vmatprep.subr.mxu0 0.0
        %2021 = vmatpush1.msra.mxu0 0.0
        %2022 = vmatprep.subr.mxu0 0.0
        %2023 = vmatpush1.msra.mxu0 0.0
        %2024 = vmatprep.subr.mxu0 0.0
        %2025 = vmatpush1.msra.mxu0 0.0
        %2026 = vmatprep.subr.mxu0 0.0
        %2027 = vmatpush1.msra.mxu0 0.0
        %2028 = vmatprep.subr.mxu0 0.0
        %2029 = vmatpush1.msra.mxu0 0.0
        %2030 = vmatprep.subr.mxu0 0.0
        %2031 = vmatpush1.msra.mxu0 0.0
        %2032 = vmatprep.mubr.f32.mxu0 0.0
        %2033 = vmatmul.mubr.f32.gmra.mrb[0].mxu0 %v1963
        %v2034 = vpop.f32.mrb[0].mxu0
        %v2035 = vadd.f32 0.0, %v2034
        %v2036 = vpop.f32.mrb[0].mxu0
        %2037 = vmatprep.mubr.f32.mxu0 0.0
        %2038 = vmatmul.mubr.f32.gmra.mrb[0].mxu0 %v1966
        %v2039 = vpop.f32.mrb[0].mxu0
        %v2040 = vadd.f32 0.0, %v2039
        %v2041 = vpop.f32.mrb[0].mxu0
        %2042 = vdwg.mxu0
        %v2043 = vadd.f32 %v1956, %v2035
        %v2044 = vadd.f32 %v1957, %v2040
        %v2045 = vld [vmem:[%s13] sm:$0x1]
        %v2047 = vlaneseq
        %v2048 = vshrl.u32 %v2047, 7
        %v2049 = vsub.s32 0, %v2048
        %v2050 = vrot.slane %v2045, %v2049
        %v2052 = vadd.f32 %v2043, %v2050
        %v2053 = vadd.f32 %v2044, %v2050
        %v2054 = vld [vmem:[%s15] sm:$0x1]
        %v2055 = vld [vmem:[%s17] sm:$0x1]
        %v2056 = vld [vmem:[%s27] sm:$0xff]
        %v2057 = vld [vmem:[%s27 + $0x8] sm:$0xff]
        %v2058 = vld [vmem:[%s27 + $0x10] sm:$0xff]
        %v2059 = vld [vmem:[%s27 + $0x18] sm:$0xff]
        %v2060 = vld [vmem:[%s29] sm:$0xff]
        %v2061 = vld [vmem:[%s29 + $0x8] sm:$0xff]
        %v2062 = vsel %vm1503, %v2052, 0.0
        %v2063 = vsel %vm1503, %v2053, 0.0
        %v2064 = vadd.f32 %v2062, %v2063
        %v2065 = vrot.slane %v2064, 4
        %v2066 = vadd.f32 %v2064, %v2065
        %v2067 = vrot.slane %v2066, 2
        %v2068 = vadd.f32 %v2066, %v2067
        %v2069 = vrot.slane %v2068, 1
        %v2070 = vadd.f32 %v2068, %v2069
        %v2072 = vsel %vm1503, %v2070, 0
        %2074 = vmatprep.subr.mxu0 0.0
        %2075 = vmatpush1.msra.mxu0 %v2056
        %2076 = vmatprep.subr.mxu0 0.0
        %2077 = vmatpush1.msra.mxu0 %v2057
        %2078 = vmatprep.subr.mxu0 0.0
        %2079 = vmatpush1.msra.mxu0 %v2058
        %2080 = vmatprep.subr.mxu0 0.0
        %2081 = vmatpush1.msra.mxu0 %v2059
        %2082 = vmatprep.subr.mxu0 0.0
        %2083 = vmatpush1.msra.mxu0 0.0
        %2084 = vmatprep.subr.mxu0 0.0
        %2085 = vmatpush1.msra.mxu0 0.0
        %2086 = vmatprep.subr.mxu0 0.0
        %2087 = vmatpush1.msra.mxu0 0.0
        %2088 = vmatprep.subr.mxu0 0.0
        %2089 = vmatpush1.msra.mxu0 0.0
        %2090 = vmatprep.subr.mxu0 0.0
        %2091 = vmatpush1.msra.mxu0 0.0
        %2092 = vmatprep.subr.mxu0 0.0
        %2093 = vmatpush1.msra.mxu0 0.0
        %2094 = vmatprep.subr.mxu0 0.0
        %2095 = vmatpush1.msra.mxu0 0.0
        %2096 = vmatprep.subr.mxu0 0.0
        %2097 = vmatpush1.msra.mxu0 0.0
        %2098 = vmatprep.subr.mxu0 0.0
        %2099 = vmatpush1.msra.mxu0 0.0
        %2100 = vmatprep.subr.mxu0 0.0
        %2101 = vmatpush1.msra.mxu0 0.0
        %2102 = vmatprep.subr.mxu0 0.0
        %2103 = vmatpush1.msra.mxu0 0.0
        %2104 = vmatprep.subr.mxu0 0.0
        %2105 = vmatpush1.msra.mxu0 0.0
        %2106 = vmatprep.subr.mxu0 0.0
        %2107 = vmatpush1.msra.mxu0 0.0
        %2108 = vmatprep.subr.mxu0 0.0
        %2109 = vmatpush1.msra.mxu0 0.0
        %2110 = vmatprep.subr.mxu0 0.0
        %2111 = vmatpush1.msra.mxu0 0.0
        %2112 = vmatprep.subr.mxu0 0.0
        %2113 = vmatpush1.msra.mxu0 0.0
        %2114 = vmatprep.subr.mxu0 0.0
        %2115 = vmatpush1.msra.mxu0 0.0
        %2116 = vmatprep.subr.mxu0 0.0
        %2117 = vmatpush1.msra.mxu0 0.0
        %2118 = vmatprep.subr.mxu0 0.0
        %2119 = vmatpush1.msra.mxu0 0.0
        %2120 = vmatprep.subr.mxu0 0.0
        %2121 = vmatpush1.msra.mxu0 0.0
        %2122 = vmatprep.subr.mxu0 0.0
        %2123 = vmatpush1.msra.mxu0 0.0
        %2124 = vmatprep.subr.mxu0 0.0
        %2125 = vmatpush1.msra.mxu0 0.0
        %2126 = vmatprep.subr.mxu0 0.0
        %2127 = vmatpush1.msra.mxu0 0.0
        %2128 = vmatprep.subr.mxu0 0.0
        %2129 = vmatpush1.msra.mxu0 0.0
        %2130 = vmatprep.subr.mxu0 0.0
        %2131 = vmatpush1.msra.mxu0 0.0
        %2132 = vmatprep.subr.mxu0 0.0
        %2133 = vmatpush1.msra.mxu0 0.0
        %2134 = vmatprep.subr.mxu0 0.0
        %2135 = vmatpush1.msra.mxu0 0.0
        %2136 = vmatprep.subr.mxu0 0.0
        %2137 = vmatpush1.msra.mxu0 0.0
        %2138 = vmatprep.mubr.f32.mxu0 0.0
        %2139 = vmatmul.mubr.f32.gmra.mrb[0].mxu0 %v2072
        %v2140 = vpop.f32.mrb[0].mxu0
        %v2141 = vadd.f32 0.0, %v2140
        %v2142 = vpop.f32.mrb[0].mxu0
        %2143 = vdwg.mxu0
        %v2144 = vmul.f32 %v2141, 0.03125
        %v2146 = vsel %vm992, %v2144, 0
        %2148 = vmatprep.subr.mxu0 0.0
        %2149 = vmatpush1.msra.mxu0 %v2060
        %2150 = vmatprep.subr.mxu0 0.0
        %2151 = vmatpush1.msra.mxu0 %v2061
        %2152 = vmatprep.subr.mxu0 0.0
        %2153 = vmatpush1.msra.mxu0 0.0
        %2154 = vmatprep.subr.mxu0 0.0
        %2155 = vmatpush1.msra.mxu0 0.0
        %2156 = vmatprep.subr.mxu0 0.0
        %2157 = vmatpush1.msra.mxu0 0.0
        %2158 = vmatprep.subr.mxu0 0.0
        %2159 = vmatpush1.msra.mxu0 0.0
        %2160 = vmatprep.subr.mxu0 0.0
        %2161 = vmatpush1.msra.mxu0 0.0
        %2162 = vmatprep.subr.mxu0 0.0
        %2163 = vmatpush1.msra.mxu0 0.0
        %2164 = vmatprep.subr.mxu0 0.0
        %2165 = vmatpush1.msra.mxu0 0.0
        %2166 = vmatprep.subr.mxu0 0.0
        %2167 = vmatpush1.msra.mxu0 0.0
        %2168 = vmatprep.subr.mxu0 0.0
        %2169 = vmatpush1.msra.mxu0 0.0
        %2170 = vmatprep.subr.mxu0 0.0
        %2171 = vmatpush1.msra.mxu0 0.0
        %2172 = vmatprep.subr.mxu0 0.0
        %2173 = vmatpush1.msra.mxu0 0.0
        %2174 = vmatprep.subr.mxu0 0.0
        %2175 = vmatpush1.msra.mxu0 0.0
        %2176 = vmatprep.subr.mxu0 0.0
        %2177 = vmatpush1.msra.mxu0 0.0
        %2178 = vmatprep.subr.mxu0 0.0
        %2179 = vmatpush1.msra.mxu0 0.0
        %2180 = vmatprep.subr.mxu0 0.0
        %2181 = vmatpush1.msra.mxu0 0.0
        %2182 = vmatprep.subr.mxu0 0.0
        %2183 = vmatpush1.msra.mxu0 0.0
        %2184 = vmatprep.subr.mxu0 0.0
        %2185 = vmatpush1.msra.mxu0 0.0
        %2186 = vmatprep.subr.mxu0 0.0
        %2187 = vmatpush1.msra.mxu0 0.0
        %2188 = vmatprep.subr.mxu0 0.0
        %2189 = vmatpush1.msra.mxu0 0.0
        %2190 = vmatprep.subr.mxu0 0.0
        %2191 = vmatpush1.msra.mxu0 0.0
        %2192 = vmatprep.subr.mxu0 0.0
        %2193 = vmatpush1.msra.mxu0 0.0
        %2194 = vmatprep.subr.mxu0 0.0
        %2195 = vmatpush1.msra.mxu0 0.0
        %2196 = vmatprep.subr.mxu0 0.0
        %2197 = vmatpush1.msra.mxu0 0.0
        %2198 = vmatprep.subr.mxu0 0.0
        %2199 = vmatpush1.msra.mxu0 0.0
        %2200 = vmatprep.subr.mxu0 0.0
        %2201 = vmatpush1.msra.mxu0 0.0
        %2202 = vmatprep.subr.mxu0 0.0
        %2203 = vmatpush1.msra.mxu0 0.0
        %2204 = vmatprep.subr.mxu0 0.0
        %2205 = vmatpush1.msra.mxu0 0.0
        %2206 = vmatprep.subr.mxu0 0.0
        %2207 = vmatpush1.msra.mxu0 0.0
        %2208 = vmatprep.subr.mxu0 0.0
        %2209 = vmatpush1.msra.mxu0 0.0
        %2210 = vmatprep.subr.mxu0 0.0
        %2211 = vmatpush1.msra.mxu0 0.0
        %2212 = vmatprep.mubr.f32.mxu0 0.0
        %2213 = vmatmul.mubr.f32.gmra.mrb[0].mxu0 %v2146
        %v2214 = vpop.f32.mrb[0].mxu0
        %v2215 = vadd.f32 0.0, %v2214
        %v2216 = vpop.f32.mrb[0].mxu0
        %2217 = vdwg.mxu0
        %v2218 = vlaneseq
        %v2219 = vshrl.u32 %v2218, 7
        %v2220 = vsub.s32 0, %v2219
        %v2221 = vrot.slane %v2215, %v2220
        %v2222 = vsub.f32 %v2052, %v2221
        %v2223 = vsub.f32 %v2053, %v2221
        %v2224 = vmul.f32 %v2222, %v2222
        %v2225 = vmul.f32 %v2223, %v2223
        %v2226 = vsel %vm1503, %v2224, 0.0
        %v2227 = vsel %vm1503, %v2225, 0.0
        %v2228 = vadd.f32 %v2226, %v2227
        %v2229 = vrot.slane %v2228, 4
        %v2230 = vadd.f32 %v2228, %v2229
        %v2231 = vrot.slane %v2230, 2
        %v2232 = vadd.f32 %v2230, %v2231
        %v2233 = vrot.slane %v2232, 1
        %v2234 = vadd.f32 %v2232, %v2233
        %v2236 = vsel %vm1503, %v2234, 0
        %2238 = vmatprep.subr.mxu0 0.0
        %2239 = vmatpush1.msra.mxu0 %v2056
        %2240 = vmatprep.subr.mxu0 0.0
        %2241 = vmatpush1.msra.mxu0 %v2057
        %2242 = vmatprep.subr.mxu0 0.0
        %2243 = vmatpush1.msra.mxu0 %v2058
        %2244 = vmatprep.subr.mxu0 0.0
        %2245 = vmatpush1.msra.mxu0 %v2059
        %2246 = vmatprep.subr.mxu0 0.0
        %2247 = vmatpush1.msra.mxu0 0.0
        %2248 = vmatprep.subr.mxu0 0.0
        %2249 = vmatpush1.msra.mxu0 0.0
        %2250 = vmatprep.subr.mxu0 0.0
        %2251 = vmatpush1.msra.mxu0 0.0
        %2252 = vmatprep.subr.mxu0 0.0
        %2253 = vmatpush1.msra.mxu0 0.0
        %2254 = vmatprep.subr.mxu0 0.0
        %2255 = vmatpush1.msra.mxu0 0.0
        %2256 = vmatprep.subr.mxu0 0.0
        %2257 = vmatpush1.msra.mxu0 0.0
        %2258 = vmatprep.subr.mxu0 0.0
        %2259 = vmatpush1.msra.mxu0 0.0
        %2260 = vmatprep.subr.mxu0 0.0
        %2261 = vmatpush1.msra.mxu0 0.0
        %2262 = vmatprep.subr.mxu0 0.0
        %2263 = vmatpush1.msra.mxu0 0.0
        %2264 = vmatprep.subr.mxu0 0.0
        %2265 = vmatpush1.msra.mxu0 0.0
        %2266 = vmatprep.subr.mxu0 0.0
        %2267 = vmatpush1.msra.mxu0 0.0
        %2268 = vmatprep.subr.mxu0 0.0
        %2269 = vmatpush1.msra.mxu0 0.0
        %2270 = vmatprep.subr.mxu0 0.0
        %2271 = vmatpush1.msra.mxu0 0.0
        %2272 = vmatprep.subr.mxu0 0.0
        %2273 = vmatpush1.msra.mxu0 0.0
        %2274 = vmatprep.subr.mxu0 0.0
        %2275 = vmatpush1.msra.mxu0 0.0
        %2276 = vmatprep.subr.mxu0 0.0
        %2277 = vmatpush1.msra.mxu0 0.0
        %2278 = vmatprep.subr.mxu0 0.0
        %2279 = vmatpush1.msra.mxu0 0.0
        %2280 = vmatprep.subr.mxu0 0.0
        %2281 = vmatpush1.msra.mxu0 0.0
        %2282 = vmatprep.subr.mxu0 0.0
        %2283 = vmatpush1.msra.mxu0 0.0
        %2284 = vmatprep.subr.mxu0 0.0
        %2285 = vmatpush1.msra.mxu0 0.0
        %2286 = vmatprep.subr.mxu0 0.0
        %2287 = vmatpush1.msra.mxu0 0.0
        %2288 = vmatprep.subr.mxu0 0.0
        %2289 = vmatpush1.msra.mxu0 0.0
        %2290 = vmatprep.subr.mxu0 0.0
        %2291 = vmatpush1.msra.mxu0 0.0
        %2292 = vmatprep.subr.mxu0 0.0
        %2293 = vmatpush1.msra.mxu0 0.0
        %2294 = vmatprep.subr.mxu0 0.0
        %2295 = vmatpush1.msra.mxu0 0.0
        %2296 = vmatprep.subr.mxu0 0.0
        %2297 = vmatpush1.msra.mxu0 0.0
        %2298 = vmatprep.subr.mxu0 0.0
        %2299 = vmatpush1.msra.mxu0 0.0
        %2300 = vmatprep.subr.mxu0 0.0
        %2301 = vmatpush1.msra.mxu0 0.0
        %2302 = vmatprep.mubr.f32.mxu0 0.0
        %2303 = vmatmul.mubr.f32.gmra.mrb[0].mxu0 %v2236
        %v2304 = vpop.f32.mrb[0].mxu0
        %v2305 = vadd.f32 0.0, %v2304
        %v2306 = vpop.f32.mrb[0].mxu0
        %2307 = vdwg.mxu0
        %v2308 = vmul.f32 %v2305, 0.03125
        %v2309 = vadd.f32 %v2308, 1e-05
        %v2310 = vrsqrt.pop %v2309
        %v2312 = vsel %vm992, %v2310, 0
        %2314 = vmatprep.subr.mxu0 0.0
        %2315 = vmatpush1.msra.mxu0 %v2060
        %2316 = vmatprep.subr.mxu0 0.0
        %2317 = vmatpush1.msra.mxu0 %v2061
        %2318 = vmatprep.subr.mxu0 0.0
        %2319 = vmatpush1.msra.mxu0 0.0
        %2320 = vmatprep.subr.mxu0 0.0
        %2321 = vmatpush1.msra.mxu0 0.0
        %2322 = vmatprep.subr.mxu0 0.0
        %2323 = vmatpush1.msra.mxu0 0.0
        %2324 = vmatprep.subr.mxu0 0.0
        %2325 = vmatpush1.msra.mxu0 0.0
        %2326 = vmatprep.subr.mxu0 0.0
        %2327 = vmatpush1.msra.mxu0 0.0
        %2328 = vmatprep.subr.mxu0 0.0
        %2329 = vmatpush1.msra.mxu0 0.0
        %2330 = vmatprep.subr.mxu0 0.0
        %2331 = vmatpush1.msra.mxu0 0.0
        %2332 = vmatprep.subr.mxu0 0.0
        %2333 = vmatpush1.msra.mxu0 0.0
        %2334 = vmatprep.subr.mxu0 0.0
        %2335 = vmatpush1.msra.mxu0 0.0
        %2336 = vmatprep.subr.mxu0 0.0
        %2337 = vmatpush1.msra.mxu0 0.0
        %2338 = vmatprep.subr.mxu0 0.0
        %2339 = vmatpush1.msra.mxu0 0.0
        %2340 = vmatprep.subr.mxu0 0.0
        %2341 = vmatpush1.msra.mxu0 0.0
        %2342 = vmatprep.subr.mxu0 0.0
        %2343 = vmatpush1.msra.mxu0 0.0
        %2344 = vmatprep.subr.mxu0 0.0
        %2345 = vmatpush1.msra.mxu0 0.0
        %2346 = vmatprep.subr.mxu0 0.0
        %2347 = vmatpush1.msra.mxu0 0.0
        %2348 = vmatprep.subr.mxu0 0.0
        %2349 = vmatpush1.msra.mxu0 0.0
        %2350 = vmatprep.subr.mxu0 0.0
        %2351 = vmatpush1.msra.mxu0 0.0
        %2352 = vmatprep.subr.mxu0 0.0
        %2353 = vmatpush1.msra.mxu0 0.0
        %2354 = vmatprep.subr.mxu0 0.0
        %2355 = vmatpush1.msra.mxu0 0.0
        %2356 = vmatprep.subr.mxu0 0.0
        %2357 = vmatpush1.msra.mxu0 0.0
        %2358 = vmatprep.subr.mxu0 0.0
        %2359 = vmatpush1.msra.mxu0 0.0
        %2360 = vmatprep.subr.mxu0 0.0
        %2361 = vmatpush1.msra.mxu0 0.0
        %2362 = vmatprep.subr.mxu0 0.0
        %2363 = vmatpush1.msra.mxu0 0.0
        %2364 = vmatprep.subr.mxu0 0.0
        %2365 = vmatpush1.msra.mxu0 0.0
        %2366 = vmatprep.subr.mxu0 0.0
        %2367 = vmatpush1.msra.mxu0 0.0
        %2368 = vmatprep.subr.mxu0 0.0
        %2369 = vmatpush1.msra.mxu0 0.0
        %2370 = vmatprep.subr.mxu0 0.0
        %2371 = vmatpush1.msra.mxu0 0.0
        %2372 = vmatprep.subr.mxu0 0.0
        %2373 = vmatpush1.msra.mxu0 0.0
        %2374 = vmatprep.subr.mxu0 0.0
        %2375 = vmatpush1.msra.mxu0 0.0
        %2376 = vmatprep.subr.mxu0 0.0
        %2377 = vmatpush1.msra.mxu0 0.0
        %2378 = vmatprep.mubr.f32.mxu0 0.0
        %2379 = vmatmul.mubr.f32.gmra.mrb[0].mxu0 %v2312
        %v2380 = vpop.f32.mrb[0].mxu0
        %v2381 = vadd.f32 0.0, %v2380
        %v2382 = vpop.f32.mrb[0].mxu0
        %2383 = vdwg.mxu0
        %v2384 = vlaneseq
        %v2385 = vshrl.u32 %v2384, 7
        %v2386 = vsub.s32 0, %v2385
        %v2387 = vrot.slane %v2381, %v2386
        %v2388 = vmul.f32 %v2222, %v2387
        %v2389 = vmul.f32 %v2223, %v2387
        %v2391 = vlaneseq
        %v2392 = vshrl.u32 %v2391, 7
        %v2393 = vsub.s32 0, %v2392
        %v2394 = vrot.slane %v2054, %v2393
        %v2396 = vmul.f32 %v2388, %v2394
        %v2397 = vmul.f32 %v2389, %v2394
        %v2399 = vlaneseq
        %v2400 = vshrl.u32 %v2399, 7
        %v2401 = vsub.s32 0, %v2400
        %v2402 = vrot.slane %v2055, %v2401
        %v2404 = vadd.f32 %v2396, %v2402
        %v2405 = vadd.f32 %v2397, %v2402
        %v2406 = vsub.f32 0.0, %v2404
        %v2407 = vsub.f32 0.0, %v2405
        %v2408 = vmul.f32 %v2406, 1.442695
        %v2409 = vpow.pop %v2408
        %v2410 = vmul.f32 %v2407, 1.442695
        %v2411 = vpow.pop %v2410
        %v2412 = vadd.f32 %v2409, 1.0
        %v2413 = vadd.f32 %v2411, 1.0
        %v2414 = vrcp.pop %v2412
        %v2415 = vrcp.pop %v2413
        %v2416 = vmul.f32 %v2404, %v2414
        %v2417 = vmul.f32 %v2405, %v2415
        %v2418 = vlaneseq
        %v2419 = vshrl.u32 %v2418, 7
        %v2420 = vsub.s32 0, %v2419
        %v2421 = vrot.slane %v1156, %v2420
        %v2422 = vmul.f32 %v2416, %v2421
        %v2423 = vmul.f32 %v2417, %v2421
        %v2424 = vlaneseq
        %v2425 = vshrl.u32 %v2424, 7
        %v2426 = vsub.s32 0, %v2425
        %v2427 = vrot.slane %v1243, %v2426
        %v2428 = vadd.f32 %v2422, %v2427
        %v2429 = vadd.f32 %v2423, %v2427
        %v2430 = vlaneseq
        %v2431 = vshrl.u32 %v2430, 7
        %v2432 = vsub.s32 0, %v2431
        %v2433 = vrot.slane %v1413, %v2432
        %v2434 = vmul.f32 %v2428, %v2433
        %v2435 = vmul.f32 %v2429, %v2433
        %v2436 = vlaneseq
        %v2437 = vshrl.u32 %v2436, 7
        %v2438 = vsub.s32 0, %v2437
        %v2439 = vrot.slane %v1500, %v2438
        %v2440 = vadd.f32 %v2434, %v2439
        %v2441 = vadd.f32 %v2435, %v2439
        %v2442 = vsub.f32 0.0, %v2440
        %v2443 = vsub.f32 0.0, %v2441
        %v2444 = vmul.f32 %v2442, 1.442695
        %v2445 = vpow.pop %v2444
        %v2446 = vmul.f32 %v2443, 1.442695
        %v2447 = vpow.pop %v2446
        %v2448 = vadd.f32 %v2445, 1.0
        %v2449 = vadd.f32 %v2447, 1.0
        %v2450 = vrcp.pop %v2448
        %v2451 = vrcp.pop %v2449
        %v2452 = vmul.f32 %v2440, %v2450
        %v2453 = vmul.f32 %v2441, %v2451
        %2454 = vst.msk [vmem:[#allocation2 + $0x1] sm:$0xff] %vm1503, %v2452
        %2455 = vst.msk [vmem:[#allocation2 + $0x9] sm:$0xff] %vm1503, %v2453
        %v2456 = vld [vmem:[#allocation2] sm:$0xff]
        %v2457 = vld [vmem:[#allocation2 + $0x8] sm:$0xff]
        %v2458 = vld [vmem:[%s19] sm:$0xff]
        %v2459 = vld [vmem:[%s19 + $0x8] sm:$0xff]
        %v2460 = vld [vmem:[%s19 + $0x10] sm:$0xff]
        %v2461 = vld [vmem:[%s19 + $0x18] sm:$0xff]
        %v2462 = vld [vmem:[#allocation2 + $0x1] sm:$0xff]
        %v2463 = vld [vmem:[#allocation2 + $0x9] sm:$0xff]
        %s2464 = scalar_lea.vmem %s19, 32
        %v2465 = vld [vmem:[%s2464] sm:$0xff]
        %v2466 = vld [vmem:[%s2464 + $0x8] sm:$0xff]
        %v2467 = vld [vmem:[%s2464 + $0x10] sm:$0xff]
        %v2468 = vld [vmem:[%s2464 + $0x18] sm:$0xff]
        %v2470 = vsel %vm1503, %v2462, 0
        %v2473 = vsel %vm1503, %v2463, 0
        %2475 = vmatprep.subr.mxu0 0.0
        %2476 = vmatpush1.msra.mxu0 %v2465
        %2477 = vmatprep.subr.mxu0 0.0
        %2478 = vmatpush1.msra.mxu0 %v2466
        %2479 = vmatprep.subr.mxu0 0.0
        %2480 = vmatpush1.msra.mxu0 %v2467
        %2481 = vmatprep.subr.mxu0 0.0
        %2482 = vmatpush1.msra.mxu0 %v2468
        %2483 = vmatprep.subr.mxu0 0.0
        %2484 = vmatpush1.msra.mxu0 0.0
        %2485 = vmatprep.subr.mxu0 0.0
        %2486 = vmatpush1.msra.mxu0 0.0
        %2487 = vmatprep.subr.mxu0 0.0
        %2488 = vmatpush1.msra.mxu0 0.0
        %2489 = vmatprep.subr.mxu0 0.0
        %2490 = vmatpush1.msra.mxu0 0.0
        %2491 = vmatprep.subr.mxu0 0.0
        %2492 = vmatpush1.msra.mxu0 0.0
        %2493 = vmatprep.subr.mxu0 0.0
        %2494 = vmatpush1.msra.mxu0 0.0
        %2495 = vmatprep.subr.mxu0 0.0
        %2496 = vmatpush1.msra.mxu0 0.0
        %2497 = vmatprep.subr.mxu0 0.0
        %2498 = vmatpush1.msra.mxu0 0.0
        %2499 = vmatprep.subr.mxu0 0.0
        %2500 = vmatpush1.msra.mxu0 0.0
        %2501 = vmatprep.subr.mxu0 0.0
        %2502 = vmatpush1.msra.mxu0 0.0
        %2503 = vmatprep.subr.mxu0 0.0
        %2504 = vmatpush1.msra.mxu0 0.0
        %2505 = vmatprep.subr.mxu0 0.0
        %2506 = vmatpush1.msra.mxu0 0.0
        %2507 = vmatprep.subr.mxu0 0.0
        %2508 = vmatpush1.msra.mxu0 0.0
        %2509 = vmatprep.subr.mxu0 0.0
        %2510 = vmatpush1.msra.mxu0 0.0
        %2511 = vmatprep.subr.mxu0 0.0
        %2512 = vmatpush1.msra.mxu0 0.0
        %2513 = vmatprep.subr.mxu0 0.0
        %2514 = vmatpush1.msra.mxu0 0.0
        %2515 = vmatprep.subr.mxu0 0.0
        %2516 = vmatpush1.msra.mxu0 0.0
        %2517 = vmatprep.subr.mxu0 0.0
        %2518 = vmatpush1.msra.mxu0 0.0
        %2519 = vmatprep.subr.mxu0 0.0
        %2520 = vmatpush1.msra.mxu0 0.0
        %2521 = vmatprep.subr.mxu0 0.0
        %2522 = vmatpush1.msra.mxu0 0.0
        %2523 = vmatprep.subr.mxu0 0.0
        %2524 = vmatpush1.msra.mxu0 0.0
        %2525 = vmatprep.subr.mxu0 0.0
        %2526 = vmatpush1.msra.mxu0 0.0
        %2527 = vmatprep.subr.mxu0 0.0
        %2528 = vmatpush1.msra.mxu0 0.0
        %2529 = vmatprep.subr.mxu0 0.0
        %2530 = vmatpush1.msra.mxu0 0.0
        %2531 = vmatprep.subr.mxu0 0.0
        %2532 = vmatpush1.msra.mxu0 0.0
        %2533 = vmatprep.subr.mxu0 0.0
        %2534 = vmatpush1.msra.mxu0 0.0
        %2535 = vmatprep.subr.mxu0 0.0
        %2536 = vmatpush1.msra.mxu0 0.0
        %2537 = vmatprep.subr.mxu0 0.0
        %2538 = vmatpush1.msra.mxu0 0.0
        %2539 = vmatprep.mubr.f32.mxu0 0.0
        %2540 = vmatmul.mubr.f32.gmra.mrb[0].mxu0 %v2470
        %v2541 = vpop.f32.mrb[0].mxu0
        %v2542 = vadd.f32 0.0, %v2541
        %v2543 = vpop.f32.mrb[0].mxu0
        %2544 = vmatprep.mubr.f32.mxu0 0.0
        %2545 = vmatmul.mubr.f32.gmra.mrb[0].mxu0 %v2473
        %v2546 = vpop.f32.mrb[0].mxu0
        %v2547 = vadd.f32 0.0, %v2546
        %v2548 = vpop.f32.mrb[0].mxu0
        %2549 = vdwg.mxu0
        %v2551 = vsel %vm1503, %v2456, 0
        %v2554 = vsel %vm1503, %v2457, 0
        %2556 = vmatprep.subr.mxu0 0.0
        %2557 = vmatpush1.msra.mxu0 %v2458
        %2558 = vmatprep.subr.mxu0 0.0
        %2559 = vmatpush1.msra.mxu0 %v2459
        %2560 = vmatprep.subr.mxu0 0.0
        %2561 = vmatpush1.msra.mxu0 %v2460
        %2562 = vmatprep.subr.mxu0 0.0
        %2563 = vmatpush1.msra.mxu0 %v2461
        %2564 = vmatprep.subr.mxu0 0.0
        %2565 = vmatpush1.msra.mxu0 0.0
        %2566 = vmatprep.subr.mxu0 0.0
        %2567 = vmatpush1.msra.mxu0 0.0
        %2568 = vmatprep.subr.mxu0 0.0
        %2569 = vmatpush1.msra.mxu0 0.0
        %2570 = vmatprep.subr.mxu0 0.0
        %2571 = vmatpush1.msra.mxu0 0.0
        %2572 = vmatprep.subr.mxu0 0.0
        %2573 = vmatpush1.msra.mxu0 0.0
        %2574 = vmatprep.subr.mxu0 0.0
        %2575 = vmatpush1.msra.mxu0 0.0
        %2576 = vmatprep.subr.mxu0 0.0
        %2577 = vmatpush1.msra.mxu0 0.0
        %2578 = vmatprep.subr.mxu0 0.0
        %2579 = vmatpush1.msra.mxu0 0.0
        %2580 = vmatprep.subr.mxu0 0.0
        %2581 = vmatpush1.msra.mxu0 0.0
        %2582 = vmatprep.subr.mxu0 0.0
        %2583 = vmatpush1.msra.mxu0 0.0
        %2584 = vmatprep.subr.mxu0 0.0
        %2585 = vmatpush1.msra.mxu0 0.0
        %2586 = vmatprep.subr.mxu0 0.0
        %2587 = vmatpush1.msra.mxu0 0.0
        %2588 = vmatprep.subr.mxu0 0.0
        %2589 = vmatpush1.msra.mxu0 0.0
        %2590 = vmatprep.subr.mxu0 0.0
        %2591 = vmatpush1.msra.mxu0 0.0
        %2592 = vmatprep.subr.mxu0 0.0
        %2593 = vmatpush1.msra.mxu0 0.0
        %2594 = vmatprep.subr.mxu0 0.0
        %2595 = vmatpush1.msra.mxu0 0.0
        %2596 = vmatprep.subr.mxu0 0.0
        %2597 = vmatpush1.msra.mxu0 0.0
        %2598 = vmatprep.subr.mxu0 0.0
        %2599 = vmatpush1.msra.mxu0 0.0
        %2600 = vmatprep.subr.mxu0 0.0
        %2601 = vmatpush1.msra.mxu0 0.0
        %2602 = vmatprep.subr.mxu0 0.0
        %2603 = vmatpush1.msra.mxu0 0.0
        %2604 = vmatprep.subr.mxu0 0.0
        %2605 = vmatpush1.msra.mxu0 0.0
        %2606 = vmatprep.subr.mxu0 0.0
        %2607 = vmatpush1.msra.mxu0 0.0
        %2608 = vmatprep.subr.mxu0 0.0
        %2609 = vmatpush1.msra.mxu0 0.0
        %2610 = vmatprep.subr.mxu0 0.0
        %2611 = vmatpush1.msra.mxu0 0.0
        %2612 = vmatprep.subr.mxu0 0.0
        %2613 = vmatpush1.msra.mxu0 0.0
        %2614 = vmatprep.subr.mxu0 0.0
        %2615 = vmatpush1.msra.mxu0 0.0
        %2616 = vmatprep.subr.mxu0 0.0
        %2617 = vmatpush1.msra.mxu0 0.0
        %2618 = vmatprep.subr.mxu0 0.0
        %2619 = vmatpush1.msra.mxu0 0.0
        %2620 = vmatprep.mubr.f32.mxu0 0.0
        %2621 = vmatmul.mubr.f32.gmra.mrb[0].mxu0 %v2551
        %v2622 = vpop.f32.mrb[0].mxu0
        %v2623 = vadd.f32 %v2542, %v2622
        %v2624 = vpop.f32.mrb[0].mxu0
        %2625 = vmatprep.mubr.f32.mxu0 0.0
        %2626 = vmatmul.mubr.f32.gmra.mrb[0].mxu0 %v2554
        %v2627 = vpop.f32.mrb[0].mxu0
        %v2628 = vadd.f32 %v2547, %v2627
        %v2629 = vpop.f32.mrb[0].mxu0
        %2630 = vdwg.mxu0
        %v2631 = vld [vmem:[#allocation2 + $0x2] sm:$0xff]
        %v2632 = vld [vmem:[#allocation2 + $0xa] sm:$0xff]
        %s2633 = scalar_lea.vmem %s19, 64
        %v2634 = vld [vmem:[%s2633] sm:$0xff]
        %v2635 = vld [vmem:[%s2633 + $0x8] sm:$0xff]
        %v2636 = vld [vmem:[%s2633 + $0x10] sm:$0xff]
        %v2637 = vld [vmem:[%s2633 + $0x18] sm:$0xff]
        %v2639 = vsel %vm1503, %v2631, 0
        %v2642 = vsel %vm1503, %v2632, 0
        %2644 = vmatprep.subr.mxu0 0.0
        %2645 = vmatpush1.msra.mxu0 %v2634
        %2646 = vmatprep.subr.mxu0 0.0
        %2647 = vmatpush1.msra.mxu0 %v2635
        %2648 = vmatprep.subr.mxu0 0.0
        %2649 = vmatpush1.msra.mxu0 %v2636
        %2650 = vmatprep.subr.mxu0 0.0
        %2651 = vmatpush1.msra.mxu0 %v2637
        %2652 = vmatprep.subr.mxu0 0.0
        %2653 = vmatpush1.msra.mxu0 0.0
        %2654 = vmatprep.subr.mxu0 0.0
        %2655 = vmatpush1.msra.mxu0 0.0
        %2656 = vmatprep.subr.mxu0 0.0
        %2657 = vmatpush1.msra.mxu0 0.0
        %2658 = vmatprep.subr.mxu0 0.0
        %2659 = vmatpush1.msra.mxu0 0.0
        %2660 = vmatprep.subr.mxu0 0.0
        %2661 = vmatpush1.msra.mxu0 0.0
        %2662 = vmatprep.subr.mxu0 0.0
        %2663 = vmatpush1.msra.mxu0 0.0
        %2664 = vmatprep.subr.mxu0 0.0
        %2665 = vmatpush1.msra.mxu0 0.0
        %2666 = vmatprep.subr.mxu0 0.0
        %2667 = vmatpush1.msra.mxu0 0.0
        %2668 = vmatprep.subr.mxu0 0.0
        %2669 = vmatpush1.msra.mxu0 0.0
        %2670 = vmatprep.subr.mxu0 0.0
        %2671 = vmatpush1.msra.mxu0 0.0
        %2672 = vmatprep.subr.mxu0 0.0
        %2673 = vmatpush1.msra.mxu0 0.0
        %2674 = vmatprep.subr.mxu0 0.0
        %2675 = vmatpush1.msra.mxu0 0.0
        %2676 = vmatprep.subr.mxu0 0.0
        %2677 = vmatpush1.msra.mxu0 0.0
        %2678 = vmatprep.subr.mxu0 0.0
        %2679 = vmatpush1.msra.mxu0 0.0
        %2680 = vmatprep.subr.mxu0 0.0
        %2681 = vmatpush1.msra.mxu0 0.0
        %2682 = vmatprep.subr.mxu0 0.0
        %2683 = vmatpush1.msra.mxu0 0.0
        %2684 = vmatprep.subr.mxu0 0.0
        %2685 = vmatpush1.msra.mxu0 0.0
        %2686 = vmatprep.subr.mxu0 0.0
        %2687 = vmatpush1.msra.mxu0 0.0
        %2688 = vmatprep.subr.mxu0 0.0
        %2689 = vmatpush1.msra.mxu0 0.0
        %2690 = vmatprep.subr.mxu0 0.0
        %2691 = vmatpush1.msra.mxu0 0.0
        %2692 = vmatprep.subr.mxu0 0.0
        %2693 = vmatpush1.msra.mxu0 0.0
        %2694 = vmatprep.subr.mxu0 0.0
        %2695 = vmatpush1.msra.mxu0 0.0
        %2696 = vmatprep.subr.mxu0 0.0
        %2697 = vmatpush1.msra.mxu0 0.0
        %2698 = vmatprep.subr.mxu0 0.0
        %2699 = vmatpush1.msra.mxu0 0.0
        %2700 = vmatprep.subr.mxu0 0.0
        %2701 = vmatpush1.msra.mxu0 0.0
        %2702 = vmatprep.subr.mxu0 0.0
        %2703 = vmatpush1.msra.mxu0 0.0
        %2704 = vmatprep.subr.mxu0 0.0
        %2705 = vmatpush1.msra.mxu0 0.0
        %2706 = vmatprep.subr.mxu0 0.0
        %2707 = vmatpush1.msra.mxu0 0.0
        %2708 = vmatprep.mubr.f32.mxu0 0.0
        %2709 = vmatmul.mubr.f32.gmra.mrb[0].mxu0 %v2639
        %v2710 = vpop.f32.mrb[0].mxu0
        %v2711 = vadd.f32 0.0, %v2710
        %v2712 = vpop.f32.mrb[0].mxu0
        %2713 = vmatprep.mubr.f32.mxu0 0.0
        %2714 = vmatmul.mubr.f32.gmra.mrb[0].mxu0 %v2642
        %v2715 = vpop.f32.mrb[0].mxu0
        %v2716 = vadd.f32 0.0, %v2715
        %v2717 = vpop.f32.mrb[0].mxu0
        %2718 = vdwg.mxu0
        %v2719 = vadd.f32 %v2623, %v2711
        %v2720 = vadd.f32 %v2628, %v2716
        %v2721 = vld [vmem:[%s21] sm:$0x1]
        %v2723 = vlaneseq
        %v2724 = vshrl.u32 %v2723, 7
        %v2725 = vsub.s32 0, %v2724
        %v2726 = vrot.slane %v2721, %v2725
        %v2728 = vadd.f32 %v2719, %v2726
        %v2729 = vadd.f32 %v2720, %v2726
        %v2730 = vld [vmem:[%s23] sm:$0x1]
        %v2731 = vld [vmem:[%s25] sm:$0x1]
        %v2732 = vld [vmem:[%s27] sm:$0xff]
        %v2733 = vld [vmem:[%s27 + $0x8] sm:$0xff]
        %v2734 = vld [vmem:[%s27 + $0x10] sm:$0xff]
        %v2735 = vld [vmem:[%s27 + $0x18] sm:$0xff]
        %v2736 = vld [vmem:[%s29] sm:$0xff]
        %v2737 = vld [vmem:[%s29 + $0x8] sm:$0xff]
        %v2738 = vsel %vm1503, %v2728, 0.0
        %v2739 = vsel %vm1503, %v2729, 0.0
        %v2740 = vadd.f32 %v2738, %v2739
        %v2741 = vrot.slane %v2740, 4
        %v2742 = vadd.f32 %v2740, %v2741
        %v2743 = vrot.slane %v2742, 2
        %v2744 = vadd.f32 %v2742, %v2743
        %v2745 = vrot.slane %v2744, 1
        %v2746 = vadd.f32 %v2744, %v2745
        %v2748 = vsel %vm1503, %v2746, 0
        %2750 = vmatprep.subr.mxu0 0.0
        %2751 = vmatpush1.msra.mxu0 %v2732
        %2752 = vmatprep.subr.mxu0 0.0
        %2753 = vmatpush1.msra.mxu0 %v2733
        %2754 = vmatprep.subr.mxu0 0.0
        %2755 = vmatpush1.msra.mxu0 %v2734
        %2756 = vmatprep.subr.mxu0 0.0
        %2757 = vmatpush1.msra.mxu0 %v2735
        %2758 = vmatprep.subr.mxu0 0.0
        %2759 = vmatpush1.msra.mxu0 0.0
        %2760 = vmatprep.subr.mxu0 0.0
        %2761 = vmatpush1.msra.mxu0 0.0
        %2762 = vmatprep.subr.mxu0 0.0
        %2763 = vmatpush1.msra.mxu0 0.0
        %2764 = vmatprep.subr.mxu0 0.0
        %2765 = vmatpush1.msra.mxu0 0.0
        %2766 = vmatprep.subr.mxu0 0.0
        %2767 = vmatpush1.msra.mxu0 0.0
        %2768 = vmatprep.subr.mxu0 0.0
        %2769 = vmatpush1.msra.mxu0 0.0
        %2770 = vmatprep.subr.mxu0 0.0
        %2771 = vmatpush1.msra.mxu0 0.0
        %2772 = vmatprep.subr.mxu0 0.0
        %2773 = vmatpush1.msra.mxu0 0.0
        %2774 = vmatprep.subr.mxu0 0.0
        %2775 = vmatpush1.msra.mxu0 0.0
        %2776 = vmatprep.subr.mxu0 0.0
        %2777 = vmatpush1.msra.mxu0 0.0
        %2778 = vmatprep.subr.mxu0 0.0
        %2779 = vmatpush1.msra.mxu0 0.0
        %2780 = vmatprep.subr.mxu0 0.0
        %2781 = vmatpush1.msra.mxu0 0.0
        %2782 = vmatprep.subr.mxu0 0.0
        %2783 = vmatpush1.msra.mxu0 0.0
        %2784 = vmatprep.subr.mxu0 0.0
        %2785 = vmatpush1.msra.mxu0 0.0
        %2786 = vmatprep.subr.mxu0 0.0
        %2787 = vmatpush1.msra.mxu0 0.0
        %2788 = vmatprep.subr.mxu0 0.0
        %2789 = vmatpush1.msra.mxu0 0.0
        %2790 = vmatprep.subr.mxu0 0.0
        %2791 = vmatpush1.msra.mxu0 0.0
        %2792 = vmatprep.subr.mxu0 0.0
        %2793 = vmatpush1.msra.mxu0 0.0
        %2794 = vmatprep.subr.mxu0 0.0
        %2795 = vmatpush1.msra.mxu0 0.0
        %2796 = vmatprep.subr.mxu0 0.0
        %2797 = vmatpush1.msra.mxu0 0.0
        %2798 = vmatprep.subr.mxu0 0.0
        %2799 = vmatpush1.msra.mxu0 0.0
        %2800 = vmatprep.subr.mxu0 0.0
        %2801 = vmatpush1.msra.mxu0 0.0
        %2802 = vmatprep.subr.mxu0 0.0
        %2803 = vmatpush1.msra.mxu0 0.0
        %2804 = vmatprep.subr.mxu0 0.0
        %2805 = vmatpush1.msra.mxu0 0.0
        %2806 = vmatprep.subr.mxu0 0.0
        %2807 = vmatpush1.msra.mxu0 0.0
        %2808 = vmatprep.subr.mxu0 0.0
        %2809 = vmatpush1.msra.mxu0 0.0
        %2810 = vmatprep.subr.mxu0 0.0
        %2811 = vmatpush1.msra.mxu0 0.0
        %2812 = vmatprep.subr.mxu0 0.0
        %2813 = vmatpush1.msra.mxu0 0.0
        %2814 = vmatprep.mubr.f32.mxu0 0.0
        %2815 = vmatmul.mubr.f32.gmra.mrb[0].mxu0 %v2748
        %v2816 = vpop.f32.mrb[0].mxu0
        %v2817 = vadd.f32 0.0, %v2816
        %v2818 = vpop.f32.mrb[0].mxu0
        %2819 = vdwg.mxu0
        %v2820 = vmul.f32 %v2817, 0.03125
        %v2822 = vsel %vm992, %v2820, 0
        %2824 = vmatprep.subr.mxu0 0.0
        %2825 = vmatpush1.msra.mxu0 %v2736
        %2826 = vmatprep.subr.mxu0 0.0
        %2827 = vmatpush1.msra.mxu0 %v2737
        %2828 = vmatprep.subr.mxu0 0.0
        %2829 = vmatpush1.msra.mxu0 0.0
        %2830 = vmatprep.subr.mxu0 0.0
        %2831 = vmatpush1.msra.mxu0 0.0
        %2832 = vmatprep.subr.mxu0 0.0
        %2833 = vmatpush1.msra.mxu0 0.0
        %2834 = vmatprep.subr.mxu0 0.0
        %2835 = vmatpush1.msra.mxu0 0.0
        %2836 = vmatprep.subr.mxu0 0.0
        %2837 = vmatpush1.msra.mxu0 0.0
        %2838 = vmatprep.subr.mxu0 0.0
        %2839 = vmatpush1.msra.mxu0 0.0
        %2840 = vmatprep.subr.mxu0 0.0
        %2841 = vmatpush1.msra.mxu0 0.0
        %2842 = vmatprep.subr.mxu0 0.0
        %2843 = vmatpush1.msra.mxu0 0.0
        %2844 = vmatprep.subr.mxu0 0.0
        %2845 = vmatpush1.msra.mxu0 0.0
        %2846 = vmatprep.subr.mxu0 0.0
        %2847 = vmatpush1.msra.mxu0 0.0
        %2848 = vmatprep.subr.mxu0 0.0
        %2849 = vmatpush1.msra.mxu0 0.0
        %2850 = vmatprep.subr.mxu0 0.0
        %2851 = vmatpush1.msra.mxu0 0.0
        %2852 = vmatprep.subr.mxu0 0.0
        %2853 = vmatpush1.msra.mxu0 0.0
        %2854 = vmatprep.subr.mxu0 0.0
        %2855 = vmatpush1.msra.mxu0 0.0
        %2856 = vmatprep.subr.mxu0 0.0
        %2857 = vmatpush1.msra.mxu0 0.0
        %2858 = vmatprep.subr.mxu0 0.0
        %2859 = vmatpush1.msra.mxu0 0.0
        %2860 = vmatprep.subr.mxu0 0.0
        %2861 = vmatpush1.msra.mxu0 0.0
        %2862 = vmatprep.subr.mxu0 0.0
        %2863 = vmatpush1.msra.mxu0 0.0
        %2864 = vmatprep.subr.mxu0 0.0
        %2865 = vmatpush1.msra.mxu0 0.0
        %2866 = vmatprep.subr.mxu0 0.0
        %2867 = vmatpush1.msra.mxu0 0.0
        %2868 = vmatprep.subr.mxu0 0.0
        %2869 = vmatpush1.msra.mxu0 0.0
        %2870 = vmatprep.subr.mxu0 0.0
        %2871 = vmatpush1.msra.mxu0 0.0
        %2872 = vmatprep.subr.mxu0 0.0
        %2873 = vmatpush1.msra.mxu0 0.0
        %2874 = vmatprep.subr.mxu0 0.0
        %2875 = vmatpush1.msra.mxu0 0.0
        %2876 = vmatprep.subr.mxu0 0.0
        %2877 = vmatpush1.msra.mxu0 0.0
        %2878 = vmatprep.subr.mxu0 0.0
        %2879 = vmatpush1.msra.mxu0 0.0
        %2880 = vmatprep.subr.mxu0 0.0
        %2881 = vmatpush1.msra.mxu0 0.0
        %2882 = vmatprep.subr.mxu0 0.0
        %2883 = vmatpush1.msra.mxu0 0.0
        %2884 = vmatprep.subr.mxu0 0.0
        %2885 = vmatpush1.msra.mxu0 0.0
        %2886 = vmatprep.subr.mxu0 0.0
        %2887 = vmatpush1.msra.mxu0 0.0
        %2888 = vmatprep.mubr.f32.mxu0 0.0
        %2889 = vmatmul.mubr.f32.gmra.mrb[0].mxu0 %v2822
        %v2890 = vpop.f32.mrb[0].mxu0
        %v2891 = vadd.f32 0.0, %v2890
        %v2892 = vpop.f32.mrb[0].mxu0
        %2893 = vdwg.mxu0
        %v2894 = vlaneseq
        %v2895 = vshrl.u32 %v2894, 7
        %v2896 = vsub.s32 0, %v2895
        %v2897 = vrot.slane %v2891, %v2896
        %v2898 = vsub.f32 %v2728, %v2897
        %v2899 = vsub.f32 %v2729, %v2897
        %v2900 = vmul.f32 %v2898, %v2898
        %v2901 = vmul.f32 %v2899, %v2899
        %v2902 = vsel %vm1503, %v2900, 0.0
        %v2903 = vsel %vm1503, %v2901, 0.0
        %v2904 = vadd.f32 %v2902, %v2903
        %v2905 = vrot.slane %v2904, 4
        %v2906 = vadd.f32 %v2904, %v2905
        %v2907 = vrot.slane %v2906, 2
        %v2908 = vadd.f32 %v2906, %v2907
        %v2909 = vrot.slane %v2908, 1
        %v2910 = vadd.f32 %v2908, %v2909
        %v2912 = vsel %vm1503, %v2910, 0
        %2914 = vmatprep.subr.mxu0 0.0
        %2915 = vmatpush1.msra.mxu0 %v2732
        %2916 = vmatprep.subr.mxu0 0.0
        %2917 = vmatpush1.msra.mxu0 %v2733
        %2918 = vmatprep.subr.mxu0 0.0
        %2919 = vmatpush1.msra.mxu0 %v2734
        %2920 = vmatprep.subr.mxu0 0.0
        %2921 = vmatpush1.msra.mxu0 %v2735
        %2922 = vmatprep.subr.mxu0 0.0
        %2923 = vmatpush1.msra.mxu0 0.0
        %2924 = vmatprep.subr.mxu0 0.0
        %2925 = vmatpush1.msra.mxu0 0.0
        %2926 = vmatprep.subr.mxu0 0.0
        %2927 = vmatpush1.msra.mxu0 0.0
        %2928 = vmatprep.subr.mxu0 0.0
        %2929 = vmatpush1.msra.mxu0 0.0
        %2930 = vmatprep.subr.mxu0 0.0
        %2931 = vmatpush1.msra.mxu0 0.0
        %2932 = vmatprep.subr.mxu0 0.0
        %2933 = vmatpush1.msra.mxu0 0.0
        %2934 = vmatprep.subr.mxu0 0.0
        %2935 = vmatpush1.msra.mxu0 0.0
        %2936 = vmatprep.subr.mxu0 0.0
        %2937 = vmatpush1.msra.mxu0 0.0
        %2938 = vmatprep.subr.mxu0 0.0
        %2939 = vmatpush1.msra.mxu0 0.0
        %2940 = vmatprep.subr.mxu0 0.0
        %2941 = vmatpush1.msra.mxu0 0.0
        %2942 = vmatprep.subr.mxu0 0.0
        %2943 = vmatpush1.msra.mxu0 0.0
        %2944 = vmatprep.subr.mxu0 0.0
        %2945 = vmatpush1.msra.mxu0 0.0
        %2946 = vmatprep.subr.mxu0 0.0
        %2947 = vmatpush1.msra.mxu0 0.0
        %2948 = vmatprep.subr.mxu0 0.0
        %2949 = vmatpush1.msra.mxu0 0.0
        %2950 = vmatprep.subr.mxu0 0.0
        %2951 = vmatpush1.msra.mxu0 0.0
        %2952 = vmatprep.subr.mxu0 0.0
        %2953 = vmatpush1.msra.mxu0 0.0
        %2954 = vmatprep.subr.mxu0 0.0
        %2955 = vmatpush1.msra.mxu0 0.0
        %2956 = vmatprep.subr.mxu0 0.0
        %2957 = vmatpush1.msra.mxu0 0.0
        %2958 = vmatprep.subr.mxu0 0.0
        %2959 = vmatpush1.msra.mxu0 0.0
        %2960 = vmatprep.subr.mxu0 0.0
        %2961 = vmatpush1.msra.mxu0 0.0
        %2962 = vmatprep.subr.mxu0 0.0
        %2963 = vmatpush1.msra.mxu0 0.0
        %2964 = vmatprep.subr.mxu0 0.0
        %2965 = vmatpush1.msra.mxu0 0.0
        %2966 = vmatprep.subr.mxu0 0.0
        %2967 = vmatpush1.msra.mxu0 0.0
        %2968 = vmatprep.subr.mxu0 0.0
        %2969 = vmatpush1.msra.mxu0 0.0
        %2970 = vmatprep.subr.mxu0 0.0
        %2971 = vmatpush1.msra.mxu0 0.0
        %2972 = vmatprep.subr.mxu0 0.0
        %2973 = vmatpush1.msra.mxu0 0.0
        %2974 = vmatprep.subr.mxu0 0.0
        %2975 = vmatpush1.msra.mxu0 0.0
        %2976 = vmatprep.subr.mxu0 0.0
        %2977 = vmatpush1.msra.mxu0 0.0
        %2978 = vmatprep.mubr.f32.mxu0 0.0
        %2979 = vmatmul.mubr.f32.gmra.mrb[0].mxu0 %v2912
        %v2980 = vpop.f32.mrb[0].mxu0
        %v2981 = vadd.f32 0.0, %v2980
        %v2982 = vpop.f32.mrb[0].mxu0
        %2983 = vdwg.mxu0
        %v2984 = vmul.f32 %v2981, 0.03125
        %v2985 = vadd.f32 %v2984, 1e-05
        %v2986 = vrsqrt.pop %v2985
        %v2988 = vsel %vm992, %v2986, 0
        %2990 = vmatprep.subr.mxu0 0.0
        %2991 = vmatpush1.msra.mxu0 %v2736
        %2992 = vmatprep.subr.mxu0 0.0
        %2993 = vmatpush1.msra.mxu0 %v2737
        %2994 = vmatprep.subr.mxu0 0.0
        %2995 = vmatpush1.msra.mxu0 0.0
        %2996 = vmatprep.subr.mxu0 0.0
        %2997 = vmatpush1.msra.mxu0 0.0
        %2998 = vmatprep.subr.mxu0 0.0
        %2999 = vmatpush1.msra.mxu0 0.0
        %3000 = vmatprep.subr.mxu0 0.0
        %3001 = vmatpush1.msra.mxu0 0.0
        %3002 = vmatprep.subr.mxu0 0.0
        %3003 = vmatpush1.msra.mxu0 0.0
        %3004 = vmatprep.subr.mxu0 0.0
        %3005 = vmatpush1.msra.mxu0 0.0
        %3006 = vmatprep.subr.mxu0 0.0
        %3007 = vmatpush1.msra.mxu0 0.0
        %3008 = vmatprep.subr.mxu0 0.0
        %3009 = vmatpush1.msra.mxu0 0.0
        %3010 = vmatprep.subr.mxu0 0.0
        %3011 = vmatpush1.msra.mxu0 0.0
        %3012 = vmatprep.subr.mxu0 0.0
        %3013 = vmatpush1.msra.mxu0 0.0
        %3014 = vmatprep.subr.mxu0 0.0
        %3015 = vmatpush1.msra.mxu0 0.0
        %3016 = vmatprep.subr.mxu0 0.0
        %3017 = vmatpush1.msra.mxu0 0.0
        %3018 = vmatprep.subr.mxu0 0.0
        %3019 = vmatpush1.msra.mxu0 0.0
        %3020 = vmatprep.subr.mxu0 0.0
        %3021 = vmatpush1.msra.mxu0 0.0
        %3022 = vmatprep.subr.mxu0 0.0
        %3023 = vmatpush1.msra.mxu0 0.0
        %3024 = vmatprep.subr.mxu0 0.0
        %3025 = vmatpush1.msra.mxu0 0.0
        %3026 = vmatprep.subr.mxu0 0.0
        %3027 = vmatpush1.msra.mxu0 0.0
        %3028 = vmatprep.subr.mxu0 0.0
        %3029 = vmatpush1.msra.mxu0 0.0
        %3030 = vmatprep.subr.mxu0 0.0
        %3031 = vmatpush1.msra.mxu0 0.0
        %3032 = vmatprep.subr.mxu0 0.0
        %3033 = vmatpush1.msra.mxu0 0.0
        %3034 = vmatprep.subr.mxu0 0.0
        %3035 = vmatpush1.msra.mxu0 0.0
        %3036 = vmatprep.subr.mxu0 0.0
        %3037 = vmatpush1.msra.mxu0 0.0
        %3038 = vmatprep.subr.mxu0 0.0
        %3039 = vmatpush1.msra.mxu0 0.0
        %3040 = vmatprep.subr.mxu0 0.0
        %3041 = vmatpush1.msra.mxu0 0.0
        %3042 = vmatprep.subr.mxu0 0.0
        %3043 = vmatpush1.msra.mxu0 0.0
        %3044 = vmatprep.subr.mxu0 0.0
        %3045 = vmatpush1.msra.mxu0 0.0
        %3046 = vmatprep.subr.mxu0 0.0
        %3047 = vmatpush1.msra.mxu0 0.0
        %3048 = vmatprep.subr.mxu0 0.0
        %3049 = vmatpush1.msra.mxu0 0.0
        %3050 = vmatprep.subr.mxu0 0.0
        %3051 = vmatpush1.msra.mxu0 0.0
        %3052 = vmatprep.subr.mxu0 0.0
        %3053 = vmatpush1.msra.mxu0 0.0
        %3054 = vmatprep.mubr.f32.mxu0 0.0
        %3055 = vmatmul.mubr.f32.gmra.mrb[0].mxu0 %v2988
        %v3056 = vpop.f32.mrb[0].mxu0
        %v3057 = vadd.f32 0.0, %v3056
        %v3058 = vpop.f32.mrb[0].mxu0
        %3059 = vdwg.mxu0
        %v3060 = vlaneseq
        %v3061 = vshrl.u32 %v3060, 7
        %v3062 = vsub.s32 0, %v3061
        %v3063 = vrot.slane %v3057, %v3062
        %v3064 = vmul.f32 %v2898, %v3063
        %v3065 = vmul.f32 %v2899, %v3063
        %v3067 = vlaneseq
        %v3068 = vshrl.u32 %v3067, 7
        %v3069 = vsub.s32 0, %v3068
        %v3070 = vrot.slane %v2730, %v3069
        %v3072 = vmul.f32 %v3064, %v3070
        %v3073 = vmul.f32 %v3065, %v3070
        %v3075 = vlaneseq
        %v3076 = vshrl.u32 %v3075, 7
        %v3077 = vsub.s32 0, %v3076
        %v3078 = vrot.slane %v2731, %v3077
        %v3080 = vadd.f32 %v3072, %v3078
        %v3081 = vadd.f32 %v3073, %v3078
        %v3082 = vsub.f32 0.0, %v3080
        %v3083 = vsub.f32 0.0, %v3081
        %v3084 = vmul.f32 %v3082, 1.442695
        %v3085 = vpow.pop %v3084
        %v3086 = vmul.f32 %v3083, 1.442695
        %v3087 = vpow.pop %v3086
        %v3088 = vadd.f32 %v3085, 1.0
        %v3089 = vadd.f32 %v3087, 1.0
        %v3090 = vrcp.pop %v3088
        %v3091 = vrcp.pop %v3089
        %v3092 = vmul.f32 %v3080, %v3090
        %v3093 = vmul.f32 %v3081, %v3091
        %v3094 = vadd.f32 %v3092, %v1512
        %v3095 = vadd.f32 %v3093, %v1513
        %3096 = vst.msk [vmem:[%s971] sm:$0xff] %vm1503, %v3094
        %3097 = vst.msk [vmem:[%s971 + $0x8] sm:$0xff] %vm1503, %v3095
        %3098 = vst.msk [vmem:[#allocation2 + $0x1] sm:$0xff] %vm1503, %v3094
        %3099 = vst.msk [vmem:[#allocation2 + $0x9] sm:$0xff] %vm1503, %v3095
        %v3100 = vld [vmem:[#allocation2] ss:$2 sm:$0xff]
        %v3101 = vld [vmem:[%s55] sm:$0xff]
        %v3102 = vld [vmem:[%s55 + $0x8] sm:$0xff]
        %v3103 = vld [vmem:[%s55 + $0x10] sm:$0xff]
        %v3104 = vld [vmem:[%s55 + $0x18] sm:$0xff]
        %s3105 = scalar_lea.vmem [#allocation2], 1
        %v3106 = vld [vmem:[%s3105] ss:$2 sm:$0xff]
        %s3107 = scalar_lea.vmem %s55, 32
        %v3108 = vld [vmem:[%s3107] sm:$0xff]
        %v3109 = vld [vmem:[%s3107 + $0x8] sm:$0xff]
        %v3110 = vld [vmem:[%s3107 + $0x10] sm:$0xff]
        %v3111 = vld [vmem:[%s3107 + $0x18] sm:$0xff]
        %v3113 = vsel %vm1503, %v3106, 0
        %3115 = vmatprep.subr.mxu0 0.0
        %3116 = vmatpush1.msra.mxu0 %v3108
        %3117 = vmatprep.subr.mxu0 0.0
        %3118 = vmatpush1.msra.mxu0 %v3109
        %3119 = vmatprep.subr.mxu0 0.0
        %3120 = vmatpush1.msra.mxu0 %v3110
        %3121 = vmatprep.subr.mxu0 0.0
        %3122 = vmatpush1.msra.mxu0 %v3111
        %3123 = vmatprep.subr.mxu0 0.0
        %3124 = vmatpush1.msra.mxu0 0.0
        %3125 = vmatprep.subr.mxu0 0.0
        %3126 = vmatpush1.msra.mxu0 0.0
        %3127 = vmatprep.subr.mxu0 0.0
        %3128 = vmatpush1.msra.mxu0 0.0
        %3129 = vmatprep.subr.mxu0 0.0
        %3130 = vmatpush1.msra.mxu0 0.0
        %3131 = vmatprep.subr.mxu0 0.0
        %3132 = vmatpush1.msra.mxu0 0.0
        %3133 = vmatprep.subr.mxu0 0.0
        %3134 = vmatpush1.msra.mxu0 0.0
        %3135 = vmatprep.subr.mxu0 0.0
        %3136 = vmatpush1.msra.mxu0 0.0
        %3137 = vmatprep.subr.mxu0 0.0
        %3138 = vmatpush1.msra.mxu0 0.0
        %3139 = vmatprep.subr.mxu0 0.0
        %3140 = vmatpush1.msra.mxu0 0.0
        %3141 = vmatprep.subr.mxu0 0.0
        %3142 = vmatpush1.msra.mxu0 0.0
        %3143 = vmatprep.subr.mxu0 0.0
        %3144 = vmatpush1.msra.mxu0 0.0
        %3145 = vmatprep.subr.mxu0 0.0
        %3146 = vmatpush1.msra.mxu0 0.0
        %3147 = vmatprep.subr.mxu0 0.0
        %3148 = vmatpush1.msra.mxu0 0.0
        %3149 = vmatprep.subr.mxu0 0.0
        %3150 = vmatpush1.msra.mxu0 0.0
        %3151 = vmatprep.subr.mxu0 0.0
        %3152 = vmatpush1.msra.mxu0 0.0
        %3153 = vmatprep.subr.mxu0 0.0
        %3154 = vmatpush1.msra.mxu0 0.0
        %3155 = vmatprep.subr.mxu0 0.0
        %3156 = vmatpush1.msra.mxu0 0.0
        %3157 = vmatprep.subr.mxu0 0.0
        %3158 = vmatpush1.msra.mxu0 0.0
        %3159 = vmatprep.subr.mxu0 0.0
        %3160 = vmatpush1.msra.mxu0 0.0
        %3161 = vmatprep.subr.mxu0 0.0
        %3162 = vmatpush1.msra.mxu0 0.0
        %3163 = vmatprep.subr.mxu0 0.0
        %3164 = vmatpush1.msra.mxu0 0.0
        %3165 = vmatprep.subr.mxu0 0.0
        %3166 = vmatpush1.msra.mxu0 0.0
        %3167 = vmatprep.subr.mxu0 0.0
        %3168 = vmatpush1.msra.mxu0 0.0
        %3169 = vmatprep.subr.mxu0 0.0
        %3170 = vmatpush1.msra.mxu0 0.0
        %3171 = vmatprep.subr.mxu0 0.0
        %3172 = vmatpush1.msra.mxu0 0.0
        %3173 = vmatprep.subr.mxu0 0.0
        %3174 = vmatpush1.msra.mxu0 0.0
        %3175 = vmatprep.subr.mxu0 0.0
        %3176 = vmatpush1.msra.mxu0 0.0
        %3177 = vmatprep.subr.mxu0 0.0
        %3178 = vmatpush1.msra.mxu0 0.0
        %3179 = vmatprep.mubr.f32.mxu0 0.0
        %3180 = vmatmul.mubr.f32.gmra.mrb[0].mxu0 %v3113
        %v3181 = vpop.f32.mrb[0].mxu0
        %v3182 = vadd.f32 0.0, %v3181
        %v3183 = vpop.f32.mrb[0].mxu0
        %3184 = vdwg.mxu0
        %v3186 = vsel %vm1503, %v3100, 0
        %3188 = vmatprep.subr.mxu0 0.0
        %3189 = vmatpush1.msra.mxu0 %v3101
        %3190 = vmatprep.subr.mxu0 0.0
        %3191 = vmatpush1.msra.mxu0 %v3102
        %3192 = vmatprep.subr.mxu0 0.0
        %3193 = vmatpush1.msra.mxu0 %v3103
        %3194 = vmatprep.subr.mxu0 0.0
        %3195 = vmatpush1.msra.mxu0 %v3104
        %3196 = vmatprep.subr.mxu0 0.0
        %3197 = vmatpush1.msra.mxu0 0.0
        %3198 = vmatprep.subr.mxu0 0.0
        %3199 = vmatpush1.msra.mxu0 0.0
        %3200 = vmatprep.subr.mxu0 0.0
        %3201 = vmatpush1.msra.mxu0 0.0
        %3202 = vmatprep.subr.mxu0 0.0
        %3203 = vmatpush1.msra.mxu0 0.0
        %3204 = vmatprep.subr.mxu0 0.0
        %3205 = vmatpush1.msra.mxu0 0.0
        %3206 = vmatprep.subr.mxu0 0.0
        %3207 = vmatpush1.msra.mxu0 0.0
        %3208 = vmatprep.subr.mxu0 0.0
        %3209 = vmatpush1.msra.mxu0 0.0
        %3210 = vmatprep.subr.mxu0 0.0
        %3211 = vmatpush1.msra.mxu0 0.0
        %3212 = vmatprep.subr.mxu0 0.0
        %3213 = vmatpush1.msra.mxu0 0.0
        %3214 = vmatprep.subr.mxu0 0.0
        %3215 = vmatpush1.msra.mxu0 0.0
        %3216 = vmatprep.subr.mxu0 0.0
        %3217 = vmatpush1.msra.mxu0 0.0
        %3218 = vmatprep.subr.mxu0 0.0
        %3219 = vmatpush1.msra.mxu0 0.0
        %3220 = vmatprep.subr.mxu0 0.0
        %3221 = vmatpush1.msra.mxu0 0.0
        %3222 = vmatprep.subr.mxu0 0.0
        %3223 = vmatpush1.msra.mxu0 0.0
        %3224 = vmatprep.subr.mxu0 0.0
        %3225 = vmatpush1.msra.mxu0 0.0
        %3226 = vmatprep.subr.mxu0 0.0
        %3227 = vmatpush1.msra.mxu0 0.0
        %3228 = vmatprep.subr.mxu0 0.0
        %3229 = vmatpush1.msra.mxu0 0.0
        %3230 = vmatprep.subr.mxu0 0.0
        %3231 = vmatpush1.msra.mxu0 0.0
        %3232 = vmatprep.subr.mxu0 0.0
        %3233 = vmatpush1.msra.mxu0 0.0
        %3234 = vmatprep.subr.mxu0 0.0
        %3235 = vmatpush1.msra.mxu0 0.0
        %3236 = vmatprep.subr.mxu0 0.0
        %3237 = vmatpush1.msra.mxu0 0.0
        %3238 = vmatprep.subr.mxu0 0.0
        %3239 = vmatpush1.msra.mxu0 0.0
        %3240 = vmatprep.subr.mxu0 0.0
        %3241 = vmatpush1.msra.mxu0 0.0
        %3242 = vmatprep.subr.mxu0 0.0
        %3243 = vmatpush1.msra.mxu0 0.0
        %3244 = vmatprep.subr.mxu0 0.0
        %3245 = vmatpush1.msra.mxu0 0.0
        %3246 = vmatprep.subr.mxu0 0.0
        %3247 = vmatpush1.msra.mxu0 0.0
        %3248 = vmatprep.subr.mxu0 0.0
        %3249 = vmatpush1.msra.mxu0 0.0
        %3250 = vmatprep.subr.mxu0 0.0
        %3251 = vmatpush1.msra.mxu0 0.0
        %3252 = vmatprep.mubr.f32.mxu0 0.0
        %3253 = vmatmul.mubr.f32.gmra.mrb[0].mxu0 %v3186
        %v3254 = vpop.f32.mrb[0].mxu0
        %v3255 = vadd.f32 %v3182, %v3254
        %v3256 = vpop.f32.mrb[0].mxu0
        %3257 = vdwg.mxu0
        %s3258 = scalar_lea.vmem [#allocation2], 2
        %v3259 = vld [vmem:[%s3258] ss:$2 sm:$0xff]
        %s3260 = scalar_lea.vmem %s55, 64
        %v3261 = vld [vmem:[%s3260] sm:$0xff]
        %v3262 = vld [vmem:[%s3260 + $0x8] sm:$0xff]
        %v3263 = vld [vmem:[%s3260 + $0x10] sm:$0xff]
        %v3264 = vld [vmem:[%s3260 + $0x18] sm:$0xff]
        %v3266 = vsel %vm1503, %v3259, 0
        %3268 = vmatprep.subr.mxu0 0.0
        %3269 = vmatpush1.msra.mxu0 %v3261
        %3270 = vmatprep.subr.mxu0 0.0
        %3271 = vmatpush1.msra.mxu0 %v3262
        %3272 = vmatprep.subr.mxu0 0.0
        %3273 = vmatpush1.msra.mxu0 %v3263
        %3274 = vmatprep.subr.mxu0 0.0
        %3275 = vmatpush1.msra.mxu0 %v3264
        %3276 = vmatprep.subr.mxu0 0.0
        %3277 = vmatpush1.msra.mxu0 0.0
        %3278 = vmatprep.subr.mxu0 0.0
        %3279 = vmatpush1.msra.mxu0 0.0
        %3280 = vmatprep.subr.mxu0 0.0
        %3281 = vmatpush1.msra.mxu0 0.0
        %3282 = vmatprep.subr.mxu0 0.0
        %3283 = vmatpush1.msra.mxu0 0.0
        %3284 = vmatprep.subr.mxu0 0.0
        %3285 = vmatpush1.msra.mxu0 0.0
        %3286 = vmatprep.subr.mxu0 0.0
        %3287 = vmatpush1.msra.mxu0 0.0
        %3288 = vmatprep.subr.mxu0 0.0
        %3289 = vmatpush1.msra.mxu0 0.0
        %3290 = vmatprep.subr.mxu0 0.0
        %3291 = vmatpush1.msra.mxu0 0.0
        %3292 = vmatprep.subr.mxu0 0.0
        %3293 = vmatpush1.msra.mxu0 0.0
        %3294 = vmatprep.subr.mxu0 0.0
        %3295 = vmatpush1.msra.mxu0 0.0
        %3296 = vmatprep.subr.mxu0 0.0
        %3297 = vmatpush1.msra.mxu0 0.0
        %3298 = vmatprep.subr.mxu0 0.0
        %3299 = vmatpush1.msra.mxu0 0.0
        %3300 = vmatprep.subr.mxu0 0.0
        %3301 = vmatpush1.msra.mxu0 0.0
        %3302 = vmatprep.subr.mxu0 0.0
        %3303 = vmatpush1.msra.mxu0 0.0
        %3304 = vmatprep.subr.mxu0 0.0
        %3305 = vmatpush1.msra.mxu0 0.0
        %3306 = vmatprep.subr.mxu0 0.0
        %3307 = vmatpush1.msra.mxu0 0.0
        %3308 = vmatprep.subr.mxu0 0.0
        %3309 = vmatpush1.msra.mxu0 0.0
        %3310 = vmatprep.subr.mxu0 0.0
        %3311 = vmatpush1.msra.mxu0 0.0
        %3312 = vmatprep.subr.mxu0 0.0
        %3313 = vmatpush1.msra.mxu0 0.0
        %3314 = vmatprep.subr.mxu0 0.0
        %3315 = vmatpush1.msra.mxu0 0.0
        %3316 = vmatprep.subr.mxu0 0.0
        %3317 = vmatpush1.msra.mxu0 0.0
        %3318 = vmatprep.subr.mxu0 0.0
        %3319 = vmatpush1.msra.mxu0 0.0
        %3320 = vmatprep.subr.mxu0 0.0
        %3321 = vmatpush1.msra.mxu0 0.0
        %3322 = vmatprep.subr.mxu0 0.0
        %3323 = vmatpush1.msra.mxu0 0.0
        %3324 = vmatprep.subr.mxu0 0.0
        %3325 = vmatpush1.msra.mxu0 0.0
        %3326 = vmatprep.subr.mxu0 0.0
        %3327 = vmatpush1.msra.mxu0 0.0
        %3328 = vmatprep.subr.mxu0 0.0
        %3329 = vmatpush1.msra.mxu0 0.0
        %3330 = vmatprep.subr.mxu0 0.0
        %3331 = vmatpush1.msra.mxu0 0.0
        %3332 = vmatprep.mubr.f32.mxu0 0.0
        %3333 = vmatmul.mubr.f32.gmra.mrb[0].mxu0 %v3266
        %v3334 = vpop.f32.mrb[0].mxu0
        %v3335 = vadd.f32 0.0, %v3334
        %v3336 = vpop.f32.mrb[0].mxu0
        %3337 = vdwg.mxu0
        %v3338 = vadd.f32 %v3255, %v3335
        %v3339 = vld [vmem:[%s57] sm:$0x1]
        %v3341 = vlaneseq
        %v3342 = vshrl.u32 %v3341, 7
        %v3343 = vsub.s32 0, %v3342
        %v3344 = vrot.slane %v3339, %v3343
        %v3346 = vadd.f32 %v3338, %v3344
        %vm3347 = vcmask 523264
        %3348 = vst.msk [vmem:[%s964] sm:$0xff] %vm3347, %v3346
        %s3349 = sand.u32 %s716, 1
        %s3350 = scalar_lea.sflag [#allocation5], %s3349
        %s3351 = sand.u32 %s716, 1
        %s3352 = smul.addr %s3351, 8
        %s3353 = scalar_lea.vmem [#allocation4], %s3352
        %s3354 = sand.u32 %s742, 1
        %s3355 = scalar_lea.sflag [#allocation7], %s3354
        %s3356 = sand.u32 %s742, 1
        %s3357 = smul.addr %s3356, 16
        %s3358 = scalar_lea.vmem [#allocation6], %s3357
        // Predicated region
        $region137: #{tpu_custom_call.1} parent=135 // pred_check
          %p3359 = pneg %p726
        $region138: #{tpu_custom_call.1} parent=135 // pred_check_branch
          %3361 = sbr.rel (%p3359) target = $region140
        $region139: #{tpu_custom_call.1} parent=135 // pred_region
          %s3363 = ssub.s32 128, 128
          %3364 = vsyncadd %s3350, %s3363
          %s3365 = smul.addr %s79, 128
          %s3366 = scalar_lea.hbm %s59, %s3365
          %s3368 = sshll.u32 %s3353, 4
          %s3369 = int_to_ptr.vmem [resolvable:$true] %s3368
          %3371 = dma.vmem_to_hbm [thread:$0]  %s3369, 128, %s3366, %s3350
        $region140: #{tpu_custom_call.1} parent=135 // pred_fallthru
          _
        // Predicated region
        $region141: #{tpu_custom_call.1} parent=135 // pred_check
          %p3372 = pneg %p752
        $region142: #{tpu_custom_call.1} parent=135 // pred_check_branch
          %3374 = sbr.rel (%p3372) target = $region144
        $region143: #{tpu_custom_call.1} parent=135 // pred_region
          %s3376 = ssub.s32 256, 256
          %3377 = vsyncadd %s3355, %s3376
          %s3378 = smul.addr %s79, 2
          %s3379 = smul.addr %s3378, 128
          %s3380 = scalar_lea.hbm %s61, %s3379
          %s3381 = sshll.u32 %s3358, 4
          %s3382 = int_to_ptr.vmem [resolvable:$true] %s3381
          %3387 = dma.vmem_to_hbm [thread:$0]  %s3382, 256, %s3380, %s3355, 128, 128, 8
        $region144: #{tpu_custom_call.1} parent=135 // pred_fallthru
          _
      $region136: #{tpu_custom_call.1} parent=5 // pred_fallthru
        _
      %p3388 = scmp.le.s32.totalorder 2, %s74
      // Predicated region
      $region145: #{tpu_custom_call.1} parent=5 // pred_check
        %p3389 = pneg %p3388
      $region146: #{tpu_custom_call.1} parent=5 // pred_check_branch
        %3391 = sbr.rel (%p3389) target = $region148
      $region147: #{tpu_custom_call.1} parent=5 // pred_region
        %s3392 = ssub.s32 %s74, 2
        // Predicated region
        $region149: #{tpu_custom_call.1} parent=147 // pred_check
          %p3393 = pneg %p732
        $region150: #{tpu_custom_call.1} parent=147 // pred_check_branch
          %3395 = sbr.rel (%p3393) target = $region152
        $region151: #{tpu_custom_call.1} parent=147 // pred_region
          %s3396 = sand.u32 %s717, 1
          %s3397 = scalar_lea.sflag [#allocation5], %s3396
          %s3398 = sand.u32 %s717, 1
          %s3399 = smul.addr %s3398, 8
          %s3400 = scalar_lea.vmem [#allocation4], %s3399
          %3401 = dma.done %s3397, 128
        $region152: #{tpu_custom_call.1} parent=147 // pred_fallthru
          _
        // Predicated region
        $region153: #{tpu_custom_call.1} parent=147 // pred_check
          %p3402 = pneg %p758
        $region154: #{tpu_custom_call.1} parent=147 // pred_check_branch
          %3404 = sbr.rel (%p3402) target = $region156
        $region155: #{tpu_custom_call.1} parent=147 // pred_region
          %s3405 = sand.u32 %s743, 1
          %s3406 = scalar_lea.sflag [#allocation7], %s3405
          %s3407 = sand.u32 %s743, 1
          %s3408 = smul.addr %s3407, 16
          %s3409 = scalar_lea.vmem [#allocation6], %s3408
          %3410 = dma.done %s3406, 256
        $region156: #{tpu_custom_call.1} parent=147 // pred_fallthru
          _
      $region148: #{tpu_custom_call.1} parent=5 // pred_fallthru
        _
    $region6: #{tpu_custom_call.1} parent=1 // loop_footer
      %s78 = sadd.s32 1, %s74
    $region7: #{tpu_custom_call.1} parent=1 // loop_footer_branch
      %73 = sbr.rel target = $region3
    $region8: #{tpu_custom_call.1} parent=1 // loop_exit
      _
    %3411 = vsyncpa [#allocation5], 1
    %s3412 = scalar_lea.sflag [#allocation5], 1
    %3413 = vsyncpa %s3412, 1
    %3414 = vsyncpa [#allocation7], 1
    %s3415 = scalar_lea.sflag [#allocation7], 1
    %3416 = vsyncpa %s3415, 1

</llo_original>
